<compile_context>
chip_gen: v7x
topology: tpu7x:2x2x1
jax: 0.10.0
libtpu: 0.0.40
codegen_flags: <defaults>
</compile_context>

<pallas_src>
import functools

import jax
import jax.numpy as jnp
from jax.experimental import pallas as pl
from jax.experimental.pallas import tpu as pltpu


# ----------------------------------------------------------------------------
# Pallas kernel
# ----------------------------------------------------------------------------
def lstm_mlp_kernel(xflat_ref,            # (T*BP, D)     bf16
                    wih1_ref,             # (D, 4*GP)     bf16, gate-padded
                    b1_ref,               # (1, 4*GP)     f32
                    whh1_ref,             # (HP, 4*GP)    bf16
                    wih2_ref,             # (HP, 4*GP)    bf16
                    whh2_ref,             # (HP, 4*GP)    bf16
                    b2_ref,               # (1, 4*GP)     f32
                    fcw_ref,              # (HP, OUTP)    f32, folded fc1@fc2
                    fcb_ref,              # (1, OUTP)     f32
                    out_ref,              # (BP, OUTP)    f32
                    pre1_ref,             # scratch: (T*BP, 4*GP) f32
                    *, T, BP, HP, GP):
    bf16 = jnp.bfloat16

    # Hoisted layer-1 input projection: one batched matmul, parked in VMEM
    # scratch (not a live SSA value) to keep vreg pressure low.
    pre1_ref[...] = (jnp.dot(xflat_ref[...], wih1_ref[...],
                             preferred_element_type=jnp.float32)
                     + b1_ref[...])

    h1 = jnp.zeros((BP, HP), jnp.float32)
    c1 = jnp.zeros((BP, HP), jnp.float32)
    h2 = jnp.zeros((BP, HP), jnp.float32)
    c2 = jnp.zeros((BP, HP), jnp.float32)

    def sig(v):
        # sigmoid(x) == 0.5*tanh(0.5*x) + 0.5 : one EUP op, no exp+divide chain.
        return 0.5 * jnp.tanh(0.5 * v) + 0.5

    def gates_to_hc(g, c):
        # 128-lane-aligned gate slices: free vreg views (no cross-lane shuffle).
        i = sig(g[:, 0 * GP:1 * GP])
        f = sig(g[:, 1 * GP:2 * GP])
        gg = jnp.tanh(g[:, 2 * GP:3 * GP])
        o = sig(g[:, 3 * GP:4 * GP])
        c_new = f * c + i * gg
        return o * jnp.tanh(c_new), c_new

    # Layer-2 recurrent contribution for step 0: h2 == 0, so it is just b2.
    g2_rec = b2_ref[...]                                   # (1, 4GP), broadcasts

    # Static full unroll over the short sequence (T is a Python int).
    for t in range(T):
        pre_t = pre1_ref[pl.ds(t * BP, BP), :]             # static, sublane-aligned
        if t == 0:
            g1 = pre_t                                     # h1 == 0: skip dead dot
        else:
            g1 = (jnp.dot(h1.astype(bf16), whh1_ref[...],
                          preferred_element_type=jnp.float32) + pre_t)
        h1, c1 = gates_to_hc(g1, c1)

        # Layer 2: only the h1 (input) half sits behind h1[t]; the recurrent
        # half was already issued against h2[t-1] at the end of the last step.
        g2 = (jnp.dot(h1.astype(bf16), wih2_ref[...],
                      preferred_element_type=jnp.float32) + g2_rec)
        h2, c2 = gates_to_hc(g2, c2)

        if t + 1 < T:
            # Issue next step's h2-recurrent matmul now; it only depends on
            # h2[t] and can overlap step t+1's layer-1 matmul + EUP chain.
            g2_rec = (jnp.dot(h2.astype(bf16), whh2_ref[...],
                              preferred_element_type=jnp.float32) + b2_ref[...])

    # Folded fc1+fc2 epilogue (f32), written as a lane-dense 128-wide slab.
    y = jnp.dot(h2, fcw_ref[...], preferred_element_type=jnp.float32) + fcb_ref[...]
    out_ref[...] = y.astype(out_ref.dtype)


# ----------------------------------------------------------------------------
# Parameter packing (padding / fusion / bf16 cast done once, outside the kernel)
# ----------------------------------------------------------------------------
def _pack_params(params, *, HP, GP, OUTP):
    H = params["whh1"].shape[0]
    bf16 = jnp.bfloat16

    def pad_gates(w):
        # (K, 4H), gate order [i,f,g,o] -> (K, 4*GP); each gate at lane offset
        # g*GP, padded lanes zero.
        K = w.shape[0]
        w4 = w.reshape(K, 4, H)
        return jnp.zeros((K, 4, GP), w.dtype).at[:, :, :H].set(w4).reshape(K, 4 * GP)

    def pad_rows(w, KP):
        return jnp.zeros((KP, w.shape[1]), w.dtype).at[:w.shape[0]].set(w)

    def pad_cols(w, NP):
        return jnp.zeros((w.shape[0], NP), w.dtype).at[:, :w.shape[1]].set(w)

    wih1 = pad_gates(params["wih1"]).astype(bf16)                  # (D, 4GP)
    whh1 = pad_rows(pad_gates(params["whh1"]), HP).astype(bf16)    # (HP, 4GP)
    wih2 = pad_rows(pad_gates(params["wih2"]), HP).astype(bf16)    # (HP, 4GP)
    whh2 = pad_rows(pad_gates(params["whh2"]), HP).astype(bf16)    # (HP, 4GP)
    b1 = pad_gates(params["b1"])                                   # (1, 4GP) f32
    b2 = pad_gates(params["b2"])                                   # (1, 4GP) f32
    # fc1 -> fc2 has no nonlinearity between them in LSTMModel.forward: fold.
    fc_w = pad_cols(pad_rows(params["fc1_w"] @ params["fc2_w"], HP), OUTP)
    fc_b = pad_cols(params["fc1_b"] @ params["fc2_w"] + params["fc2_b"], OUTP)
    return dict(wih1=wih1, b1=b1, whh1=whh1, wih2=wih2, whh2=whh2, b2=b2,
                fc_w=fc_w, fc_b=fc_b)


def lstm_model_forward(x, params):
    """x: (B, T, D) float32 -> (B, output_size) float32."""
    B, T, D = x.shape
    OUT = params["fc2_w"].shape[1]
    HP = 128           # padded hidden width (lanes)
    GP = 128           # per-gate lane slab
    OUTP = 128         # lane-dense padded output width
    BP = max(8, ((B + 7) // 8) * 8)   # batch padded to sublane multiple

    packed = _pack_params(params, HP=HP, GP=GP, OUTP=OUTP)

    # (B,T,D) -> pad batch -> (T, BP, D) -> (T*BP, D) so the per-step slice of
    # the hoisted projection is a static, sublane-aligned window.
    xp = jnp.zeros((BP, T, D), x.dtype).at[:B].set(x)
    x_flat = jnp.transpose(xp, (1, 0, 2)).reshape(T * BP, D).astype(jnp.bfloat16)

    kernel = functools.partial(lstm_mlp_kernel, T=T, BP=BP, HP=HP, GP=GP)
    vmem = pl.BlockSpec(memory_space=pltpu.MemorySpace.VMEM)
    operands = (x_flat, packed["wih1"], packed["b1"], packed["whh1"],
                packed["wih2"], packed["whh2"], packed["b2"],
                packed["fc_w"], packed["fc_b"])

    out = pl.pallas_call(
        kernel,
        out_shape=jax.ShapeDtypeStruct((BP, OUTP), jnp.float32),
        in_specs=[vmem] * len(operands),
        out_specs=vmem,
        scratch_shapes=[pltpu.VMEM((T * BP, 4 * GP), jnp.float32)],
    )(*operands)
    return out[:B, :OUT]


# ----------------------------------------------------------------------------
# Init + pure-JAX reference (unpadded f32, sequential — mirrors PyTorch)
# ----------------------------------------------------------------------------
def init_params(key, input_size, hidden_size=50, output_size=1):
    H = hidden_size
    ks = jax.random.split(key, 12)
    k_lstm = 1.0 / jnp.sqrt(H)

    def u(k, shape, bound):
        return jax.random.uniform(k, shape, jnp.float32, -bound, bound)

    return {
        "wih1": u(ks[0], (input_size, 4 * H), k_lstm),
        "whh1": u(ks[1], (H, 4 * H), k_lstm),
        "b1":   u(ks[2], (1, 4 * H), k_lstm) + u(ks[3], (1, 4 * H), k_lstm),
        "wih2": u(ks[4], (H, 4 * H), k_lstm),
        "whh2": u(ks[5], (H, 4 * H), k_lstm),
        "b2":   u(ks[6], (1, 4 * H), k_lstm) + u(ks[7], (1, 4 * H), k_lstm),
        "fc1_w": u(ks[8], (H, 25), 1.0 / jnp.sqrt(H)),
        "fc1_b": u(ks[9], (1, 25), 1.0 / jnp.sqrt(H)),
        "fc2_w": u(ks[10], (25, output_size), 1.0 / jnp.sqrt(25.0)),
        "fc2_b": u(ks[11], (1, output_size), 1.0 / jnp.sqrt(25.0)),
    }


def _lstm_cell_ref(xt, h, c, w_ih, w_hh, b, H):
    gates = xt @ w_ih + h @ w_hh + b
    i = jax.nn.sigmoid(gates[:, 0 * H:1 * H])
    f = jax.nn.sigmoid(gates[:, 1 * H:2 * H])
    g = jnp.tanh(gates[:, 2 * H:3 * H])
    o = jax.nn.sigmoid(gates[:, 3 * H:4 * H])
    c_new = f * c + i * g
    return o * jnp.tanh(c_new), c_new


def reference_forward(x, params):
    B, T, _ = x.shape
    H = params["whh1"].shape[0]
    zeros = jnp.zeros((B, H), jnp.float32)

    def step(carry, xt):
        h1, c1, h2, c2 = carry
        h1, c1 = _lstm_cell_ref(xt, h1, c1, params["wih1"], params["whh1"],
                                params["b1"], H)
        h2, c2 = _lstm_cell_ref(h1, h2, c2, params["wih2"], params["whh2"],
                                params["b2"], H)
        return (h1, c1, h2, c2), None

    (h1, c1, h2, c2), _ = jax.lax.scan(step, (zeros, zeros, zeros, zeros),
                                       jnp.swapaxes(x, 0, 1))
    y = h2 @ params["fc1_w"] + params["fc1_b"]
    y = y @ params["fc2_w"] + params["fc2_b"]
    return y


if __name__ == "__main__":
    B, T, D = 2, 8, 4          # batch=2, seq=8, input_size=4
    H, OUT = 50, 1             # module defaults: hidden_size=50, output_size=1

    key = jax.random.PRNGKey(0)
    k_x, k_p = jax.random.split(key)
    x = jax.random.normal(k_x, (B, T, D), jnp.float32)
    params = init_params(k_p, input_size=D, hidden_size=H, output_size=OUT)

    out = jax.block_until_ready(lstm_model_forward(x, params))
    ref = jax.block_until_ready(reference_forward(x, params))

    assert out.shape == (B, OUT), out.shape
    # bf16 MXU operands (f32 accumulate) vs the f32 reference: tolerance relaxed.
    assert jnp.allclose(out, ref, atol=2e-2, rtol=2e-2), (out, ref)
    print("KERNEL_OK")
</pallas_src>

<mosaic_0001>
module attributes {stable_mosaic.version = 11 : i64} {
  func.func @lstm_mlp_kernel(%arg0: memref<64x4xbf16, #tpu.memory_space<vmem>>, %arg1: memref<4x512xbf16, #tpu.memory_space<vmem>>, %arg2: memref<1x512xf32, #tpu.memory_space<vmem>>, %arg3: memref<128x512xbf16, #tpu.memory_space<vmem>>, %arg4: memref<128x512xbf16, #tpu.memory_space<vmem>>, %arg5: memref<128x512xbf16, #tpu.memory_space<vmem>>, %arg6: memref<1x512xf32, #tpu.memory_space<vmem>>, %arg7: memref<128x128xf32, #tpu.memory_space<vmem>>, %arg8: memref<1x128xf32, #tpu.memory_space<vmem>>, %arg9: memref<8x128xf32, #tpu.memory_space<vmem>>, %arg10: memref<64x512xf32, #tpu.memory_space<vmem>>) attributes {dimension_semantics = [], scalar_prefetch = 0 : i64, scratch_operands = 1 : i64, tpu.core_type = #tpu.core_type<tc>} {
    %c0 = arith.constant 0 : index
    %c0_0 = arith.constant 0 : index
    %0 = vector.load %arg0[%c0, %c0_0] : memref<64x4xbf16, #tpu.memory_space<vmem>>, vector<64x4xbf16>
    %c0_1 = arith.constant 0 : index
    %c0_2 = arith.constant 0 : index
    %1 = vector.load %arg1[%c0_1, %c0_2] : memref<4x512xbf16, #tpu.memory_space<vmem>>, vector<4x512xbf16>
    %cst = arith.constant dense<0.000000e+00> : vector<64x512xf32>
    %2 = tpu.matmul %0, %1, %cst {dimension_numbers = #tpu.dot_dimension_numbers<[1], [0], [0], [1], [0, 0, 1, 1], [], []>} : vector<64x4xbf16>, vector<4x512xbf16>, vector<64x512xf32> -> vector<64x512xf32>
    %c0_3 = arith.constant 0 : index
    %c0_4 = arith.constant 0 : index
    %3 = vector.load %arg2[%c0_3, %c0_4] : memref<1x512xf32, #tpu.memory_space<vmem>>, vector<1x512xf32>
    %4 = vector.broadcast %3 : vector<1x512xf32> to vector<64x512xf32>
    %5 = arith.addf %2, %4 : vector<64x512xf32>
    %c0_5 = arith.constant 0 : index
    %c0_6 = arith.constant 0 : index
    %6 = vector.load %arg10[%c0_5, %c0_6] : memref<64x512xf32, #tpu.memory_space<vmem>>, vector<64x512xf32>
    tpu.vector_store %arg10[%c0_5, %c0_6], %5 {strides = array<i32>} : memref<64x512xf32, #tpu.memory_space<vmem>>, vector<64x512xf32>,
    %cst_7 = arith.constant 0.000000e+00 : f32
    %7 = vector.broadcast %cst_7 : f32 to vector<8x128xf32>
    %cst_8 = arith.constant 0.000000e+00 : f32
    %8 = vector.broadcast %cst_8 : f32 to vector<8x128xf32>
    %c0_9 = arith.constant 0 : index
    %c0_10 = arith.constant 0 : index
    %9 = vector.load %arg6[%c0_9, %c0_10] : memref<1x512xf32, #tpu.memory_space<vmem>>, vector<1x512xf32>
    %c0_11 = arith.constant 0 : index
    %c0_12 = arith.constant 0 : index
    %10 = vector.load %arg10[%c0_11, %c0_12] : memref<64x512xf32, #tpu.memory_space<vmem>>, vector<8x512xf32>
    %11 = vector.extract_strided_slice %10 {offsets = [0, 0], sizes = [8, 128], strides = [1, 1]} : vector<8x512xf32> to vector<8x128xf32>
    %cst_13 = arith.constant 5.000000e-01 : f32
    %12 = vector.broadcast %cst_13 : f32 to vector<8x128xf32>
    %13 = arith.mulf %12, %11 : vector<8x128xf32>
    %14 = math.tanh %13 : vector<8x128xf32>
    %cst_14 = arith.constant 5.000000e-01 : f32
    %15 = vector.broadcast %cst_14 : f32 to vector<8x128xf32>
    %16 = arith.mulf %15, %14 : vector<8x128xf32>
    %cst_15 = arith.constant 5.000000e-01 : f32
    %17 = vector.broadcast %cst_15 : f32 to vector<8x128xf32>
    %18 = arith.addf %16, %17 : vector<8x128xf32>
    %19 = vector.extract_strided_slice %10 {offsets = [0, 128], sizes = [8, 128], strides = [1, 1]} : vector<8x512xf32> to vector<8x128xf32>
    %cst_16 = arith.constant 5.000000e-01 : f32
    %20 = vector.broadcast %cst_16 : f32 to vector<8x128xf32>
    %21 = arith.mulf %20, %19 : vector<8x128xf32>
    %22 = math.tanh %21 : vector<8x128xf32>
    %cst_17 = arith.constant 5.000000e-01 : f32
    %23 = vector.broadcast %cst_17 : f32 to vector<8x128xf32>
    %24 = arith.mulf %23, %22 : vector<8x128xf32>
    %cst_18 = arith.constant 5.000000e-01 : f32
    %25 = vector.broadcast %cst_18 : f32 to vector<8x128xf32>
    %26 = arith.addf %24, %25 : vector<8x128xf32>
    %27 = vector.extract_strided_slice %10 {offsets = [0, 256], sizes = [8, 128], strides = [1, 1]} : vector<8x512xf32> to vector<8x128xf32>
    %28 = math.tanh %27 : vector<8x128xf32>
    %29 = vector.extract_strided_slice %10 {offsets = [0, 384], sizes = [8, 128], strides = [1, 1]} : vector<8x512xf32> to vector<8x128xf32>
    %cst_19 = arith.constant 5.000000e-01 : f32
    %30 = vector.broadcast %cst_19 : f32 to vector<8x128xf32>
    %31 = arith.mulf %30, %29 : vector<8x128xf32>
    %32 = math.tanh %31 : vector<8x128xf32>
    %cst_20 = arith.constant 5.000000e-01 : f32
    %33 = vector.broadcast %cst_20 : f32 to vector<8x128xf32>
    %34 = arith.mulf %33, %32 : vector<8x128xf32>
    %cst_21 = arith.constant 5.000000e-01 : f32
    %35 = vector.broadcast %cst_21 : f32 to vector<8x128xf32>
    %36 = arith.addf %34, %35 : vector<8x128xf32>
    %37 = arith.mulf %26, %7 : vector<8x128xf32>
    %38 = arith.mulf %18, %28 : vector<8x128xf32>
    %39 = arith.addf %37, %38 : vector<8x128xf32>
    %40 = math.tanh %39 : vector<8x128xf32>
    %41 = arith.mulf %36, %40 : vector<8x128xf32>
    %42 = arith.truncf %41 : vector<8x128xf32> to vector<8x128xbf16>
    %c0_22 = arith.constant 0 : index
    %c0_23 = arith.constant 0 : index
    %43 = vector.load %arg4[%c0_22, %c0_23] : memref<128x512xbf16, #tpu.memory_space<vmem>>, vector<128x512xbf16>
    %cst_24 = arith.constant dense<0.000000e+00> : vector<8x512xf32>
    %44 = tpu.matmul %42, %43, %cst_24 {dimension_numbers = #tpu.dot_dimension_numbers<[1], [0], [0], [1], [0, 0, 1, 1], [], []>} : vector<8x128xbf16>, vector<128x512xbf16>, vector<8x512xf32> -> vector<8x512xf32>
    %45 = vector.broadcast %9 : vector<1x512xf32> to vector<8x512xf32>
    %46 = arith.addf %44, %45 : vector<8x512xf32>
    %47 = vector.extract_strided_slice %46 {offsets = [0, 0], sizes = [8, 128], strides = [1, 1]} : vector<8x512xf32> to vector<8x128xf32>
    %cst_25 = arith.constant 5.000000e-01 : f32
    %48 = vector.broadcast %cst_25 : f32 to vector<8x128xf32>
    %49 = arith.mulf %48, %47 : vector<8x128xf32>
    %50 = math.tanh %49 : vector<8x128xf32>
    %cst_26 = arith.constant 5.000000e-01 : f32
    %51 = vector.broadcast %cst_26 : f32 to vector<8x128xf32>
    %52 = arith.mulf %51, %50 : vector<8x128xf32>
    %cst_27 = arith.constant 5.000000e-01 : f32
    %53 = vector.broadcast %cst_27 : f32 to vector<8x128xf32>
    %54 = arith.addf %52, %53 : vector<8x128xf32>
    %55 = vector.extract_strided_slice %46 {offsets = [0, 128], sizes = [8, 128], strides = [1, 1]} : vector<8x512xf32> to vector<8x128xf32>
    %cst_28 = arith.constant 5.000000e-01 : f32
    %56 = vector.broadcast %cst_28 : f32 to vector<8x128xf32>
    %57 = arith.mulf %56, %55 : vector<8x128xf32>
    %58 = math.tanh %57 : vector<8x128xf32>
    %cst_29 = arith.constant 5.000000e-01 : f32
    %59 = vector.broadcast %cst_29 : f32 to vector<8x128xf32>
    %60 = arith.mulf %59, %58 : vector<8x128xf32>
    %cst_30 = arith.constant 5.000000e-01 : f32
    %61 = vector.broadcast %cst_30 : f32 to vector<8x128xf32>
    %62 = arith.addf %60, %61 : vector<8x128xf32>
    %63 = vector.extract_strided_slice %46 {offsets = [0, 256], sizes = [8, 128], strides = [1, 1]} : vector<8x512xf32> to vector<8x128xf32>
    %64 = math.tanh %63 : vector<8x128xf32>
    %65 = vector.extract_strided_slice %46 {offsets = [0, 384], sizes = [8, 128], strides = [1, 1]} : vector<8x512xf32> to vector<8x128xf32>
    %cst_31 = arith.constant 5.000000e-01 : f32
    %66 = vector.broadcast %cst_31 : f32 to vector<8x128xf32>
    %67 = arith.mulf %66, %65 : vector<8x128xf32>
    %68 = math.tanh %67 : vector<8x128xf32>
    %cst_32 = arith.constant 5.000000e-01 : f32
    %69 = vector.broadcast %cst_32 : f32 to vector<8x128xf32>
    %70 = arith.mulf %69, %68 : vector<8x128xf32>
    %cst_33 = arith.constant 5.000000e-01 : f32
    %71 = vector.broadcast %cst_33 : f32 to vector<8x128xf32>
    %72 = arith.addf %70, %71 : vector<8x128xf32>
    %73 = arith.mulf %62, %8 : vector<8x128xf32>
    %74 = arith.mulf %54, %64 : vector<8x128xf32>
    %75 = arith.addf %73, %74 : vector<8x128xf32>
    %76 = math.tanh %75 : vector<8x128xf32>
    %77 = arith.mulf %72, %76 : vector<8x128xf32>
    %78 = arith.truncf %77 : vector<8x128xf32> to vector<8x128xbf16>
    %c0_34 = arith.constant 0 : index
    %c0_35 = arith.constant 0 : index
    %79 = vector.load %arg5[%c0_34, %c0_35] : memref<128x512xbf16, #tpu.memory_space<vmem>>, vector<128x512xbf16>
    %cst_36 = arith.constant dense<0.000000e+00> : vector<8x512xf32>
    %80 = tpu.matmul %78, %79, %cst_36 {dimension_numbers = #tpu.dot_dimension_numbers<[1], [0], [0], [1], [0, 0, 1, 1], [], []>} : vector<8x128xbf16>, vector<128x512xbf16>, vector<8x512xf32> -> vector<8x512xf32>
    %c0_37 = arith.constant 0 : index
    %c0_38 = arith.constant 0 : index
    %81 = vector.load %arg6[%c0_37, %c0_38] : memref<1x512xf32, #tpu.memory_space<vmem>>, vector<1x512xf32>
    %82 = vector.broadcast %81 : vector<1x512xf32> to vector<8x512xf32>
    %83 = arith.addf %80, %82 : vector<8x512xf32>
    %c8 = arith.constant 8 : index
    %c0_39 = arith.constant 0 : index
    %84 = vector.load %arg10[%c8, %c0_39] : memref<64x512xf32, #tpu.memory_space<vmem>>, vector<8x512xf32>
    %85 = arith.truncf %41 : vector<8x128xf32> to vector<8x128xbf16>
    %c0_40 = arith.constant 0 : index
    %c0_41 = arith.constant 0 : index
    %86 = vector.load %arg3[%c0_40, %c0_41] : memref<128x512xbf16, #tpu.memory_space<vmem>>, vector<128x512xbf16>
    %cst_42 = arith.constant dense<0.000000e+00> : vector<8x512xf32>
    %87 = tpu.matmul %85, %86, %cst_42 {dimension_numbers = #tpu.dot_dimension_numbers<[1], [0], [0], [1], [0, 0, 1, 1], [], []>} : vector<8x128xbf16>, vector<128x512xbf16>, vector<8x512xf32> -> vector<8x512xf32>
    %88 = arith.addf %87, %84 : vector<8x512xf32>
    %89 = vector.extract_strided_slice %88 {offsets = [0, 0], sizes = [8, 128], strides = [1, 1]} : vector<8x512xf32> to vector<8x128xf32>
    %cst_43 = arith.constant 5.000000e-01 : f32
    %90 = vector.broadcast %cst_43 : f32 to vector<8x128xf32>
    %91 = arith.mulf %90, %89 : vector<8x128xf32>
    %92 = math.tanh %91 : vector<8x128xf32>
    %cst_44 = arith.constant 5.000000e-01 : f32
    %93 = vector.broadcast %cst_44 : f32 to vector<8x128xf32>
    %94 = arith.mulf %93, %92 : vector<8x128xf32>
    %cst_45 = arith.constant 5.000000e-01 : f32
    %95 = vector.broadcast %cst_45 : f32 to vector<8x128xf32>
    %96 = arith.addf %94, %95 : vector<8x128xf32>
    %97 = vector.extract_strided_slice %88 {offsets = [0, 128], sizes = [8, 128], strides = [1, 1]} : vector<8x512xf32> to vector<8x128xf32>
    %cst_46 = arith.constant 5.000000e-01 : f32
    %98 = vector.broadcast %cst_46 : f32 to vector<8x128xf32>
    %99 = arith.mulf %98, %97 : vector<8x128xf32>
    %100 = math.tanh %99 : vector<8x128xf32>
    %cst_47 = arith.constant 5.000000e-01 : f32
    %101 = vector.broadcast %cst_47 : f32 to vector<8x128xf32>
    %102 = arith.mulf %101, %100 : vector<8x128xf32>
    %cst_48 = arith.constant 5.000000e-01 : f32
    %103 = vector.broadcast %cst_48 : f32 to vector<8x128xf32>
    %104 = arith.addf %102, %103 : vector<8x128xf32>
    %105 = vector.extract_strided_slice %88 {offsets = [0, 256], sizes = [8, 128], strides = [1, 1]} : vector<8x512xf32> to vector<8x128xf32>
    %106 = math.tanh %105 : vector<8x128xf32>
    %107 = vector.extract_strided_slice %88 {offsets = [0, 384], sizes = [8, 128], strides = [1, 1]} : vector<8x512xf32> to vector<8x128xf32>
    %cst_49 = arith.constant 5.000000e-01 : f32
    %108 = vector.broadcast %cst_49 : f32 to vector<8x128xf32>
    %109 = arith.mulf %108, %107 : vector<8x128xf32>
    %110 = math.tanh %109 : vector<8x128xf32>
    %cst_50 = arith.constant 5.000000e-01 : f32
    %111 = vector.broadcast %cst_50 : f32 to vector<8x128xf32>
    %112 = arith.mulf %111, %110 : vector<8x128xf32>
    %cst_51 = arith.constant 5.000000e-01 : f32
    %113 = vector.broadcast %cst_51 : f32 to vector<8x128xf32>
    %114 = arith.addf %112, %113 : vector<8x128xf32>
    %115 = arith.mulf %104, %39 : vector<8x128xf32>
    %116 = arith.mulf %96, %106 : vector<8x128xf32>
    %117 = arith.addf %115, %116 : vector<8x128xf32>
    %118 = math.tanh %117 : vector<8x128xf32>
    %119 = arith.mulf %114, %118 : vector<8x128xf32>
    %120 = arith.truncf %119 : vector<8x128xf32> to vector<8x128xbf16>
    %c0_52 = arith.constant 0 : index
    %c0_53 = arith.constant 0 : index
    %121 = vector.load %arg4[%c0_52, %c0_53] : memref<128x512xbf16, #tpu.memory_space<vmem>>, vector<128x512xbf16>
    %cst_54 = arith.constant dense<0.000000e+00> : vector<8x512xf32>
    %122 = tpu.matmul %120, %121, %cst_54 {dimension_numbers = #tpu.dot_dimension_numbers<[1], [0], [0], [1], [0, 0, 1, 1], [], []>} : vector<8x128xbf16>, vector<128x512xbf16>, vector<8x512xf32> -> vector<8x512xf32>
    %123 = arith.addf %122, %83 : vector<8x512xf32>
    %124 = vector.extract_strided_slice %123 {offsets = [0, 0], sizes = [8, 128], strides = [1, 1]} : vector<8x512xf32> to vector<8x128xf32>
    %cst_55 = arith.constant 5.000000e-01 : f32
    %125 = vector.broadcast %cst_55 : f32 to vector<8x128xf32>
    %126 = arith.mulf %125, %124 : vector<8x128xf32>
    %127 = math.tanh %126 : vector<8x128xf32>
    %cst_56 = arith.constant 5.000000e-01 : f32
    %128 = vector.broadcast %cst_56 : f32 to vector<8x128xf32>
    %129 = arith.mulf %128, %127 : vector<8x128xf32>
    %cst_57 = arith.constant 5.000000e-01 : f32
    %130 = vector.broadcast %cst_57 : f32 to vector<8x128xf32>
    %131 = arith.addf %129, %130 : vector<8x128xf32>
    %132 = vector.extract_strided_slice %123 {offsets = [0, 128], sizes = [8, 128], strides = [1, 1]} : vector<8x512xf32> to vector<8x128xf32>
    %cst_58 = arith.constant 5.000000e-01 : f32
    %133 = vector.broadcast %cst_58 : f32 to vector<8x128xf32>
    %134 = arith.mulf %133, %132 : vector<8x128xf32>
    %135 = math.tanh %134 : vector<8x128xf32>
    %cst_59 = arith.constant 5.000000e-01 : f32
    %136 = vector.broadcast %cst_59 : f32 to vector<8x128xf32>
    %137 = arith.mulf %136, %135 : vector<8x128xf32>
    %cst_60 = arith.constant 5.000000e-01 : f32
    %138 = vector.broadcast %cst_60 : f32 to vector<8x128xf32>
    %139 = arith.addf %137, %138 : vector<8x128xf32>
    %140 = vector.extract_strided_slice %123 {offsets = [0, 256], sizes = [8, 128], strides = [1, 1]} : vector<8x512xf32> to vector<8x128xf32>
    %141 = math.tanh %140 : vector<8x128xf32>
    %142 = vector.extract_strided_slice %123 {offsets = [0, 384], sizes = [8, 128], strides = [1, 1]} : vector<8x512xf32> to vector<8x128xf32>
    %cst_61 = arith.constant 5.000000e-01 : f32
    %143 = vector.broadcast %cst_61 : f32 to vector<8x128xf32>
    %144 = arith.mulf %143, %142 : vector<8x128xf32>
    %145 = math.tanh %144 : vector<8x128xf32>
    %cst_62 = arith.constant 5.000000e-01 : f32
    %146 = vector.broadcast %cst_62 : f32 to vector<8x128xf32>
    %147 = arith.mulf %146, %145 : vector<8x128xf32>
    %cst_63 = arith.constant 5.000000e-01 : f32
    %148 = vector.broadcast %cst_63 : f32 to vector<8x128xf32>
    %149 = arith.addf %147, %148 : vector<8x128xf32>
    %150 = arith.mulf %139, %75 : vector<8x128xf32>
    %151 = arith.mulf %131, %141 : vector<8x128xf32>
    %152 = arith.addf %150, %151 : vector<8x128xf32>
    %153 = math.tanh %152 : vector<8x128xf32>
    %154 = arith.mulf %149, %153 : vector<8x128xf32>
    %155 = arith.truncf %154 : vector<8x128xf32> to vector<8x128xbf16>
    %c0_64 = arith.constant 0 : index
    %c0_65 = arith.constant 0 : index
    %156 = vector.load %arg5[%c0_64, %c0_65] : memref<128x512xbf16, #tpu.memory_space<vmem>>, vector<128x512xbf16>
    %cst_66 = arith.constant dense<0.000000e+00> : vector<8x512xf32>
    %157 = tpu.matmul %155, %156, %cst_66 {dimension_numbers = #tpu.dot_dimension_numbers<[1], [0], [0], [1], [0, 0, 1, 1], [], []>} : vector<8x128xbf16>, vector<128x512xbf16>, vector<8x512xf32> -> vector<8x512xf32>
    %c0_67 = arith.constant 0 : index
    %c0_68 = arith.constant 0 : index
    %158 = vector.load %arg6[%c0_67, %c0_68] : memref<1x512xf32, #tpu.memory_space<vmem>>, vector<1x512xf32>
    %159 = vector.broadcast %158 : vector<1x512xf32> to vector<8x512xf32>
    %160 = arith.addf %157, %159 : vector<8x512xf32>
    %c16 = arith.constant 16 : index
    %c0_69 = arith.constant 0 : index
    %161 = vector.load %arg10[%c16, %c0_69] : memref<64x512xf32, #tpu.memory_space<vmem>>, vector<8x512xf32>
    %162 = arith.truncf %119 : vector<8x128xf32> to vector<8x128xbf16>
    %c0_70 = arith.constant 0 : index
    %c0_71 = arith.constant 0 : index
    %163 = vector.load %arg3[%c0_70, %c0_71] : memref<128x512xbf16, #tpu.memory_space<vmem>>, vector<128x512xbf16>
    %cst_72 = arith.constant dense<0.000000e+00> : vector<8x512xf32>
    %164 = tpu.matmul %162, %163, %cst_72 {dimension_numbers = #tpu.dot_dimension_numbers<[1], [0], [0], [1], [0, 0, 1, 1], [], []>} : vector<8x128xbf16>, vector<128x512xbf16>, vector<8x512xf32> -> vector<8x512xf32>
    %165 = arith.addf %164, %161 : vector<8x512xf32>
    %166 = vector.extract_strided_slice %165 {offsets = [0, 0], sizes = [8, 128], strides = [1, 1]} : vector<8x512xf32> to vector<8x128xf32>
    %cst_73 = arith.constant 5.000000e-01 : f32
    %167 = vector.broadcast %cst_73 : f32 to vector<8x128xf32>
    %168 = arith.mulf %167, %166 : vector<8x128xf32>
    %169 = math.tanh %168 : vector<8x128xf32>
    %cst_74 = arith.constant 5.000000e-01 : f32
    %170 = vector.broadcast %cst_74 : f32 to vector<8x128xf32>
    %171 = arith.mulf %170, %169 : vector<8x128xf32>
    %cst_75 = arith.constant 5.000000e-01 : f32
    %172 = vector.broadcast %cst_75 : f32 to vector<8x128xf32>
    %173 = arith.addf %171, %172 : vector<8x128xf32>
    %174 = vector.extract_strided_slice %165 {offsets = [0, 128], sizes = [8, 128], strides = [1, 1]} : vector<8x512xf32> to vector<8x128xf32>
    %cst_76 = arith.constant 5.000000e-01 : f32
    %175 = vector.broadcast %cst_76 : f32 to vector<8x128xf32>
    %176 = arith.mulf %175, %174 : vector<8x128xf32>
    %177 = math.tanh %176 : vector<8x128xf32>
    %cst_77 = arith.constant 5.000000e-01 : f32
    %178 = vector.broadcast %cst_77 : f32 to vector<8x128xf32>
    %179 = arith.mulf %178, %177 : vector<8x128xf32>
    %cst_78 = arith.constant 5.000000e-01 : f32
    %180 = vector.broadcast %cst_78 : f32 to vector<8x128xf32>
    %181 = arith.addf %179, %180 : vector<8x128xf32>
    %182 = vector.extract_strided_slice %165 {offsets = [0, 256], sizes = [8, 128], strides = [1, 1]} : vector<8x512xf32> to vector<8x128xf32>
    %183 = math.tanh %182 : vector<8x128xf32>
    %184 = vector.extract_strided_slice %165 {offsets = [0, 384], sizes = [8, 128], strides = [1, 1]} : vector<8x512xf32> to vector<8x128xf32>
    %cst_79 = arith.constant 5.000000e-01 : f32
    %185 = vector.broadcast %cst_79 : f32 to vector<8x128xf32>
    %186 = arith.mulf %185, %184 : vector<8x128xf32>
    %187 = math.tanh %186 : vector<8x128xf32>
    %cst_80 = arith.constant 5.000000e-01 : f32
    %188 = vector.broadcast %cst_80 : f32 to vector<8x128xf32>
    %189 = arith.mulf %188, %187 : vector<8x128xf32>
    %cst_81 = arith.constant 5.000000e-01 : f32
    %190 = vector.broadcast %cst_81 : f32 to vector<8x128xf32>
    %191 = arith.addf %189, %190 : vector<8x128xf32>
    %192 = arith.mulf %181, %117 : vector<8x128xf32>
    %193 = arith.mulf %173, %183 : vector<8x128xf32>
    %194 = arith.addf %192, %193 : vector<8x128xf32>
    %195 = math.tanh %194 : vector<8x128xf32>
    %196 = arith.mulf %191, %195 : vector<8x128xf32>
    %197 = arith.truncf %196 : vector<8x128xf32> to vector<8x128xbf16>
    %c0_82 = arith.constant 0 : index
    %c0_83 = arith.constant 0 : index
    %198 = vector.load %arg4[%c0_82, %c0_83] : memref<128x512xbf16, #tpu.memory_space<vmem>>, vector<128x512xbf16>
    %cst_84 = arith.constant dense<0.000000e+00> : vector<8x512xf32>
    %199 = tpu.matmul %197, %198, %cst_84 {dimension_numbers = #tpu.dot_dimension_numbers<[1], [0], [0], [1], [0, 0, 1, 1], [], []>} : vector<8x128xbf16>, vector<128x512xbf16>, vector<8x512xf32> -> vector<8x512xf32>
    %200 = arith.addf %199, %160 : vector<8x512xf32>
    %201 = vector.extract_strided_slice %200 {offsets = [0, 0], sizes = [8, 128], strides = [1, 1]} : vector<8x512xf32> to vector<8x128xf32>
    %cst_85 = arith.constant 5.000000e-01 : f32
    %202 = vector.broadcast %cst_85 : f32 to vector<8x128xf32>
    %203 = arith.mulf %202, %201 : vector<8x128xf32>
    %204 = math.tanh %203 : vector<8x128xf32>
    %cst_86 = arith.constant 5.000000e-01 : f32
    %205 = vector.broadcast %cst_86 : f32 to vector<8x128xf32>
    %206 = arith.mulf %205, %204 : vector<8x128xf32>
    %cst_87 = arith.constant 5.000000e-01 : f32
    %207 = vector.broadcast %cst_87 : f32 to vector<8x128xf32>
    %208 = arith.addf %206, %207 : vector<8x128xf32>
    %209 = vector.extract_strided_slice %200 {offsets = [0, 128], sizes = [8, 128], strides = [1, 1]} : vector<8x512xf32> to vector<8x128xf32>
    %cst_88 = arith.constant 5.000000e-01 : f32
    %210 = vector.broadcast %cst_88 : f32 to vector<8x128xf32>
    %211 = arith.mulf %210, %209 : vector<8x128xf32>
    %212 = math.tanh %211 : vector<8x128xf32>
    %cst_89 = arith.constant 5.000000e-01 : f32
    %213 = vector.broadcast %cst_89 : f32 to vector<8x128xf32>
    %214 = arith.mulf %213, %212 : vector<8x128xf32>
    %cst_90 = arith.constant 5.000000e-01 : f32
    %215 = vector.broadcast %cst_90 : f32 to vector<8x128xf32>
    %216 = arith.addf %214, %215 : vector<8x128xf32>
    %217 = vector.extract_strided_slice %200 {offsets = [0, 256], sizes = [8, 128], strides = [1, 1]} : vector<8x512xf32> to vector<8x128xf32>
    %218 = math.tanh %217 : vector<8x128xf32>
    %219 = vector.extract_strided_slice %200 {offsets = [0, 384], sizes = [8, 128], strides = [1, 1]} : vector<8x512xf32> to vector<8x128xf32>
    %cst_91 = arith.constant 5.000000e-01 : f32
    %220 = vector.broadcast %cst_91 : f32 to vector<8x128xf32>
    %221 = arith.mulf %220, %219 : vector<8x128xf32>
    %222 = math.tanh %221 : vector<8x128xf32>
    %cst_92 = arith.constant 5.000000e-01 : f32
    %223 = vector.broadcast %cst_92 : f32 to vector<8x128xf32>
    %224 = arith.mulf %223, %222 : vector<8x128xf32>
    %cst_93 = arith.constant 5.000000e-01 : f32
    %225 = vector.broadcast %cst_93 : f32 to vector<8x128xf32>
    %226 = arith.addf %224, %225 : vector<8x128xf32>
    %227 = arith.mulf %216, %152 : vector<8x128xf32>
    %228 = arith.mulf %208, %218 : vector<8x128xf32>
    %229 = arith.addf %227, %228 : vector<8x128xf32>
    %230 = math.tanh %229 : vector<8x128xf32>
    %231 = arith.mulf %226, %230 : vector<8x128xf32>
    %232 = arith.truncf %231 : vector<8x128xf32> to vector<8x128xbf16>
    %c0_94 = arith.constant 0 : index
    %c0_95 = arith.constant 0 : index
    %233 = vector.load %arg5[%c0_94, %c0_95] : memref<128x512xbf16, #tpu.memory_space<vmem>>, vector<128x512xbf16>
    %cst_96 = arith.constant dense<0.000000e+00> : vector<8x512xf32>
    %234 = tpu.matmul %232, %233, %cst_96 {dimension_numbers = #tpu.dot_dimension_numbers<[1], [0], [0], [1], [0, 0, 1, 1], [], []>} : vector<8x128xbf16>, vector<128x512xbf16>, vector<8x512xf32> -> vector<8x512xf32>
    %c0_97 = arith.constant 0 : index
    %c0_98 = arith.constant 0 : index
    %235 = vector.load %arg6[%c0_97, %c0_98] : memref<1x512xf32, #tpu.memory_space<vmem>>, vector<1x512xf32>
    %236 = vector.broadcast %235 : vector<1x512xf32> to vector<8x512xf32>
    %237 = arith.addf %234, %236 : vector<8x512xf32>
    %c24 = arith.constant 24 : index
    %c0_99 = arith.constant 0 : index
    %238 = vector.load %arg10[%c24, %c0_99] : memref<64x512xf32, #tpu.memory_space<vmem>>, vector<8x512xf32>
    %239 = arith.truncf %196 : vector<8x128xf32> to vector<8x128xbf16>
    %c0_100 = arith.constant 0 : index
    %c0_101 = arith.constant 0 : index
    %240 = vector.load %arg3[%c0_100, %c0_101] : memref<128x512xbf16, #tpu.memory_space<vmem>>, vector<128x512xbf16>
    %cst_102 = arith.constant dense<0.000000e+00> : vector<8x512xf32>
    %241 = tpu.matmul %239, %240, %cst_102 {dimension_numbers = #tpu.dot_dimension_numbers<[1], [0], [0], [1], [0, 0, 1, 1], [], []>} : vector<8x128xbf16>, vector<128x512xbf16>, vector<8x512xf32> -> vector<8x512xf32>
    %242 = arith.addf %241, %238 : vector<8x512xf32>
    %243 = vector.extract_strided_slice %242 {offsets = [0, 0], sizes = [8, 128], strides = [1, 1]} : vector<8x512xf32> to vector<8x128xf32>
    %cst_103 = arith.constant 5.000000e-01 : f32
    %244 = vector.broadcast %cst_103 : f32 to vector<8x128xf32>
    %245 = arith.mulf %244, %243 : vector<8x128xf32>
    %246 = math.tanh %245 : vector<8x128xf32>
    %cst_104 = arith.constant 5.000000e-01 : f32
    %247 = vector.broadcast %cst_104 : f32 to vector<8x128xf32>
    %248 = arith.mulf %247, %246 : vector<8x128xf32>
    %cst_105 = arith.constant 5.000000e-01 : f32
    %249 = vector.broadcast %cst_105 : f32 to vector<8x128xf32>
    %250 = arith.addf %248, %249 : vector<8x128xf32>
    %251 = vector.extract_strided_slice %242 {offsets = [0, 128], sizes = [8, 128], strides = [1, 1]} : vector<8x512xf32> to vector<8x128xf32>
    %cst_106 = arith.constant 5.000000e-01 : f32
    %252 = vector.broadcast %cst_106 : f32 to vector<8x128xf32>
    %253 = arith.mulf %252, %251 : vector<8x128xf32>
    %254 = math.tanh %253 : vector<8x128xf32>
    %cst_107 = arith.constant 5.000000e-01 : f32
    %255 = vector.broadcast %cst_107 : f32 to vector<8x128xf32>
    %256 = arith.mulf %255, %254 : vector<8x128xf32>
    %cst_108 = arith.constant 5.000000e-01 : f32
    %257 = vector.broadcast %cst_108 : f32 to vector<8x128xf32>
    %258 = arith.addf %256, %257 : vector<8x128xf32>
    %259 = vector.extract_strided_slice %242 {offsets = [0, 256], sizes = [8, 128], strides = [1, 1]} : vector<8x512xf32> to vector<8x128xf32>
    %260 = math.tanh %259 : vector<8x128xf32>
    %261 = vector.extract_strided_slice %242 {offsets = [0, 384], sizes = [8, 128], strides = [1, 1]} : vector<8x512xf32> to vector<8x128xf32>
    %cst_109 = arith.constant 5.000000e-01 : f32
    %262 = vector.broadcast %cst_109 : f32 to vector<8x128xf32>
    %263 = arith.mulf %262, %261 : vector<8x128xf32>
    %264 = math.tanh %263 : vector<8x128xf32>
    %cst_110 = arith.constant 5.000000e-01 : f32
    %265 = vector.broadcast %cst_110 : f32 to vector<8x128xf32>
    %266 = arith.mulf %265, %264 : vector<8x128xf32>
    %cst_111 = arith.constant 5.000000e-01 : f32
    %267 = vector.broadcast %cst_111 : f32 to vector<8x128xf32>
    %268 = arith.addf %266, %267 : vector<8x128xf32>
    %269 = arith.mulf %258, %194 : vector<8x128xf32>
    %270 = arith.mulf %250, %260 : vector<8x128xf32>
    %271 = arith.addf %269, %270 : vector<8x128xf32>
    %272 = math.tanh %271 : vector<8x128xf32>
    %273 = arith.mulf %268, %272 : vector<8x128xf32>
    %274 = arith.truncf %273 : vector<8x128xf32> to vector<8x128xbf16>
    %c0_112 = arith.constant 0 : index
    %c0_113 = arith.constant 0 : index
    %275 = vector.load %arg4[%c0_112, %c0_113] : memref<128x512xbf16, #tpu.memory_space<vmem>>, vector<128x512xbf16>
    %cst_114 = arith.constant dense<0.000000e+00> : vector<8x512xf32>
    %276 = tpu.matmul %274, %275, %cst_114 {dimension_numbers = #tpu.dot_dimension_numbers<[1], [0], [0], [1], [0, 0, 1, 1], [], []>} : vector<8x128xbf16>, vector<128x512xbf16>, vector<8x512xf32> -> vector<8x512xf32>
    %277 = arith.addf %276, %237 : vector<8x512xf32>
    %278 = vector.extract_strided_slice %277 {offsets = [0, 0], sizes = [8, 128], strides = [1, 1]} : vector<8x512xf32> to vector<8x128xf32>
    %cst_115 = arith.constant 5.000000e-01 : f32
    %279 = vector.broadcast %cst_115 : f32 to vector<8x128xf32>
    %280 = arith.mulf %279, %278 : vector<8x128xf32>
    %281 = math.tanh %280 : vector<8x128xf32>
    %cst_116 = arith.constant 5.000000e-01 : f32
    %282 = vector.broadcast %cst_116 : f32 to vector<8x128xf32>
    %283 = arith.mulf %282, %281 : vector<8x128xf32>
    %cst_117 = arith.constant 5.000000e-01 : f32
    %284 = vector.broadcast %cst_117 : f32 to vector<8x128xf32>
    %285 = arith.addf %283, %284 : vector<8x128xf32>
    %286 = vector.extract_strided_slice %277 {offsets = [0, 128], sizes = [8, 128], strides = [1, 1]} : vector<8x512xf32> to vector<8x128xf32>
    %cst_118 = arith.constant 5.000000e-01 : f32
    %287 = vector.broadcast %cst_118 : f32 to vector<8x128xf32>
    %288 = arith.mulf %287, %286 : vector<8x128xf32>
    %289 = math.tanh %288 : vector<8x128xf32>
    %cst_119 = arith.constant 5.000000e-01 : f32
    %290 = vector.broadcast %cst_119 : f32 to vector<8x128xf32>
    %291 = arith.mulf %290, %289 : vector<8x128xf32>
    %cst_120 = arith.constant 5.000000e-01 : f32
    %292 = vector.broadcast %cst_120 : f32 to vector<8x128xf32>
    %293 = arith.addf %291, %292 : vector<8x128xf32>
    %294 = vector.extract_strided_slice %277 {offsets = [0, 256], sizes = [8, 128], strides = [1, 1]} : vector<8x512xf32> to vector<8x128xf32>
    %295 = math.tanh %294 : vector<8x128xf32>
    %296 = vector.extract_strided_slice %277 {offsets = [0, 384], sizes = [8, 128], strides = [1, 1]} : vector<8x512xf32> to vector<8x128xf32>
    %cst_121 = arith.constant 5.000000e-01 : f32
    %297 = vector.broadcast %cst_121 : f32 to vector<8x128xf32>
    %298 = arith.mulf %297, %296 : vector<8x128xf32>
    %299 = math.tanh %298 : vector<8x128xf32>
    %cst_122 = arith.constant 5.000000e-01 : f32
    %300 = vector.broadcast %cst_122 : f32 to vector<8x128xf32>
    %301 = arith.mulf %300, %299 : vector<8x128xf32>
    %cst_123 = arith.constant 5.000000e-01 : f32
    %302 = vector.broadcast %cst_123 : f32 to vector<8x128xf32>
    %303 = arith.addf %301, %302 : vector<8x128xf32>
    %304 = arith.mulf %293, %229 : vector<8x128xf32>
    %305 = arith.mulf %285, %295 : vector<8x128xf32>
    %306 = arith.addf %304, %305 : vector<8x128xf32>
    %307 = math.tanh %306 : vector<8x128xf32>
    %308 = arith.mulf %303, %307 : vector<8x128xf32>
    %309 = arith.truncf %308 : vector<8x128xf32> to vector<8x128xbf16>
    %c0_124 = arith.constant 0 : index
    %c0_125 = arith.constant 0 : index
    %310 = vector.load %arg5[%c0_124, %c0_125] : memref<128x512xbf16, #tpu.memory_space<vmem>>, vector<128x512xbf16>
    %cst_126 = arith.constant dense<0.000000e+00> : vector<8x512xf32>
    %311 = tpu.matmul %309, %310, %cst_126 {dimension_numbers = #tpu.dot_dimension_numbers<[1], [0], [0], [1], [0, 0, 1, 1], [], []>} : vector<8x128xbf16>, vector<128x512xbf16>, vector<8x512xf32> -> vector<8x512xf32>
    %c0_127 = arith.constant 0 : index
    %c0_128 = arith.constant 0 : index
    %312 = vector.load %arg6[%c0_127, %c0_128] : memref<1x512xf32, #tpu.memory_space<vmem>>, vector<1x512xf32>
    %313 = vector.broadcast %312 : vector<1x512xf32> to vector<8x512xf32>
    %314 = arith.addf %311, %313 : vector<8x512xf32>
    %c32 = arith.constant 32 : index
    %c0_129 = arith.constant 0 : index
    %315 = vector.load %arg10[%c32, %c0_129] : memref<64x512xf32, #tpu.memory_space<vmem>>, vector<8x512xf32>
    %316 = arith.truncf %273 : vector<8x128xf32> to vector<8x128xbf16>
    %c0_130 = arith.constant 0 : index
    %c0_131 = arith.constant 0 : index
    %317 = vector.load %arg3[%c0_130, %c0_131] : memref<128x512xbf16, #tpu.memory_space<vmem>>, vector<128x512xbf16>
    %cst_132 = arith.constant dense<0.000000e+00> : vector<8x512xf32>
    %318 = tpu.matmul %316, %317, %cst_132 {dimension_numbers = #tpu.dot_dimension_numbers<[1], [0], [0], [1], [0, 0, 1, 1], [], []>} : vector<8x128xbf16>, vector<128x512xbf16>, vector<8x512xf32> -> vector<8x512xf32>
    %319 = arith.addf %318, %315 : vector<8x512xf32>
    %320 = vector.extract_strided_slice %319 {offsets = [0, 0], sizes = [8, 128], strides = [1, 1]} : vector<8x512xf32> to vector<8x128xf32>
    %cst_133 = arith.constant 5.000000e-01 : f32
    %321 = vector.broadcast %cst_133 : f32 to vector<8x128xf32>
    %322 = arith.mulf %321, %320 : vector<8x128xf32>
    %323 = math.tanh %322 : vector<8x128xf32>
    %cst_134 = arith.constant 5.000000e-01 : f32
    %324 = vector.broadcast %cst_134 : f32 to vector<8x128xf32>
    %325 = arith.mulf %324, %323 : vector<8x128xf32>
    %cst_135 = arith.constant 5.000000e-01 : f32
    %326 = vector.broadcast %cst_135 : f32 to vector<8x128xf32>
    %327 = arith.addf %325, %326 : vector<8x128xf32>
    %328 = vector.extract_strided_slice %319 {offsets = [0, 128], sizes = [8, 128], strides = [1, 1]} : vector<8x512xf32> to vector<8x128xf32>
    %cst_136 = arith.constant 5.000000e-01 : f32
    %329 = vector.broadcast %cst_136 : f32 to vector<8x128xf32>
    %330 = arith.mulf %329, %328 : vector<8x128xf32>
    %331 = math.tanh %330 : vector<8x128xf32>
    %cst_137 = arith.constant 5.000000e-01 : f32
    %332 = vector.broadcast %cst_137 : f32 to vector<8x128xf32>
    %333 = arith.mulf %332, %331 : vector<8x128xf32>
    %cst_138 = arith.constant 5.000000e-01 : f32
    %334 = vector.broadcast %cst_138 : f32 to vector<8x128xf32>
    %335 = arith.addf %333, %334 : vector<8x128xf32>
    %336 = vector.extract_strided_slice %319 {offsets = [0, 256], sizes = [8, 128], strides = [1, 1]} : vector<8x512xf32> to vector<8x128xf32>
    %337 = math.tanh %336 : vector<8x128xf32>
    %338 = vector.extract_strided_slice %319 {offsets = [0, 384], sizes = [8, 128], strides = [1, 1]} : vector<8x512xf32> to vector<8x128xf32>
    %cst_139 = arith.constant 5.000000e-01 : f32
    %339 = vector.broadcast %cst_139 : f32 to vector<8x128xf32>
    %340 = arith.mulf %339, %338 : vector<8x128xf32>
    %341 = math.tanh %340 : vector<8x128xf32>
    %cst_140 = arith.constant 5.000000e-01 : f32
    %342 = vector.broadcast %cst_140 : f32 to vector<8x128xf32>
    %343 = arith.mulf %342, %341 : vector<8x128xf32>
    %cst_141 = arith.constant 5.000000e-01 : f32
    %344 = vector.broadcast %cst_141 : f32 to vector<8x128xf32>
    %345 = arith.addf %343, %344 : vector<8x128xf32>
    %346 = arith.mulf %335, %271 : vector<8x128xf32>
    %347 = arith.mulf %327, %337 : vector<8x128xf32>
    %348 = arith.addf %346, %347 : vector<8x128xf32>
    %349 = math.tanh %348 : vector<8x128xf32>
    %350 = arith.mulf %345, %349 : vector<8x128xf32>
    %351 = arith.truncf %350 : vector<8x128xf32> to vector<8x128xbf16>
    %c0_142 = arith.constant 0 : index
    %c0_143 = arith.constant 0 : index
    %352 = vector.load %arg4[%c0_142, %c0_143] : memref<128x512xbf16, #tpu.memory_space<vmem>>, vector<128x512xbf16>
    %cst_144 = arith.constant dense<0.000000e+00> : vector<8x512xf32>
    %353 = tpu.matmul %351, %352, %cst_144 {dimension_numbers = #tpu.dot_dimension_numbers<[1], [0], [0], [1], [0, 0, 1, 1], [], []>} : vector<8x128xbf16>, vector<128x512xbf16>, vector<8x512xf32> -> vector<8x512xf32>
    %354 = arith.addf %353, %314 : vector<8x512xf32>
    %355 = vector.extract_strided_slice %354 {offsets = [0, 0], sizes = [8, 128], strides = [1, 1]} : vector<8x512xf32> to vector<8x128xf32>
    %cst_145 = arith.constant 5.000000e-01 : f32
    %356 = vector.broadcast %cst_145 : f32 to vector<8x128xf32>
    %357 = arith.mulf %356, %355 : vector<8x128xf32>
    %358 = math.tanh %357 : vector<8x128xf32>
    %cst_146 = arith.constant 5.000000e-01 : f32
    %359 = vector.broadcast %cst_146 : f32 to vector<8x128xf32>
    %360 = arith.mulf %359, %358 : vector<8x128xf32>
    %cst_147 = arith.constant 5.000000e-01 : f32
    %361 = vector.broadcast %cst_147 : f32 to vector<8x128xf32>
    %362 = arith.addf %360, %361 : vector<8x128xf32>
    %363 = vector.extract_strided_slice %354 {offsets = [0, 128], sizes = [8, 128], strides = [1, 1]} : vector<8x512xf32> to vector<8x128xf32>
    %cst_148 = arith.constant 5.000000e-01 : f32
    %364 = vector.broadcast %cst_148 : f32 to vector<8x128xf32>
    %365 = arith.mulf %364, %363 : vector<8x128xf32>
    %366 = math.tanh %365 : vector<8x128xf32>
    %cst_149 = arith.constant 5.000000e-01 : f32
    %367 = vector.broadcast %cst_149 : f32 to vector<8x128xf32>
    %368 = arith.mulf %367, %366 : vector<8x128xf32>
    %cst_150 = arith.constant 5.000000e-01 : f32
    %369 = vector.broadcast %cst_150 : f32 to vector<8x128xf32>
    %370 = arith.addf %368, %369 : vector<8x128xf32>
    %371 = vector.extract_strided_slice %354 {offsets = [0, 256], sizes = [8, 128], strides = [1, 1]} : vector<8x512xf32> to vector<8x128xf32>
    %372 = math.tanh %371 : vector<8x128xf32>
    %373 = vector.extract_strided_slice %354 {offsets = [0, 384], sizes = [8, 128], strides = [1, 1]} : vector<8x512xf32> to vector<8x128xf32>
    %cst_151 = arith.constant 5.000000e-01 : f32
    %374 = vector.broadcast %cst_151 : f32 to vector<8x128xf32>
    %375 = arith.mulf %374, %373 : vector<8x128xf32>
    %376 = math.tanh %375 : vector<8x128xf32>
    %cst_152 = arith.constant 5.000000e-01 : f32
    %377 = vector.broadcast %cst_152 : f32 to vector<8x128xf32>
    %378 = arith.mulf %377, %376 : vector<8x128xf32>
    %cst_153 = arith.constant 5.000000e-01 : f32
    %379 = vector.broadcast %cst_153 : f32 to vector<8x128xf32>
    %380 = arith.addf %378, %379 : vector<8x128xf32>
    %381 = arith.mulf %370, %306 : vector<8x128xf32>
    %382 = arith.mulf %362, %372 : vector<8x128xf32>
    %383 = arith.addf %381, %382 : vector<8x128xf32>
    %384 = math.tanh %383 : vector<8x128xf32>
    %385 = arith.mulf %380, %384 : vector<8x128xf32>
    %386 = arith.truncf %385 : vector<8x128xf32> to vector<8x128xbf16>
    %c0_154 = arith.constant 0 : index
    %c0_155 = arith.constant 0 : index
    %387 = vector.load %arg5[%c0_154, %c0_155] : memref<128x512xbf16, #tpu.memory_space<vmem>>, vector<128x512xbf16>
    %cst_156 = arith.constant dense<0.000000e+00> : vector<8x512xf32>
    %388 = tpu.matmul %386, %387, %cst_156 {dimension_numbers = #tpu.dot_dimension_numbers<[1], [0], [0], [1], [0, 0, 1, 1], [], []>} : vector<8x128xbf16>, vector<128x512xbf16>, vector<8x512xf32> -> vector<8x512xf32>
    %c0_157 = arith.constant 0 : index
    %c0_158 = arith.constant 0 : index
    %389 = vector.load %arg6[%c0_157, %c0_158] : memref<1x512xf32, #tpu.memory_space<vmem>>, vector<1x512xf32>
    %390 = vector.broadcast %389 : vector<1x512xf32> to vector<8x512xf32>
    %391 = arith.addf %388, %390 : vector<8x512xf32>
    %c40 = arith.constant 40 : index
    %c0_159 = arith.constant 0 : index
    %392 = vector.load %arg10[%c40, %c0_159] : memref<64x512xf32, #tpu.memory_space<vmem>>, vector<8x512xf32>
    %393 = arith.truncf %350 : vector<8x128xf32> to vector<8x128xbf16>
    %c0_160 = arith.constant 0 : index
    %c0_161 = arith.constant 0 : index
    %394 = vector.load %arg3[%c0_160, %c0_161] : memref<128x512xbf16, #tpu.memory_space<vmem>>, vector<128x512xbf16>
    %cst_162 = arith.constant dense<0.000000e+00> : vector<8x512xf32>
    %395 = tpu.matmul %393, %394, %cst_162 {dimension_numbers = #tpu.dot_dimension_numbers<[1], [0], [0], [1], [0, 0, 1, 1], [], []>} : vector<8x128xbf16>, vector<128x512xbf16>, vector<8x512xf32> -> vector<8x512xf32>
    %396 = arith.addf %395, %392 : vector<8x512xf32>
    %397 = vector.extract_strided_slice %396 {offsets = [0, 0], sizes = [8, 128], strides = [1, 1]} : vector<8x512xf32> to vector<8x128xf32>
    %cst_163 = arith.constant 5.000000e-01 : f32
    %398 = vector.broadcast %cst_163 : f32 to vector<8x128xf32>
    %399 = arith.mulf %398, %397 : vector<8x128xf32>
    %400 = math.tanh %399 : vector<8x128xf32>
    %cst_164 = arith.constant 5.000000e-01 : f32
    %401 = vector.broadcast %cst_164 : f32 to vector<8x128xf32>
    %402 = arith.mulf %401, %400 : vector<8x128xf32>
    %cst_165 = arith.constant 5.000000e-01 : f32
    %403 = vector.broadcast %cst_165 : f32 to vector<8x128xf32>
    %404 = arith.addf %402, %403 : vector<8x128xf32>
    %405 = vector.extract_strided_slice %396 {offsets = [0, 128], sizes = [8, 128], strides = [1, 1]} : vector<8x512xf32> to vector<8x128xf32>
    %cst_166 = arith.constant 5.000000e-01 : f32
    %406 = vector.broadcast %cst_166 : f32 to vector<8x128xf32>
    %407 = arith.mulf %406, %405 : vector<8x128xf32>
    %408 = math.tanh %407 : vector<8x128xf32>
    %cst_167 = arith.constant 5.000000e-01 : f32
    %409 = vector.broadcast %cst_167 : f32 to vector<8x128xf32>
    %410 = arith.mulf %409, %408 : vector<8x128xf32>
    %cst_168 = arith.constant 5.000000e-01 : f32
    %411 = vector.broadcast %cst_168 : f32 to vector<8x128xf32>
    %412 = arith.addf %410, %411 : vector<8x128xf32>
    %413 = vector.extract_strided_slice %396 {offsets = [0, 256], sizes = [8, 128], strides = [1, 1]} : vector<8x512xf32> to vector<8x128xf32>
    %414 = math.tanh %413 : vector<8x128xf32>
    %415 = vector.extract_strided_slice %396 {offsets = [0, 384], sizes = [8, 128], strides = [1, 1]} : vector<8x512xf32> to vector<8x128xf32>
    %cst_169 = arith.constant 5.000000e-01 : f32
    %416 = vector.broadcast %cst_169 : f32 to vector<8x128xf32>
    %417 = arith.mulf %416, %415 : vector<8x128xf32>
    %418 = math.tanh %417 : vector<8x128xf32>
    %cst_170 = arith.constant 5.000000e-01 : f32
    %419 = vector.broadcast %cst_170 : f32 to vector<8x128xf32>
    %420 = arith.mulf %419, %418 : vector<8x128xf32>
    %cst_171 = arith.constant 5.000000e-01 : f32
    %421 = vector.broadcast %cst_171 : f32 to vector<8x128xf32>
    %422 = arith.addf %420, %421 : vector<8x128xf32>
    %423 = arith.mulf %412, %348 : vector<8x128xf32>
    %424 = arith.mulf %404, %414 : vector<8x128xf32>
    %425 = arith.addf %423, %424 : vector<8x128xf32>
    %426 = math.tanh %425 : vector<8x128xf32>
    %427 = arith.mulf %422, %426 : vector<8x128xf32>
    %428 = arith.truncf %427 : vector<8x128xf32> to vector<8x128xbf16>
    %c0_172 = arith.constant 0 : index
    %c0_173 = arith.constant 0 : index
    %429 = vector.load %arg4[%c0_172, %c0_173] : memref<128x512xbf16, #tpu.memory_space<vmem>>, vector<128x512xbf16>
    %cst_174 = arith.constant dense<0.000000e+00> : vector<8x512xf32>
    %430 = tpu.matmul %428, %429, %cst_174 {dimension_numbers = #tpu.dot_dimension_numbers<[1], [0], [0], [1], [0, 0, 1, 1], [], []>} : vector<8x128xbf16>, vector<128x512xbf16>, vector<8x512xf32> -> vector<8x512xf32>
    %431 = arith.addf %430, %391 : vector<8x512xf32>
    %432 = vector.extract_strided_slice %431 {offsets = [0, 0], sizes = [8, 128], strides = [1, 1]} : vector<8x512xf32> to vector<8x128xf32>
    %cst_175 = arith.constant 5.000000e-01 : f32
    %433 = vector.broadcast %cst_175 : f32 to vector<8x128xf32>
    %434 = arith.mulf %433, %432 : vector<8x128xf32>
    %435 = math.tanh %434 : vector<8x128xf32>
    %cst_176 = arith.constant 5.000000e-01 : f32
    %436 = vector.broadcast %cst_176 : f32 to vector<8x128xf32>
    %437 = arith.mulf %436, %435 : vector<8x128xf32>
    %cst_177 = arith.constant 5.000000e-01 : f32
    %438 = vector.broadcast %cst_177 : f32 to vector<8x128xf32>
    %439 = arith.addf %437, %438 : vector<8x128xf32>
    %440 = vector.extract_strided_slice %431 {offsets = [0, 128], sizes = [8, 128], strides = [1, 1]} : vector<8x512xf32> to vector<8x128xf32>
    %cst_178 = arith.constant 5.000000e-01 : f32
    %441 = vector.broadcast %cst_178 : f32 to vector<8x128xf32>
    %442 = arith.mulf %441, %440 : vector<8x128xf32>
    %443 = math.tanh %442 : vector<8x128xf32>
    %cst_179 = arith.constant 5.000000e-01 : f32
    %444 = vector.broadcast %cst_179 : f32 to vector<8x128xf32>
    %445 = arith.mulf %444, %443 : vector<8x128xf32>
    %cst_180 = arith.constant 5.000000e-01 : f32
    %446 = vector.broadcast %cst_180 : f32 to vector<8x128xf32>
    %447 = arith.addf %445, %446 : vector<8x128xf32>
    %448 = vector.extract_strided_slice %431 {offsets = [0, 256], sizes = [8, 128], strides = [1, 1]} : vector<8x512xf32> to vector<8x128xf32>
    %449 = math.tanh %448 : vector<8x128xf32>
    %450 = vector.extract_strided_slice %431 {offsets = [0, 384], sizes = [8, 128], strides = [1, 1]} : vector<8x512xf32> to vector<8x128xf32>
    %cst_181 = arith.constant 5.000000e-01 : f32
    %451 = vector.broadcast %cst_181 : f32 to vector<8x128xf32>
    %452 = arith.mulf %451, %450 : vector<8x128xf32>
    %453 = math.tanh %452 : vector<8x128xf32>
    %cst_182 = arith.constant 5.000000e-01 : f32
    %454 = vector.broadcast %cst_182 : f32 to vector<8x128xf32>
    %455 = arith.mulf %454, %453 : vector<8x128xf32>
    %cst_183 = arith.constant 5.000000e-01 : f32
    %456 = vector.broadcast %cst_183 : f32 to vector<8x128xf32>
    %457 = arith.addf %455, %456 : vector<8x128xf32>
    %458 = arith.mulf %447, %383 : vector<8x128xf32>
    %459 = arith.mulf %439, %449 : vector<8x128xf32>
    %460 = arith.addf %458, %459 : vector<8x128xf32>
    %461 = math.tanh %460 : vector<8x128xf32>
    %462 = arith.mulf %457, %461 : vector<8x128xf32>
    %463 = arith.truncf %462 : vector<8x128xf32> to vector<8x128xbf16>
    %c0_184 = arith.constant 0 : index
    %c0_185 = arith.constant 0 : index
    %464 = vector.load %arg5[%c0_184, %c0_185] : memref<128x512xbf16, #tpu.memory_space<vmem>>, vector<128x512xbf16>
    %cst_186 = arith.constant dense<0.000000e+00> : vector<8x512xf32>
    %465 = tpu.matmul %463, %464, %cst_186 {dimension_numbers = #tpu.dot_dimension_numbers<[1], [0], [0], [1], [0, 0, 1, 1], [], []>} : vector<8x128xbf16>, vector<128x512xbf16>, vector<8x512xf32> -> vector<8x512xf32>
    %c0_187 = arith.constant 0 : index
    %c0_188 = arith.constant 0 : index
    %466 = vector.load %arg6[%c0_187, %c0_188] : memref<1x512xf32, #tpu.memory_space<vmem>>, vector<1x512xf32>
    %467 = vector.broadcast %466 : vector<1x512xf32> to vector<8x512xf32>
    %468 = arith.addf %465, %467 : vector<8x512xf32>
    %c48 = arith.constant 48 : index
    %c0_189 = arith.constant 0 : index
    %469 = vector.load %arg10[%c48, %c0_189] : memref<64x512xf32, #tpu.memory_space<vmem>>, vector<8x512xf32>
    %470 = arith.truncf %427 : vector<8x128xf32> to vector<8x128xbf16>
    %c0_190 = arith.constant 0 : index
    %c0_191 = arith.constant 0 : index
    %471 = vector.load %arg3[%c0_190, %c0_191] : memref<128x512xbf16, #tpu.memory_space<vmem>>, vector<128x512xbf16>
    %cst_192 = arith.constant dense<0.000000e+00> : vector<8x512xf32>
    %472 = tpu.matmul %470, %471, %cst_192 {dimension_numbers = #tpu.dot_dimension_numbers<[1], [0], [0], [1], [0, 0, 1, 1], [], []>} : vector<8x128xbf16>, vector<128x512xbf16>, vector<8x512xf32> -> vector<8x512xf32>
    %473 = arith.addf %472, %469 : vector<8x512xf32>
    %474 = vector.extract_strided_slice %473 {offsets = [0, 0], sizes = [8, 128], strides = [1, 1]} : vector<8x512xf32> to vector<8x128xf32>
    %cst_193 = arith.constant 5.000000e-01 : f32
    %475 = vector.broadcast %cst_193 : f32 to vector<8x128xf32>
    %476 = arith.mulf %475, %474 : vector<8x128xf32>
    %477 = math.tanh %476 : vector<8x128xf32>
    %cst_194 = arith.constant 5.000000e-01 : f32
    %478 = vector.broadcast %cst_194 : f32 to vector<8x128xf32>
    %479 = arith.mulf %478, %477 : vector<8x128xf32>
    %cst_195 = arith.constant 5.000000e-01 : f32
    %480 = vector.broadcast %cst_195 : f32 to vector<8x128xf32>
    %481 = arith.addf %479, %480 : vector<8x128xf32>
    %482 = vector.extract_strided_slice %473 {offsets = [0, 128], sizes = [8, 128], strides = [1, 1]} : vector<8x512xf32> to vector<8x128xf32>
    %cst_196 = arith.constant 5.000000e-01 : f32
    %483 = vector.broadcast %cst_196 : f32 to vector<8x128xf32>
    %484 = arith.mulf %483, %482 : vector<8x128xf32>
    %485 = math.tanh %484 : vector<8x128xf32>
    %cst_197 = arith.constant 5.000000e-01 : f32
    %486 = vector.broadcast %cst_197 : f32 to vector<8x128xf32>
    %487 = arith.mulf %486, %485 : vector<8x128xf32>
    %cst_198 = arith.constant 5.000000e-01 : f32
    %488 = vector.broadcast %cst_198 : f32 to vector<8x128xf32>
    %489 = arith.addf %487, %488 : vector<8x128xf32>
    %490 = vector.extract_strided_slice %473 {offsets = [0, 256], sizes = [8, 128], strides = [1, 1]} : vector<8x512xf32> to vector<8x128xf32>
    %491 = math.tanh %490 : vector<8x128xf32>
    %492 = vector.extract_strided_slice %473 {offsets = [0, 384], sizes = [8, 128], strides = [1, 1]} : vector<8x512xf32> to vector<8x128xf32>
    %cst_199 = arith.constant 5.000000e-01 : f32
    %493 = vector.broadcast %cst_199 : f32 to vector<8x128xf32>
    %494 = arith.mulf %493, %492 : vector<8x128xf32>
    %495 = math.tanh %494 : vector<8x128xf32>
    %cst_200 = arith.constant 5.000000e-01 : f32
    %496 = vector.broadcast %cst_200 : f32 to vector<8x128xf32>
    %497 = arith.mulf %496, %495 : vector<8x128xf32>
    %cst_201 = arith.constant 5.000000e-01 : f32
    %498 = vector.broadcast %cst_201 : f32 to vector<8x128xf32>
    %499 = arith.addf %497, %498 : vector<8x128xf32>
    %500 = arith.mulf %489, %425 : vector<8x128xf32>
    %501 = arith.mulf %481, %491 : vector<8x128xf32>
    %502 = arith.addf %500, %501 : vector<8x128xf32>
    %503 = math.tanh %502 : vector<8x128xf32>
    %504 = arith.mulf %499, %503 : vector<8x128xf32>
    %505 = arith.truncf %504 : vector<8x128xf32> to vector<8x128xbf16>
    %c0_202 = arith.constant 0 : index
    %c0_203 = arith.constant 0 : index
    %506 = vector.load %arg4[%c0_202, %c0_203] : memref<128x512xbf16, #tpu.memory_space<vmem>>, vector<128x512xbf16>
    %cst_204 = arith.constant dense<0.000000e+00> : vector<8x512xf32>
    %507 = tpu.matmul %505, %506, %cst_204 {dimension_numbers = #tpu.dot_dimension_numbers<[1], [0], [0], [1], [0, 0, 1, 1], [], []>} : vector<8x128xbf16>, vector<128x512xbf16>, vector<8x512xf32> -> vector<8x512xf32>
    %508 = arith.addf %507, %468 : vector<8x512xf32>
    %509 = vector.extract_strided_slice %508 {offsets = [0, 0], sizes = [8, 128], strides = [1, 1]} : vector<8x512xf32> to vector<8x128xf32>
    %cst_205 = arith.constant 5.000000e-01 : f32
    %510 = vector.broadcast %cst_205 : f32 to vector<8x128xf32>
    %511 = arith.mulf %510, %509 : vector<8x128xf32>
    %512 = math.tanh %511 : vector<8x128xf32>
    %cst_206 = arith.constant 5.000000e-01 : f32
    %513 = vector.broadcast %cst_206 : f32 to vector<8x128xf32>
    %514 = arith.mulf %513, %512 : vector<8x128xf32>
    %cst_207 = arith.constant 5.000000e-01 : f32
    %515 = vector.broadcast %cst_207 : f32 to vector<8x128xf32>
    %516 = arith.addf %514, %515 : vector<8x128xf32>
    %517 = vector.extract_strided_slice %508 {offsets = [0, 128], sizes = [8, 128], strides = [1, 1]} : vector<8x512xf32> to vector<8x128xf32>
    %cst_208 = arith.constant 5.000000e-01 : f32
    %518 = vector.broadcast %cst_208 : f32 to vector<8x128xf32>
    %519 = arith.mulf %518, %517 : vector<8x128xf32>
    %520 = math.tanh %519 : vector<8x128xf32>
    %cst_209 = arith.constant 5.000000e-01 : f32
    %521 = vector.broadcast %cst_209 : f32 to vector<8x128xf32>
    %522 = arith.mulf %521, %520 : vector<8x128xf32>
    %cst_210 = arith.constant 5.000000e-01 : f32
    %523 = vector.broadcast %cst_210 : f32 to vector<8x128xf32>
    %524 = arith.addf %522, %523 : vector<8x128xf32>
    %525 = vector.extract_strided_slice %508 {offsets = [0, 256], sizes = [8, 128], strides = [1, 1]} : vector<8x512xf32> to vector<8x128xf32>
    %526 = math.tanh %525 : vector<8x128xf32>
    %527 = vector.extract_strided_slice %508 {offsets = [0, 384], sizes = [8, 128], strides = [1, 1]} : vector<8x512xf32> to vector<8x128xf32>
    %cst_211 = arith.constant 5.000000e-01 : f32
    %528 = vector.broadcast %cst_211 : f32 to vector<8x128xf32>
    %529 = arith.mulf %528, %527 : vector<8x128xf32>
    %530 = math.tanh %529 : vector<8x128xf32>
    %cst_212 = arith.constant 5.000000e-01 : f32
    %531 = vector.broadcast %cst_212 : f32 to vector<8x128xf32>
    %532 = arith.mulf %531, %530 : vector<8x128xf32>
    %cst_213 = arith.constant 5.000000e-01 : f32
    %533 = vector.broadcast %cst_213 : f32 to vector<8x128xf32>
    %534 = arith.addf %532, %533 : vector<8x128xf32>
    %535 = arith.mulf %524, %460 : vector<8x128xf32>
    %536 = arith.mulf %516, %526 : vector<8x128xf32>
    %537 = arith.addf %535, %536 : vector<8x128xf32>
    %538 = math.tanh %537 : vector<8x128xf32>
    %539 = arith.mulf %534, %538 : vector<8x128xf32>
    %540 = arith.truncf %539 : vector<8x128xf32> to vector<8x128xbf16>
    %c0_214 = arith.constant 0 : index
    %c0_215 = arith.constant 0 : index
    %541 = vector.load %arg5[%c0_214, %c0_215] : memref<128x512xbf16, #tpu.memory_space<vmem>>, vector<128x512xbf16>
    %cst_216 = arith.constant dense<0.000000e+00> : vector<8x512xf32>
    %542 = tpu.matmul %540, %541, %cst_216 {dimension_numbers = #tpu.dot_dimension_numbers<[1], [0], [0], [1], [0, 0, 1, 1], [], []>} : vector<8x128xbf16>, vector<128x512xbf16>, vector<8x512xf32> -> vector<8x512xf32>
    %c0_217 = arith.constant 0 : index
    %c0_218 = arith.constant 0 : index
    %543 = vector.load %arg6[%c0_217, %c0_218] : memref<1x512xf32, #tpu.memory_space<vmem>>, vector<1x512xf32>
    %544 = vector.broadcast %543 : vector<1x512xf32> to vector<8x512xf32>
    %545 = arith.addf %542, %544 : vector<8x512xf32>
    %c56 = arith.constant 56 : index
    %c0_219 = arith.constant 0 : index
    %546 = vector.load %arg10[%c56, %c0_219] : memref<64x512xf32, #tpu.memory_space<vmem>>, vector<8x512xf32>
    %547 = arith.truncf %504 : vector<8x128xf32> to vector<8x128xbf16>
    %c0_220 = arith.constant 0 : index
    %c0_221 = arith.constant 0 : index
    %548 = vector.load %arg3[%c0_220, %c0_221] : memref<128x512xbf16, #tpu.memory_space<vmem>>, vector<128x512xbf16>
    %cst_222 = arith.constant dense<0.000000e+00> : vector<8x512xf32>
    %549 = tpu.matmul %547, %548, %cst_222 {dimension_numbers = #tpu.dot_dimension_numbers<[1], [0], [0], [1], [0, 0, 1, 1], [], []>} : vector<8x128xbf16>, vector<128x512xbf16>, vector<8x512xf32> -> vector<8x512xf32>
    %550 = arith.addf %549, %546 : vector<8x512xf32>
    %551 = vector.extract_strided_slice %550 {offsets = [0, 0], sizes = [8, 128], strides = [1, 1]} : vector<8x512xf32> to vector<8x128xf32>
    %cst_223 = arith.constant 5.000000e-01 : f32
    %552 = vector.broadcast %cst_223 : f32 to vector<8x128xf32>
    %553 = arith.mulf %552, %551 : vector<8x128xf32>
    %554 = math.tanh %553 : vector<8x128xf32>
    %cst_224 = arith.constant 5.000000e-01 : f32
    %555 = vector.broadcast %cst_224 : f32 to vector<8x128xf32>
    %556 = arith.mulf %555, %554 : vector<8x128xf32>
    %cst_225 = arith.constant 5.000000e-01 : f32
    %557 = vector.broadcast %cst_225 : f32 to vector<8x128xf32>
    %558 = arith.addf %556, %557 : vector<8x128xf32>
    %559 = vector.extract_strided_slice %550 {offsets = [0, 128], sizes = [8, 128], strides = [1, 1]} : vector<8x512xf32> to vector<8x128xf32>
    %cst_226 = arith.constant 5.000000e-01 : f32
    %560 = vector.broadcast %cst_226 : f32 to vector<8x128xf32>
    %561 = arith.mulf %560, %559 : vector<8x128xf32>
    %562 = math.tanh %561 : vector<8x128xf32>
    %cst_227 = arith.constant 5.000000e-01 : f32
    %563 = vector.broadcast %cst_227 : f32 to vector<8x128xf32>
    %564 = arith.mulf %563, %562 : vector<8x128xf32>
    %cst_228 = arith.constant 5.000000e-01 : f32
    %565 = vector.broadcast %cst_228 : f32 to vector<8x128xf32>
    %566 = arith.addf %564, %565 : vector<8x128xf32>
    %567 = vector.extract_strided_slice %550 {offsets = [0, 256], sizes = [8, 128], strides = [1, 1]} : vector<8x512xf32> to vector<8x128xf32>
    %568 = math.tanh %567 : vector<8x128xf32>
    %569 = vector.extract_strided_slice %550 {offsets = [0, 384], sizes = [8, 128], strides = [1, 1]} : vector<8x512xf32> to vector<8x128xf32>
    %cst_229 = arith.constant 5.000000e-01 : f32
    %570 = vector.broadcast %cst_229 : f32 to vector<8x128xf32>
    %571 = arith.mulf %570, %569 : vector<8x128xf32>
    %572 = math.tanh %571 : vector<8x128xf32>
    %cst_230 = arith.constant 5.000000e-01 : f32
    %573 = vector.broadcast %cst_230 : f32 to vector<8x128xf32>
    %574 = arith.mulf %573, %572 : vector<8x128xf32>
    %cst_231 = arith.constant 5.000000e-01 : f32
    %575 = vector.broadcast %cst_231 : f32 to vector<8x128xf32>
    %576 = arith.addf %574, %575 : vector<8x128xf32>
    %577 = arith.mulf %566, %502 : vector<8x128xf32>
    %578 = arith.mulf %558, %568 : vector<8x128xf32>
    %579 = arith.addf %577, %578 : vector<8x128xf32>
    %580 = math.tanh %579 : vector<8x128xf32>
    %581 = arith.mulf %576, %580 : vector<8x128xf32>
    %582 = arith.truncf %581 : vector<8x128xf32> to vector<8x128xbf16>
    %c0_232 = arith.constant 0 : index
    %c0_233 = arith.constant 0 : index
    %583 = vector.load %arg4[%c0_232, %c0_233] : memref<128x512xbf16, #tpu.memory_space<vmem>>, vector<128x512xbf16>
    %cst_234 = arith.constant dense<0.000000e+00> : vector<8x512xf32>
    %584 = tpu.matmul %582, %583, %cst_234 {dimension_numbers = #tpu.dot_dimension_numbers<[1], [0], [0], [1], [0, 0, 1, 1], [], []>} : vector<8x128xbf16>, vector<128x512xbf16>, vector<8x512xf32> -> vector<8x512xf32>
    %585 = arith.addf %584, %545 : vector<8x512xf32>
    %586 = vector.extract_strided_slice %585 {offsets = [0, 0], sizes = [8, 128], strides = [1, 1]} : vector<8x512xf32> to vector<8x128xf32>
    %cst_235 = arith.constant 5.000000e-01 : f32
    %587 = vector.broadcast %cst_235 : f32 to vector<8x128xf32>
    %588 = arith.mulf %587, %586 : vector<8x128xf32>
    %589 = math.tanh %588 : vector<8x128xf32>
    %cst_236 = arith.constant 5.000000e-01 : f32
    %590 = vector.broadcast %cst_236 : f32 to vector<8x128xf32>
    %591 = arith.mulf %590, %589 : vector<8x128xf32>
    %cst_237 = arith.constant 5.000000e-01 : f32
    %592 = vector.broadcast %cst_237 : f32 to vector<8x128xf32>
    %593 = arith.addf %591, %592 : vector<8x128xf32>
    %594 = vector.extract_strided_slice %585 {offsets = [0, 128], sizes = [8, 128], strides = [1, 1]} : vector<8x512xf32> to vector<8x128xf32>
    %cst_238 = arith.constant 5.000000e-01 : f32
    %595 = vector.broadcast %cst_238 : f32 to vector<8x128xf32>
    %596 = arith.mulf %595, %594 : vector<8x128xf32>
    %597 = math.tanh %596 : vector<8x128xf32>
    %cst_239 = arith.constant 5.000000e-01 : f32
    %598 = vector.broadcast %cst_239 : f32 to vector<8x128xf32>
    %599 = arith.mulf %598, %597 : vector<8x128xf32>
    %cst_240 = arith.constant 5.000000e-01 : f32
    %600 = vector.broadcast %cst_240 : f32 to vector<8x128xf32>
    %601 = arith.addf %599, %600 : vector<8x128xf32>
    %602 = vector.extract_strided_slice %585 {offsets = [0, 256], sizes = [8, 128], strides = [1, 1]} : vector<8x512xf32> to vector<8x128xf32>
    %603 = math.tanh %602 : vector<8x128xf32>
    %604 = vector.extract_strided_slice %585 {offsets = [0, 384], sizes = [8, 128], strides = [1, 1]} : vector<8x512xf32> to vector<8x128xf32>
    %cst_241 = arith.constant 5.000000e-01 : f32
    %605 = vector.broadcast %cst_241 : f32 to vector<8x128xf32>
    %606 = arith.mulf %605, %604 : vector<8x128xf32>
    %607 = math.tanh %606 : vector<8x128xf32>
    %cst_242 = arith.constant 5.000000e-01 : f32
    %608 = vector.broadcast %cst_242 : f32 to vector<8x128xf32>
    %609 = arith.mulf %608, %607 : vector<8x128xf32>
    %cst_243 = arith.constant 5.000000e-01 : f32
    %610 = vector.broadcast %cst_243 : f32 to vector<8x128xf32>
    %611 = arith.addf %609, %610 : vector<8x128xf32>
    %612 = arith.mulf %601, %537 : vector<8x128xf32>
    %613 = arith.mulf %593, %603 : vector<8x128xf32>
    %614 = arith.addf %612, %613 : vector<8x128xf32>
    %615 = math.tanh %614 : vector<8x128xf32>
    %616 = arith.mulf %611, %615 : vector<8x128xf32>
    %c0_244 = arith.constant 0 : index
    %c0_245 = arith.constant 0 : index
    %617 = vector.load %arg7[%c0_244, %c0_245] : memref<128x128xf32, #tpu.memory_space<vmem>>, vector<128x128xf32>
    %cst_246 = arith.constant dense<0.000000e+00> : vector<8x128xf32>
    %618 = tpu.matmul %616, %617, %cst_246 {dimension_numbers = #tpu.dot_dimension_numbers<[1], [0], [0], [1], [0, 0, 1, 1], [], []>} : vector<8x128xf32>, vector<128x128xf32>, vector<8x128xf32> -> vector<8x128xf32>
    %c0_247 = arith.constant 0 : index
    %c0_248 = arith.constant 0 : index
    %619 = vector.load %arg8[%c0_247, %c0_248] : memref<1x128xf32, #tpu.memory_space<vmem>>, vector<1x128xf32>
    %620 = vector.broadcast %619 : vector<1x128xf32> to vector<8x128xf32>
    %621 = arith.addf %618, %620 : vector<8x128xf32>
    %c0_249 = arith.constant 0 : index
    %c0_250 = arith.constant 0 : index
    %622 = vector.load %arg9[%c0_249, %c0_250] : memref<8x128xf32, #tpu.memory_space<vmem>>, vector<8x128xf32>
    tpu.vector_store %arg9[%c0_249, %c0_250], %621 {strides = array<i32>} : memref<8x128xf32, #tpu.memory_space<vmem>>, vector<8x128xf32>,
    return
  }
}

</mosaic_0001>

<llo_original>
// kernel: tpu_custom_call.1
$region0: #{tpu_custom_call.1}
  #allocation0 [shape = 'u32[]', space=smem, size = 0x4, offset = 0x4, fixed_abs, tag = 'smem constant byte address 0x4 - core index']
  #allocation1 [shape = 'u32[144,128]{1,0:T(1,128)}', space=vmem, size = 0x12000, scoped, tag = 'internal scratch']
  #allocation2 [shape = 'f32[64,512]{1,0:T(8,128)}', space=vmem, size = 0x20000, scoped, tag = 'scratch operand']
  %s0 = inlined_call_operand.vmem [shape: bf16[64,4], index: 0, kind: input, shape index: {}]
  %s1 = inlined_call_operand.vmem [shape: bf16[4,512], index: 1, kind: input, shape index: {}]
  %s2 = inlined_call_operand.vmem [shape: f32[1,512], index: 2, kind: input, shape index: {}]
  %s3 = inlined_call_operand.hbm [shape: bf16[128,512], index: 3, kind: input, shape index: {}]
  %s4 = inlined_call_operand.hbm [shape: bf16[128,512], index: 4, kind: input, shape index: {}]
  %s5 = inlined_call_operand.hbm [shape: bf16[128,512], index: 5, kind: input, shape index: {}]
  %s6 = inlined_call_operand.vmem [shape: f32[1,512], index: 6, kind: input, shape index: {}]
  %s7 = inlined_call_operand.hbm [shape: f32[128,128], index: 7, kind: input, shape index: {}]
  %s8 = inlined_call_operand.vmem [shape: f32[1,128], index: 8, kind: input, shape index: {}]
  %s9 = inlined_call_operand.hbm [shape: f32[8,128], index: 9, kind: output, shape index: {}]
  %s10 = sld [smem:[#allocation0]]
  $region62: #{tpu_custom_call.1} parent=0
    _
  %s12 = ssub.s32 1, %s10
  %s13 = scalar_select 0, %s12, %s10
  $region1: #{tpu_custom_call.1} parent=0
    #allocation3 [shape = 'u8[131072]{0}', space=vmem, size = 0x20000, scoped, tag = 'input window, operand 3, single buffered']
    #allocation4 [shape = 's32[1]{0}', space=sflag, size = 0x4, scoped, tag = 'scoped memory for tpu_custom_call.1']
    #allocation5 [shape = 's32[1]{0}', space=sflag, size = 0x4, scoped, tag = 'scoped memory for tpu_custom_call.1']
    #allocation6 [shape = 'u8[131072]{0}', space=vmem, size = 0x20000, scoped, tag = 'input window, operand 4, single buffered']
    #allocation7 [shape = 's32[1]{0}', space=sflag, size = 0x4, scoped, tag = 'scoped memory for tpu_custom_call.1']
    #allocation8 [shape = 'u8[131072]{0}', space=vmem, size = 0x20000, scoped, tag = 'input window, operand 5, single buffered']
    #allocation9 [shape = 'u8[65536]{0}', space=vmem, size = 0x10000, scoped, tag = 'input window, operand 7, single buffered']
    #allocation10 [shape = 's32[1]{0}', space=sflag, size = 0x4, scoped, tag = 'scoped memory for tpu_custom_call.1']
    #allocation11 [shape = 'u8[4096]{0}', space=vmem, size = 0x1000, scoped, tag = 'output window, operand 0, single buffered']
    %14 = vsyncpa [#allocation4], 0
    %15 = vsyncpa [#allocation7], 0
    %16 = vsyncpa [#allocation10], 0
    %17 = vsyncpa [#allocation5], 0
    // Predicated region
    $region2: #{tpu_custom_call.1} parent=1 // pred_check
      _
    $region3: #{tpu_custom_call.1} parent=1 // pred_check_branch
      %19 = sbr.rel (0) target = $region5
    $region4: #{tpu_custom_call.1} parent=1 // pred_region
      _
    $region5: #{tpu_custom_call.1} parent=1 // pred_fallthru
      _
    // Predicated region
    $region6: #{tpu_custom_call.1} parent=1 // pred_check
      _
    $region7: #{tpu_custom_call.1} parent=1 // pred_check_branch
      %21 = sbr.rel (0) target = $region9
    $region8: #{tpu_custom_call.1} parent=1 // pred_region
      _
    $region9: #{tpu_custom_call.1} parent=1 // pred_fallthru
      _
    // Predicated region
    $region10: #{tpu_custom_call.1} parent=1 // pred_check
      _
    $region11: #{tpu_custom_call.1} parent=1 // pred_check_branch
      %23 = sbr.rel (0) target = $region13
    $region12: #{tpu_custom_call.1} parent=1 // pred_region
      _
    $region13: #{tpu_custom_call.1} parent=1 // pred_fallthru
      _
    // Predicated region
    $region14: #{tpu_custom_call.1} parent=1 // pred_check
      _
    $region15: #{tpu_custom_call.1} parent=1 // pred_check_branch
      %25 = sbr.rel (0) target = $region17
    $region16: #{tpu_custom_call.1} parent=1 // pred_region
      %s27 = ssub.s32 4096, 4096
      %28 = vsyncadd [#allocation4], %s27
      %s29 = sshll.u32 [#allocation3], 4
      %s30 = int_to_ptr.vmem [resolvable:$true] %s29
      %35 = dma.hbm_to_vmem [thread:$0]  %s3, 4096, %s30, [#allocation4], 256, 256, 16
    $region17: #{tpu_custom_call.1} parent=1 // pred_fallthru
      _
    // Predicated region
    $region18: #{tpu_custom_call.1} parent=1 // pred_check
      _
    $region19: #{tpu_custom_call.1} parent=1 // pred_check_branch
      %37 = sbr.rel (0) target = $region21
    $region20: #{tpu_custom_call.1} parent=1 // pred_region
      %s39 = ssub.s32 4096, 4096
      %40 = vsyncadd [#allocation7], %s39
      %s41 = sshll.u32 [#allocation6], 4
      %s42 = int_to_ptr.vmem [resolvable:$true] %s41
      %47 = dma.hbm_to_vmem [thread:$0]  %s4, 4096, %s42, [#allocation7], 256, 256, 16
    $region21: #{tpu_custom_call.1} parent=1 // pred_fallthru
      _
    // Predicated region
    $region22: #{tpu_custom_call.1} parent=1 // pred_check
      _
    $region23: #{tpu_custom_call.1} parent=1 // pred_check_branch
      %49 = sbr.rel (0) target = $region25
    $region24: #{tpu_custom_call.1} parent=1 // pred_region
      %s51 = ssub.s32 4096, 4096
      %52 = vsyncadd [#allocation7], %s51
      %s53 = sshll.u32 [#allocation8], 4
      %s54 = int_to_ptr.vmem [resolvable:$true] %s53
      %59 = dma.hbm_to_vmem [thread:$0]  %s5, 4096, %s54, [#allocation7], 256, 256, 16
    $region25: #{tpu_custom_call.1} parent=1 // pred_fallthru
      _
    // Predicated region
    $region26: #{tpu_custom_call.1} parent=1 // pred_check
      _
    $region27: #{tpu_custom_call.1} parent=1 // pred_check_branch
      %61 = sbr.rel (0) target = $region29
    $region28: #{tpu_custom_call.1} parent=1 // pred_region
      _
    $region29: #{tpu_custom_call.1} parent=1 // pred_fallthru
      _
    // Predicated region
    $region30: #{tpu_custom_call.1} parent=1 // pred_check
      _
    $region31: #{tpu_custom_call.1} parent=1 // pred_check_branch
      %63 = sbr.rel (0) target = $region33
    $region32: #{tpu_custom_call.1} parent=1 // pred_region
      %s65 = ssub.s32 2048, 2048
      %66 = vsyncadd [#allocation10], %s65
      %s67 = sshll.u32 [#allocation9], 4
      %s68 = int_to_ptr.vmem [resolvable:$true] %s67
      %73 = dma.hbm_to_vmem [thread:$0]  %s7, 2048, %s68, [#allocation10], 128, 128, 8
    $region33: #{tpu_custom_call.1} parent=1 // pred_fallthru
      _
    // Predicated region
    $region34: #{tpu_custom_call.1} parent=1 // pred_check
      _
    $region35: #{tpu_custom_call.1} parent=1 // pred_check_branch
      %75 = sbr.rel (0) target = $region37
    $region36: #{tpu_custom_call.1} parent=1 // pred_region
      _
    $region37: #{tpu_custom_call.1} parent=1 // pred_fallthru
      _
    // Predicated region
    $region38: #{tpu_custom_call.1} parent=1 // pred_check
      _
    $region39: #{tpu_custom_call.1} parent=1 // pred_check_branch
      %77 = sbr.rel (0) target = $region41
    $region40: #{tpu_custom_call.1} parent=1 // pred_region
      %78 = dma.done [#allocation4], 4096
    $region41: #{tpu_custom_call.1} parent=1 // pred_fallthru
      _
    // Predicated region
    $region42: #{tpu_custom_call.1} parent=1 // pred_check
      _
    $region43: #{tpu_custom_call.1} parent=1 // pred_check_branch
      %80 = sbr.rel (0) target = $region45
    $region44: #{tpu_custom_call.1} parent=1 // pred_region
      %81 = dma.done [#allocation7], 4096
    $region45: #{tpu_custom_call.1} parent=1 // pred_fallthru
      _
    // Predicated region
    $region46: #{tpu_custom_call.1} parent=1 // pred_check
      _
    $region47: #{tpu_custom_call.1} parent=1 // pred_check_branch
      %83 = sbr.rel (0) target = $region49
    $region48: #{tpu_custom_call.1} parent=1 // pred_region
      %84 = dma.done [#allocation7], 4096
    $region49: #{tpu_custom_call.1} parent=1 // pred_fallthru
      _
    // Predicated region
    $region50: #{tpu_custom_call.1} parent=1 // pred_check
      _
    $region51: #{tpu_custom_call.1} parent=1 // pred_check_branch
      %86 = sbr.rel (0) target = $region53
    $region52: #{tpu_custom_call.1} parent=1 // pred_region
      %87 = dma.done [#allocation10], 2048
    $region53: #{tpu_custom_call.1} parent=1 // pred_fallthru
      _
    %v89 = vld [vmem:[%s0] sm:$0xf]
    %v90 = vld [vmem:[%s0 + $0x4] sm:$0xf]
    %v91 = vld [vmem:[%s0 + $0x8] sm:$0xf]
    %v92 = vld [vmem:[%s0 + $0xc] sm:$0xf]
    %v93 = vld [vmem:[%s0 + $0x10] sm:$0xf]
    %v94 = vld [vmem:[%s0 + $0x14] sm:$0xf]
    %v95 = vld [vmem:[%s0 + $0x18] sm:$0xf]
    %v96 = vld [vmem:[%s0 + $0x1c] sm:$0xf]
    %v97 = vld [vmem:[%s1] sm:$0xff]
    %v98 = vld [vmem:[%s2] sm:$0xf]
    %v100 = vlaneseq
    %v101 = vshrl.u32 %v100, 7
    %v102 = vsub.s32 0, %v101
    %v103 = vrot.slane %v98, %v102
    %v104 = vlaneseq
    %v105 = vshrl.u32 %v104, 7
    %v106 = vsub.s32 1, %v105
    %v107 = vrot.slane %v98, %v106
    %v108 = vlaneseq
    %v109 = vshrl.u32 %v108, 7
    %v110 = vsub.s32 2, %v109
    %v111 = vrot.slane %v98, %v110
    %v112 = vlaneseq
    %v113 = vshrl.u32 %v112, 7
    %v114 = vsub.s32 3, %v113
    %v115 = vrot.slane %v98, %v114
    %v128 = vunpack.c.l.b16 %v89
    %v129 = vunpack.c.l.b16 %v90
    %v130 = vunpack.c.l.b16 %v91
    %v131 = vunpack.c.l.b16 %v92
    %v132 = vunpack.c.l.b16 %v93
    %v133 = vunpack.c.l.b16 %v94
    %v134 = vunpack.c.l.b16 %v95
    %v135 = vunpack.c.l.b16 %v96
    %v136 = vpack.c.b16 %v129, %v128
    %v137 = vpack.c.b16 %v131, %v130
    %v138 = vpack.c.b16 %v133, %v132
    %v139 = vpack.c.b16 %v135, %v134
    %v141 = vcombine.high %v97, %v97
    %v143 = vunpack.c.l.s4 1983009808
    %v144 = vunpack.c.0.s8 %v143
    %v145 = vlaneseq
    %v146 = vshrl.u32 %v145, 7
    %v147 = vsub.s32 %v144, %v146
    %v148 = vrot.slane %v97, %v147
    %v150 = vunpack.c.l.s4 1983009808
    %v151 = vunpack.c.0.s8 %v150
    %v152 = vlaneseq
    %v153 = vshrl.u32 %v152, 7
    %v154 = vsub.s32 %v151, %v153
    %v155 = vrot.slane %v141, %v154
    %v156 = vcombine.high %v148, %v148
    %v157 = vcombine.high %v155, %v155
    %vm158 = vcmask 31744
    %v160 = vsel %vm158, %v136, 0
    %v163 = vsel %vm158, %v137, 0
    %v166 = vsel %vm158, %v138, 0
    %v169 = vsel %vm158, %v139, 0
    %vm171 = vcmask 1041408
    %v173 = vsel %vm171, %v148, 0
    %v176 = vsel %vm171, %v156, 0
    %v179 = vsel %vm171, %v155, 0
    %v182 = vsel %vm171, %v157, 0
    %184 = vmatprep.subr.bf16.mxu0 %v176
    %185 = vmatpush1.bf16.msra.mxu0 %v173
    %186 = vmatprep.subr.bf16.mxu0 0
    %187 = vmatpush1.bf16.msra.mxu0 0
    %188 = vmatprep.subr.bf16.mxu0 0
    %189 = vmatpush1.bf16.msra.mxu0 0
    %190 = vmatprep.subr.bf16.mxu0 0
    %191 = vmatpush1.bf16.msra.mxu0 0
    %192 = vmatprep.subr.bf16.mxu0 0
    %193 = vmatpush1.bf16.msra.mxu0 0
    %194 = vmatprep.subr.bf16.mxu0 0
    %195 = vmatpush1.bf16.msra.mxu0 0
    %196 = vmatprep.subr.bf16.mxu0 0
    %197 = vmatpush1.bf16.msra.mxu0 0
    %198 = vmatprep.subr.bf16.mxu0 0
    %199 = vmatpush1.bf16.msra.mxu0 0
    %200 = vmatprep.subr.bf16.mxu0 0
    %201 = vmatpush1.bf16.msra.mxu0 0
    %202 = vmatprep.subr.bf16.mxu0 0
    %203 = vmatpush1.bf16.msra.mxu0 0
    %204 = vmatprep.subr.bf16.mxu0 0
    %205 = vmatpush1.bf16.msra.mxu0 0
    %206 = vmatprep.subr.bf16.mxu0 0
    %207 = vmatpush1.bf16.msra.mxu0 0
    %208 = vmatprep.subr.bf16.mxu0 0
    %209 = vmatpush1.bf16.msra.mxu0 0
    %210 = vmatprep.subr.bf16.mxu0 0
    %211 = vmatpush1.bf16.msra.mxu0 0
    %212 = vmatprep.subr.bf16.mxu0 0
    %213 = vmatpush1.bf16.msra.mxu0 0
    %214 = vmatprep.subr.bf16.mxu0 0
    %215 = vmatpush1.bf16.msra.mxu0 0
    %216 = vmatprep.mubr.bf16.mxu0 0
    %217 = vmatmul.mubr.bf16.gmra.mrb[0].mxu0 %v160
    %v218 = vpop.f32.mrb[0].mxu0
    %v219 = vadd.f32 %v103, %v218
    %v220 = vpop.f32.mrb[0].mxu0
    %v221 = vadd.f32 %v107, %v220
    %v222 = vpop.f32.mrb[0].mxu0
    %v223 = vadd.f32 %v103, %v222
    %v224 = vpop.f32.mrb[0].mxu0
    %v225 = vadd.f32 %v107, %v224
    %226 = vmatprep.mubr.bf16.mxu0 0
    %227 = vmatmul.mubr.bf16.gmra.mrb[0].mxu0 %v163
    %v228 = vpop.f32.mrb[0].mxu0
    %v229 = vadd.f32 %v103, %v228
    %v230 = vpop.f32.mrb[0].mxu0
    %v231 = vadd.f32 %v107, %v230
    %v232 = vpop.f32.mrb[0].mxu0
    %v233 = vadd.f32 %v103, %v232
    %v234 = vpop.f32.mrb[0].mxu0
    %v235 = vadd.f32 %v107, %v234
    %236 = vmatprep.mubr.bf16.mxu0 0
    %237 = vmatmul.mubr.bf16.gmra.mrb[0].mxu0 %v166
    %v238 = vpop.f32.mrb[0].mxu0
    %v239 = vadd.f32 %v103, %v238
    %v240 = vpop.f32.mrb[0].mxu0
    %v241 = vadd.f32 %v107, %v240
    %v242 = vpop.f32.mrb[0].mxu0
    %v243 = vadd.f32 %v103, %v242
    %v244 = vpop.f32.mrb[0].mxu0
    %v245 = vadd.f32 %v107, %v244
    %246 = vmatprep.mubr.bf16.mxu0 0
    %247 = vmatmul.mubr.bf16.gmra.mrb[0].mxu0 %v169
    %v248 = vpop.f32.mrb[0].mxu0
    %v249 = vadd.f32 %v103, %v248
    %v250 = vpop.f32.mrb[0].mxu0
    %v251 = vadd.f32 %v107, %v250
    %v252 = vpop.f32.mrb[0].mxu0
    %v253 = vadd.f32 %v103, %v252
    %v254 = vpop.f32.mrb[0].mxu0
    %v255 = vadd.f32 %v107, %v254
    %256 = vdwg.mxu0
    %257 = vmatprep.subr.bf16.mxu0 %v182
    %258 = vmatpush1.bf16.msra.mxu0 %v179
    %259 = vmatprep.subr.bf16.mxu0 0
    %260 = vmatpush1.bf16.msra.mxu0 0
    %261 = vmatprep.subr.bf16.mxu0 0
    %262 = vmatpush1.bf16.msra.mxu0 0
    %263 = vmatprep.subr.bf16.mxu0 0
    %264 = vmatpush1.bf16.msra.mxu0 0
    %265 = vmatprep.subr.bf16.mxu0 0
    %266 = vmatpush1.bf16.msra.mxu0 0
    %267 = vmatprep.subr.bf16.mxu0 0
    %268 = vmatpush1.bf16.msra.mxu0 0
    %269 = vmatprep.subr.bf16.mxu0 0
    %270 = vmatpush1.bf16.msra.mxu0 0
    %271 = vmatprep.subr.bf16.mxu0 0
    %272 = vmatpush1.bf16.msra.mxu0 0
    %273 = vmatprep.subr.bf16.mxu0 0
    %274 = vmatpush1.bf16.msra.mxu0 0
    %275 = vmatprep.subr.bf16.mxu0 0
    %276 = vmatpush1.bf16.msra.mxu0 0
    %277 = vmatprep.subr.bf16.mxu0 0
    %278 = vmatpush1.bf16.msra.mxu0 0
    %279 = vmatprep.subr.bf16.mxu0 0
    %280 = vmatpush1.bf16.msra.mxu0 0
    %281 = vmatprep.subr.bf16.mxu0 0
    %282 = vmatpush1.bf16.msra.mxu0 0
    %283 = vmatprep.subr.bf16.mxu0 0
    %284 = vmatpush1.bf16.msra.mxu0 0
    %285 = vmatprep.subr.bf16.mxu0 0
    %286 = vmatpush1.bf16.msra.mxu0 0
    %287 = vmatprep.subr.bf16.mxu0 0
    %288 = vmatpush1.bf16.msra.mxu0 0
    %289 = vmatprep.mubr.bf16.mxu0 0
    %290 = vmatmul.mubr.bf16.gmra.mrb[0].mxu0 %v160
    %v291 = vpop.f32.mrb[0].mxu0
    %v292 = vadd.f32 %v111, %v291
    %v293 = vpop.f32.mrb[0].mxu0
    %v294 = vadd.f32 %v115, %v293
    %v295 = vpop.f32.mrb[0].mxu0
    %v296 = vadd.f32 %v111, %v295
    %v297 = vpop.f32.mrb[0].mxu0
    %v298 = vadd.f32 %v115, %v297
    %299 = vmatprep.mubr.bf16.mxu0 0
    %300 = vmatmul.mubr.bf16.gmra.mrb[0].mxu0 %v163
    %v301 = vpop.f32.mrb[0].mxu0
    %v302 = vadd.f32 %v111, %v301
    %v303 = vpop.f32.mrb[0].mxu0
    %v304 = vadd.f32 %v115, %v303
    %v305 = vpop.f32.mrb[0].mxu0
    %v306 = vadd.f32 %v111, %v305
    %v307 = vpop.f32.mrb[0].mxu0
    %v308 = vadd.f32 %v115, %v307
    %309 = vmatprep.mubr.bf16.mxu0 0
    %310 = vmatmul.mubr.bf16.gmra.mrb[0].mxu0 %v166
    %v311 = vpop.f32.mrb[0].mxu0
    %v312 = vadd.f32 %v111, %v311
    %v313 = vpop.f32.mrb[0].mxu0
    %v314 = vadd.f32 %v115, %v313
    %v315 = vpop.f32.mrb[0].mxu0
    %v316 = vadd.f32 %v111, %v315
    %v317 = vpop.f32.mrb[0].mxu0
    %v318 = vadd.f32 %v115, %v317
    %319 = vmatprep.mubr.bf16.mxu0 0
    %320 = vmatmul.mubr.bf16.gmra.mrb[0].mxu0 %v169
    %v321 = vpop.f32.mrb[0].mxu0
    %v322 = vadd.f32 %v111, %v321
    %v323 = vpop.f32.mrb[0].mxu0
    %v324 = vadd.f32 %v115, %v323
    %v325 = vpop.f32.mrb[0].mxu0
    %v326 = vadd.f32 %v111, %v325
    %v327 = vpop.f32.mrb[0].mxu0
    %v328 = vadd.f32 %v115, %v327
    %329 = vdwg.mxu0
    %330 = vst [vmem:[#allocation2] sm:$0xff] %v219
    %331 = vst [vmem:[#allocation2 + $0x8] sm:$0xff] %v221
    %332 = vst [vmem:[#allocation2 + $0x10] sm:$0xff] %v292
    %333 = vst [vmem:[#allocation2 + $0x18] sm:$0xff] %v294
    %334 = vst [vmem:[#allocation2 + $0x20] sm:$0xff] %v223
    %335 = vst [vmem:[#allocation2 + $0x28] sm:$0xff] %v225
    %336 = vst [vmem:[#allocation2 + $0x30] sm:$0xff] %v296
    %337 = vst [vmem:[#allocation2 + $0x38] sm:$0xff] %v298
    %338 = vst [vmem:[#allocation2 + $0x40] sm:$0xff] %v229
    %339 = vst [vmem:[#allocation2 + $0x48] sm:$0xff] %v231
    %340 = vst [vmem:[#allocation2 + $0x50] sm:$0xff] %v302
    %341 = vst [vmem:[#allocation2 + $0x58] sm:$0xff] %v304
    %342 = vst [vmem:[#allocation2 + $0x60] sm:$0xff] %v233
    %343 = vst [vmem:[#allocation2 + $0x68] sm:$0xff] %v235
    %344 = vst [vmem:[#allocation2 + $0x70] sm:$0xff] %v306
    %345 = vst [vmem:[#allocation2 + $0x78] sm:$0xff] %v308
    %346 = vst [vmem:[#allocation2 + $0x80] sm:$0xff] %v239
    %347 = vst [vmem:[#allocation2 + $0x88] sm:$0xff] %v241
    %348 = vst [vmem:[#allocation2 + $0x90] sm:$0xff] %v312
    %349 = vst [vmem:[#allocation2 + $0x98] sm:$0xff] %v314
    %350 = vst [vmem:[#allocation2 + $0xa0] sm:$0xff] %v243
    %351 = vst [vmem:[#allocation2 + $0xa8] sm:$0xff] %v245
    %352 = vst [vmem:[#allocation2 + $0xb0] sm:$0xff] %v316
    %353 = vst [vmem:[#allocation2 + $0xb8] sm:$0xff] %v318
    %354 = vst [vmem:[#allocation2 + $0xc0] sm:$0xff] %v249
    %355 = vst [vmem:[#allocation2 + $0xc8] sm:$0xff] %v251
    %356 = vst [vmem:[#allocation2 + $0xd0] sm:$0xff] %v322
    %357 = vst [vmem:[#allocation2 + $0xd8] sm:$0xff] %v324
    %358 = vst [vmem:[#allocation2 + $0xe0] sm:$0xff] %v253
    %359 = vst [vmem:[#allocation2 + $0xe8] sm:$0xff] %v255
    %360 = vst [vmem:[#allocation2 + $0xf0] sm:$0xff] %v326
    %361 = vst [vmem:[#allocation2 + $0xf8] sm:$0xff] %v328
    %v362 = vld [vmem:[%s6] sm:$0xf]
    %v363 = vld [vmem:[#allocation2] sm:$0xff]
    %v364 = vld [vmem:[#allocation2 + $0x8] sm:$0xff]
    %v365 = vld [vmem:[#allocation2 + $0x10] sm:$0xff]
    %v366 = vld [vmem:[#allocation2 + $0x18] sm:$0xff]
    %v367 = vmul.f32 %v363, 0.5
    %v368 = vtanh.pop %v367
    %v369 = vmul.f32 %v368, 0.5
    %v370 = vadd.f32 %v369, 0.5
    %v371 = vmul.f32 %v364, 0.5
    %v372 = vtanh.pop %v371
    %v373 = vmul.f32 %v372, 0.5
    %v374 = vadd.f32 %v373, 0.5
    %v375 = vtanh.pop %v365
    %v376 = vmul.f32 %v366, 0.5
    %v377 = vtanh.pop %v376
    %v378 = vmul.f32 %v377, 0.5
    %v379 = vadd.f32 %v378, 0.5
    %v380 = vmul.f32 %v374, 0.0
    %v381 = vmul.f32 %v370, %v375
    %v382 = vadd.f32 %v380, %v381
    %v383 = vtanh.pop %v382
    %v384 = vmul.f32 %v379, %v383
    %v385 = vpack.c.bf16 %v384, %v384
    %v386 = vld [vmem:[#allocation6] sm:$0xff]
    %v387 = vld [vmem:[#allocation6 + $0x8] sm:$0xff]
    %v388 = vld [vmem:[#allocation6 + $0x10] sm:$0xff]
    %v389 = vld [vmem:[#allocation6 + $0x18] sm:$0xff]
    %v390 = vld [vmem:[#allocation6 + $0x20] sm:$0xff]
    %v391 = vld [vmem:[#allocation6 + $0x28] sm:$0xff]
    %v392 = vld [vmem:[#allocation6 + $0x30] sm:$0xff]
    %v393 = vld [vmem:[#allocation6 + $0x38] sm:$0xff]
    %v394 = vld [vmem:[#allocation6 + $0x40] sm:$0xff]
    %v395 = vld [vmem:[#allocation6 + $0x48] sm:$0xff]
    %v396 = vld [vmem:[#allocation6 + $0x50] sm:$0xff]
    %v397 = vld [vmem:[#allocation6 + $0x58] sm:$0xff]
    %v398 = vld [vmem:[#allocation6 + $0x60] sm:$0xff]
    %v399 = vld [vmem:[#allocation6 + $0x68] sm:$0xff]
    %v400 = vld [vmem:[#allocation6 + $0x70] sm:$0xff]
    %v401 = vld [vmem:[#allocation6 + $0x78] sm:$0xff]
    %v402 = vld [vmem:[#allocation6 + $0x80] sm:$0xff]
    %v403 = vld [vmem:[#allocation6 + $0x88] sm:$0xff]
    %v404 = vld [vmem:[#allocation6 + $0x90] sm:$0xff]
    %v405 = vld [vmem:[#allocation6 + $0x98] sm:$0xff]
    %v406 = vld [vmem:[#allocation6 + $0xa0] sm:$0xff]
    %v407 = vld [vmem:[#allocation6 + $0xa8] sm:$0xff]
    %v408 = vld [vmem:[#allocation6 + $0xb0] sm:$0xff]
    %v409 = vld [vmem:[#allocation6 + $0xb8] sm:$0xff]
    %v410 = vld [vmem:[#allocation6 + $0xc0] sm:$0xff]
    %v411 = vld [vmem:[#allocation6 + $0xc8] sm:$0xff]
    %v412 = vld [vmem:[#allocation6 + $0xd0] sm:$0xff]
    %v413 = vld [vmem:[#allocation6 + $0xd8] sm:$0xff]
    %v414 = vld [vmem:[#allocation6 + $0xe0] sm:$0xff]
    %v415 = vld [vmem:[#allocation6 + $0xe8] sm:$0xff]
    %v416 = vld [vmem:[#allocation6 + $0xf0] sm:$0xff]
    %v417 = vld [vmem:[#allocation6 + $0xf8] sm:$0xff]
    %v419 = vlaneseq
    %v420 = vshrl.u32 %v419, 7
    %v421 = vsub.s32 0, %v420
    %v422 = vrot.slane %v362, %v421
    %v423 = vlaneseq
    %v424 = vshrl.u32 %v423, 7
    %v425 = vsub.s32 1, %v424
    %v426 = vrot.slane %v362, %v425
    %v427 = vlaneseq
    %v428 = vshrl.u32 %v427, 7
    %v429 = vsub.s32 2, %v428
    %v430 = vrot.slane %v362, %v429
    %v431 = vlaneseq
    %v432 = vshrl.u32 %v431, 7
    %v433 = vsub.s32 3, %v432
    %v434 = vrot.slane %v362, %v433
    %v471 = vunpack.c.l.b16 %v386
    %v472 = vunpack.c.h.b16 %v386
    %v473 = vunpack.c.l.b16 %v387
    %v474 = vunpack.c.h.b16 %v387
    %v475 = vunpack.c.l.b16 %v388
    %v476 = vunpack.c.h.b16 %v388
    %v477 = vunpack.c.l.b16 %v389
    %v478 = vunpack.c.h.b16 %v389
    %v479 = vunpack.c.l.b16 %v390
    %v480 = vunpack.c.h.b16 %v390
    %v481 = vunpack.c.l.b16 %v391
    %v482 = vunpack.c.h.b16 %v391
    %v483 = vunpack.c.l.b16 %v392
    %v484 = vunpack.c.h.b16 %v392
    %v485 = vunpack.c.l.b16 %v393
    %v486 = vunpack.c.h.b16 %v393
    %v487 = vunpack.c.l.b16 %v394
    %v488 = vunpack.c.h.b16 %v394
    %v489 = vunpack.c.l.b16 %v395
    %v490 = vunpack.c.h.b16 %v395
    %v491 = vunpack.c.l.b16 %v396
    %v492 = vunpack.c.h.b16 %v396
    %v493 = vunpack.c.l.b16 %v397
    %v494 = vunpack.c.h.b16 %v397
    %v495 = vunpack.c.l.b16 %v398
    %v496 = vunpack.c.h.b16 %v398
    %v497 = vunpack.c.l.b16 %v399
    %v498 = vunpack.c.h.b16 %v399
    %v499 = vunpack.c.l.b16 %v400
    %v500 = vunpack.c.h.b16 %v400
    %v501 = vunpack.c.l.b16 %v401
    %v502 = vunpack.c.h.b16 %v401
    %v503 = vunpack.c.l.b16 %v402
    %v504 = vunpack.c.h.b16 %v402
    %v505 = vunpack.c.l.b16 %v403
    %v506 = vunpack.c.h.b16 %v403
    %v507 = vunpack.c.l.b16 %v404
    %v508 = vunpack.c.h.b16 %v404
    %v509 = vunpack.c.l.b16 %v405
    %v510 = vunpack.c.h.b16 %v405
    %v511 = vunpack.c.l.b16 %v406
    %v512 = vunpack.c.h.b16 %v406
    %v513 = vunpack.c.l.b16 %v407
    %v514 = vunpack.c.h.b16 %v407
    %v515 = vunpack.c.l.b16 %v408
    %v516 = vunpack.c.h.b16 %v408
    %v517 = vunpack.c.l.b16 %v409
    %v518 = vunpack.c.h.b16 %v409
    %v519 = vunpack.c.l.b16 %v410
    %v520 = vunpack.c.h.b16 %v410
    %v521 = vunpack.c.l.b16 %v411
    %v522 = vunpack.c.h.b16 %v411
    %v523 = vunpack.c.l.b16 %v412
    %v524 = vunpack.c.h.b16 %v412
    %v525 = vunpack.c.l.b16 %v413
    %v526 = vunpack.c.h.b16 %v413
    %v527 = vunpack.c.l.b16 %v414
    %v528 = vunpack.c.h.b16 %v414
    %v529 = vunpack.c.l.b16 %v415
    %v530 = vunpack.c.h.b16 %v415
    %v531 = vunpack.c.l.b16 %v416
    %v532 = vunpack.c.h.b16 %v416
    %v533 = vunpack.c.l.b16 %v417
    %v534 = vunpack.c.h.b16 %v417
    %v535 = vpack.c.b16 %v475, %v471
    %v536 = vpack.c.b16 %v476, %v472
    %v537 = vpack.c.b16 %v477, %v473
    %v538 = vpack.c.b16 %v478, %v474
    %v539 = vpack.c.b16 %v483, %v479
    %v540 = vpack.c.b16 %v484, %v480
    %v541 = vpack.c.b16 %v485, %v481
    %v542 = vpack.c.b16 %v486, %v482
    %v543 = vpack.c.b16 %v491, %v487
    %v544 = vpack.c.b16 %v492, %v488
    %v545 = vpack.c.b16 %v493, %v489
    %v546 = vpack.c.b16 %v494, %v490
    %v547 = vpack.c.b16 %v499, %v495
    %v548 = vpack.c.b16 %v500, %v496
    %v549 = vpack.c.b16 %v501, %v497
    %v550 = vpack.c.b16 %v502, %v498
    %v551 = vpack.c.b16 %v507, %v503
    %v552 = vpack.c.b16 %v508, %v504
    %v553 = vpack.c.b16 %v509, %v505
    %v554 = vpack.c.b16 %v510, %v506
    %v555 = vpack.c.b16 %v515, %v511
    %v556 = vpack.c.b16 %v516, %v512
    %v557 = vpack.c.b16 %v517, %v513
    %v558 = vpack.c.b16 %v518, %v514
    %v559 = vpack.c.b16 %v523, %v519
    %v560 = vpack.c.b16 %v524, %v520
    %v561 = vpack.c.b16 %v525, %v521
    %v562 = vpack.c.b16 %v526, %v522
    %v563 = vpack.c.b16 %v531, %v527
    %v564 = vpack.c.b16 %v532, %v528
    %v565 = vpack.c.b16 %v533, %v529
    %v566 = vpack.c.b16 %v534, %v530
    %599 = vmatprep.subr.bf16.mxu0 %v536
    %600 = vmatpush1.bf16.msra.mxu0 %v535
    %601 = vmatprep.subr.bf16.mxu0 %v540
    %602 = vmatpush1.bf16.msra.mxu0 %v539
    %603 = vmatprep.subr.bf16.mxu0 %v544
    %604 = vmatpush1.bf16.msra.mxu0 %v543
    %605 = vmatprep.subr.bf16.mxu0 %v548
    %606 = vmatpush1.bf16.msra.mxu0 %v547
    %607 = vmatprep.subr.bf16.mxu0 %v552
    %608 = vmatpush1.bf16.msra.mxu0 %v551
    %609 = vmatprep.subr.bf16.mxu0 %v556
    %610 = vmatpush1.bf16.msra.mxu0 %v555
    %611 = vmatprep.subr.bf16.mxu0 %v560
    %612 = vmatpush1.bf16.msra.mxu0 %v559
    %613 = vmatprep.subr.bf16.mxu0 %v564
    %614 = vmatpush1.bf16.msra.mxu0 %v563
    %615 = vmatprep.subr.bf16.mxu0 0
    %616 = vmatpush1.bf16.msra.mxu0 0
    %617 = vmatprep.subr.bf16.mxu0 0
    %618 = vmatpush1.bf16.msra.mxu0 0
    %619 = vmatprep.subr.bf16.mxu0 0
    %620 = vmatpush1.bf16.msra.mxu0 0
    %621 = vmatprep.subr.bf16.mxu0 0
    %622 = vmatpush1.bf16.msra.mxu0 0
    %623 = vmatprep.subr.bf16.mxu0 0
    %624 = vmatpush1.bf16.msra.mxu0 0
    %625 = vmatprep.subr.bf16.mxu0 0
    %626 = vmatpush1.bf16.msra.mxu0 0
    %627 = vmatprep.subr.bf16.mxu0 0
    %628 = vmatpush1.bf16.msra.mxu0 0
    %629 = vmatprep.subr.bf16.mxu0 0
    %630 = vmatpush1.bf16.msra.mxu0 0
    %631 = vmatprep.mubr.bf16.mxu0 0
    %632 = vmatmul.mubr.bf16.gmra.mrb[0].mxu0 %v385
    %v633 = vpop.f32.mrb[0].mxu0
    %v634 = vadd.f32 %v422, %v633
    %v635 = vpop.f32.mrb[0].mxu0
    %v636 = vadd.f32 %v426, %v635
    %v637 = vpop.f32.mrb[0].mxu0
    %v638 = vpop.f32.mrb[0].mxu0
    %639 = vdwg.mxu0
    %640 = vmatprep.subr.bf16.mxu0 %v538
    %641 = vmatpush1.bf16.msra.mxu0 %v537
    %642 = vmatprep.subr.bf16.mxu0 %v542
    %643 = vmatpush1.bf16.msra.mxu0 %v541
    %644 = vmatprep.subr.bf16.mxu0 %v546
    %645 = vmatpush1.bf16.msra.mxu0 %v545
    %646 = vmatprep.subr.bf16.mxu0 %v550
    %647 = vmatpush1.bf16.msra.mxu0 %v549
    %648 = vmatprep.subr.bf16.mxu0 %v554
    %649 = vmatpush1.bf16.msra.mxu0 %v553
    %650 = vmatprep.subr.bf16.mxu0 %v558
    %651 = vmatpush1.bf16.msra.mxu0 %v557
    %652 = vmatprep.subr.bf16.mxu0 %v562
    %653 = vmatpush1.bf16.msra.mxu0 %v561
    %654 = vmatprep.subr.bf16.mxu0 %v566
    %655 = vmatpush1.bf16.msra.mxu0 %v565
    %656 = vmatprep.subr.bf16.mxu0 0
    %657 = vmatpush1.bf16.msra.mxu0 0
    %658 = vmatprep.subr.bf16.mxu0 0
    %659 = vmatpush1.bf16.msra.mxu0 0
    %660 = vmatprep.subr.bf16.mxu0 0
    %661 = vmatpush1.bf16.msra.mxu0 0
    %662 = vmatprep.subr.bf16.mxu0 0
    %663 = vmatpush1.bf16.msra.mxu0 0
    %664 = vmatprep.subr.bf16.mxu0 0
    %665 = vmatpush1.bf16.msra.mxu0 0
    %666 = vmatprep.subr.bf16.mxu0 0
    %667 = vmatpush1.bf16.msra.mxu0 0
    %668 = vmatprep.subr.bf16.mxu0 0
    %669 = vmatpush1.bf16.msra.mxu0 0
    %670 = vmatprep.subr.bf16.mxu0 0
    %671 = vmatpush1.bf16.msra.mxu0 0
    %672 = vmatprep.mubr.bf16.mxu0 0
    %673 = vmatmul.mubr.bf16.gmra.mrb[0].mxu0 %v385
    %v674 = vpop.f32.mrb[0].mxu0
    %v675 = vadd.f32 %v430, %v674
    %v676 = vpop.f32.mrb[0].mxu0
    %v677 = vadd.f32 %v434, %v676
    %v678 = vpop.f32.mrb[0].mxu0
    %v679 = vpop.f32.mrb[0].mxu0
    %680 = vdwg.mxu0
    %v681 = vmul.f32 %v634, 0.5
    %v682 = vtanh.pop %v681
    %v683 = vmul.f32 %v682, 0.5
    %v684 = vadd.f32 %v683, 0.5
    %v685 = vmul.f32 %v636, 0.5
    %v686 = vtanh.pop %v685
    %v687 = vmul.f32 %v686, 0.5
    %v688 = vadd.f32 %v687, 0.5
    %v689 = vtanh.pop %v675
    %v690 = vmul.f32 %v677, 0.5
    %v691 = vtanh.pop %v690
    %v692 = vmul.f32 %v691, 0.5
    %v693 = vadd.f32 %v692, 0.5
    %v694 = vmul.f32 %v688, 0.0
    %v695 = vmul.f32 %v684, %v689
    %v696 = vadd.f32 %v694, %v695
    %v697 = vtanh.pop %v696
    %v698 = vmul.f32 %v693, %v697
    %v699 = vpack.c.bf16 %v698, %v698
    %v700 = vld [vmem:[#allocation8] sm:$0xff]
    %v701 = vld [vmem:[#allocation8 + $0x8] sm:$0xff]
    %v702 = vld [vmem:[#allocation8 + $0x10] sm:$0xff]
    %v703 = vld [vmem:[#allocation8 + $0x18] sm:$0xff]
    %v704 = vld [vmem:[#allocation8 + $0x20] sm:$0xff]
    %v705 = vld [vmem:[#allocation8 + $0x28] sm:$0xff]
    %v706 = vld [vmem:[#allocation8 + $0x30] sm:$0xff]
    %v707 = vld [vmem:[#allocation8 + $0x38] sm:$0xff]
    %v708 = vld [vmem:[#allocation8 + $0x40] sm:$0xff]
    %v709 = vld [vmem:[#allocation8 + $0x48] sm:$0xff]
    %v710 = vld [vmem:[#allocation8 + $0x50] sm:$0xff]
    %v711 = vld [vmem:[#allocation8 + $0x58] sm:$0xff]
    %v712 = vld [vmem:[#allocation8 + $0x60] sm:$0xff]
    %v713 = vld [vmem:[#allocation8 + $0x68] sm:$0xff]
    %v714 = vld [vmem:[#allocation8 + $0x70] sm:$0xff]
    %v715 = vld [vmem:[#allocation8 + $0x78] sm:$0xff]
    %v716 = vld [vmem:[#allocation8 + $0x80] sm:$0xff]
    %v717 = vld [vmem:[#allocation8 + $0x88] sm:$0xff]
    %v718 = vld [vmem:[#allocation8 + $0x90] sm:$0xff]
    %v719 = vld [vmem:[#allocation8 + $0x98] sm:$0xff]
    %v720 = vld [vmem:[#allocation8 + $0xa0] sm:$0xff]
    %v721 = vld [vmem:[#allocation8 + $0xa8] sm:$0xff]
    %v722 = vld [vmem:[#allocation8 + $0xb0] sm:$0xff]
    %v723 = vld [vmem:[#allocation8 + $0xb8] sm:$0xff]
    %v724 = vld [vmem:[#allocation8 + $0xc0] sm:$0xff]
    %v725 = vld [vmem:[#allocation8 + $0xc8] sm:$0xff]
    %v726 = vld [vmem:[#allocation8 + $0xd0] sm:$0xff]
    %v727 = vld [vmem:[#allocation8 + $0xd8] sm:$0xff]
    %v728 = vld [vmem:[#allocation8 + $0xe0] sm:$0xff]
    %v729 = vld [vmem:[#allocation8 + $0xe8] sm:$0xff]
    %v730 = vld [vmem:[#allocation8 + $0xf0] sm:$0xff]
    %v731 = vld [vmem:[#allocation8 + $0xf8] sm:$0xff]
    %v764 = vunpack.c.l.b16 %v700
    %v765 = vunpack.c.h.b16 %v700
    %v766 = vunpack.c.l.b16 %v701
    %v767 = vunpack.c.h.b16 %v701
    %v768 = vunpack.c.l.b16 %v702
    %v769 = vunpack.c.h.b16 %v702
    %v770 = vunpack.c.l.b16 %v703
    %v771 = vunpack.c.h.b16 %v703
    %v772 = vunpack.c.l.b16 %v704
    %v773 = vunpack.c.h.b16 %v704
    %v774 = vunpack.c.l.b16 %v705
    %v775 = vunpack.c.h.b16 %v705
    %v776 = vunpack.c.l.b16 %v706
    %v777 = vunpack.c.h.b16 %v706
    %v778 = vunpack.c.l.b16 %v707
    %v779 = vunpack.c.h.b16 %v707
    %v780 = vunpack.c.l.b16 %v708
    %v781 = vunpack.c.h.b16 %v708
    %v782 = vunpack.c.l.b16 %v709
    %v783 = vunpack.c.h.b16 %v709
    %v784 = vunpack.c.l.b16 %v710
    %v785 = vunpack.c.h.b16 %v710
    %v786 = vunpack.c.l.b16 %v711
    %v787 = vunpack.c.h.b16 %v711
    %v788 = vunpack.c.l.b16 %v712
    %v789 = vunpack.c.h.b16 %v712
    %v790 = vunpack.c.l.b16 %v713
    %v791 = vunpack.c.h.b16 %v713
    %v792 = vunpack.c.l.b16 %v714
    %v793 = vunpack.c.h.b16 %v714
    %v794 = vunpack.c.l.b16 %v715
    %v795 = vunpack.c.h.b16 %v715
    %v796 = vunpack.c.l.b16 %v716
    %v797 = vunpack.c.h.b16 %v716
    %v798 = vunpack.c.l.b16 %v717
    %v799 = vunpack.c.h.b16 %v717
    %v800 = vunpack.c.l.b16 %v718
    %v801 = vunpack.c.h.b16 %v718
    %v802 = vunpack.c.l.b16 %v719
    %v803 = vunpack.c.h.b16 %v719
    %v804 = vunpack.c.l.b16 %v720
    %v805 = vunpack.c.h.b16 %v720
    %v806 = vunpack.c.l.b16 %v721
    %v807 = vunpack.c.h.b16 %v721
    %v808 = vunpack.c.l.b16 %v722
    %v809 = vunpack.c.h.b16 %v722
    %v810 = vunpack.c.l.b16 %v723
    %v811 = vunpack.c.h.b16 %v723
    %v812 = vunpack.c.l.b16 %v724
    %v813 = vunpack.c.h.b16 %v724
    %v814 = vunpack.c.l.b16 %v725
    %v815 = vunpack.c.h.b16 %v725
    %v816 = vunpack.c.l.b16 %v726
    %v817 = vunpack.c.h.b16 %v726
    %v818 = vunpack.c.l.b16 %v727
    %v819 = vunpack.c.h.b16 %v727
    %v820 = vunpack.c.l.b16 %v728
    %v821 = vunpack.c.h.b16 %v728
    %v822 = vunpack.c.l.b16 %v729
    %v823 = vunpack.c.h.b16 %v729
    %v824 = vunpack.c.l.b16 %v730
    %v825 = vunpack.c.h.b16 %v730
    %v826 = vunpack.c.l.b16 %v731
    %v827 = vunpack.c.h.b16 %v731
    %v828 = vpack.c.b16 %v768, %v764
    %v829 = vpack.c.b16 %v769, %v765
    %v830 = vpack.c.b16 %v770, %v766
    %v831 = vpack.c.b16 %v771, %v767
    %v832 = vpack.c.b16 %v776, %v772
    %v833 = vpack.c.b16 %v777, %v773
    %v834 = vpack.c.b16 %v778, %v774
    %v835 = vpack.c.b16 %v779, %v775
    %v836 = vpack.c.b16 %v784, %v780
    %v837 = vpack.c.b16 %v785, %v781
    %v838 = vpack.c.b16 %v786, %v782
    %v839 = vpack.c.b16 %v787, %v783
    %v840 = vpack.c.b16 %v792, %v788
    %v841 = vpack.c.b16 %v793, %v789
    %v842 = vpack.c.b16 %v794, %v790
    %v843 = vpack.c.b16 %v795, %v791
    %v844 = vpack.c.b16 %v800, %v796
    %v845 = vpack.c.b16 %v801, %v797
    %v846 = vpack.c.b16 %v802, %v798
    %v847 = vpack.c.b16 %v803, %v799
    %v848 = vpack.c.b16 %v808, %v804
    %v849 = vpack.c.b16 %v809, %v805
    %v850 = vpack.c.b16 %v810, %v806
    %v851 = vpack.c.b16 %v811, %v807
    %v852 = vpack.c.b16 %v816, %v812
    %v853 = vpack.c.b16 %v817, %v813
    %v854 = vpack.c.b16 %v818, %v814
    %v855 = vpack.c.b16 %v819, %v815
    %v856 = vpack.c.b16 %v824, %v820
    %v857 = vpack.c.b16 %v825, %v821
    %v858 = vpack.c.b16 %v826, %v822
    %v859 = vpack.c.b16 %v827, %v823
    %892 = vmatprep.subr.bf16.mxu0 %v829
    %893 = vmatpush1.bf16.msra.mxu0 %v828
    %894 = vmatprep.subr.bf16.mxu0 %v833
    %895 = vmatpush1.bf16.msra.mxu0 %v832
    %896 = vmatprep.subr.bf16.mxu0 %v837
    %897 = vmatpush1.bf16.msra.mxu0 %v836
    %898 = vmatprep.subr.bf16.mxu0 %v841
    %899 = vmatpush1.bf16.msra.mxu0 %v840
    %900 = vmatprep.subr.bf16.mxu0 %v845
    %901 = vmatpush1.bf16.msra.mxu0 %v844
    %902 = vmatprep.subr.bf16.mxu0 %v849
    %903 = vmatpush1.bf16.msra.mxu0 %v848
    %904 = vmatprep.subr.bf16.mxu0 %v853
    %905 = vmatpush1.bf16.msra.mxu0 %v852
    %906 = vmatprep.subr.bf16.mxu0 %v857
    %907 = vmatpush1.bf16.msra.mxu0 %v856
    %908 = vmatprep.subr.bf16.mxu0 0
    %909 = vmatpush1.bf16.msra.mxu0 0
    %910 = vmatprep.subr.bf16.mxu0 0
    %911 = vmatpush1.bf16.msra.mxu0 0
    %912 = vmatprep.subr.bf16.mxu0 0
    %913 = vmatpush1.bf16.msra.mxu0 0
    %914 = vmatprep.subr.bf16.mxu0 0
    %915 = vmatpush1.bf16.msra.mxu0 0
    %916 = vmatprep.subr.bf16.mxu0 0
    %917 = vmatpush1.bf16.msra.mxu0 0
    %918 = vmatprep.subr.bf16.mxu0 0
    %919 = vmatpush1.bf16.msra.mxu0 0
    %920 = vmatprep.subr.bf16.mxu0 0
    %921 = vmatpush1.bf16.msra.mxu0 0
    %922 = vmatprep.subr.bf16.mxu0 0
    %923 = vmatpush1.bf16.msra.mxu0 0
    %924 = vmatprep.mubr.bf16.mxu0 0
    %925 = vmatmul.mubr.bf16.gmra.mrb[0].mxu0 %v699
    %v926 = vpop.f32.mrb[0].mxu0
    %v927 = vadd.f32 %v422, %v926
    %v928 = vpop.f32.mrb[0].mxu0
    %v929 = vadd.f32 %v426, %v928
    %v930 = vpop.f32.mrb[0].mxu0
    %v931 = vpop.f32.mrb[0].mxu0
    %932 = vdwg.mxu0
    %933 = vmatprep.subr.bf16.mxu0 %v831
    %934 = vmatpush1.bf16.msra.mxu0 %v830
    %935 = vmatprep.subr.bf16.mxu0 %v835
    %936 = vmatpush1.bf16.msra.mxu0 %v834
    %937 = vmatprep.subr.bf16.mxu0 %v839
    %938 = vmatpush1.bf16.msra.mxu0 %v838
    %939 = vmatprep.subr.bf16.mxu0 %v843
    %940 = vmatpush1.bf16.msra.mxu0 %v842
    %941 = vmatprep.subr.bf16.mxu0 %v847
    %942 = vmatpush1.bf16.msra.mxu0 %v846
    %943 = vmatprep.subr.bf16.mxu0 %v851
    %944 = vmatpush1.bf16.msra.mxu0 %v850
    %945 = vmatprep.subr.bf16.mxu0 %v855
    %946 = vmatpush1.bf16.msra.mxu0 %v854
    %947 = vmatprep.subr.bf16.mxu0 %v859
    %948 = vmatpush1.bf16.msra.mxu0 %v858
    %949 = vmatprep.subr.bf16.mxu0 0
    %950 = vmatpush1.bf16.msra.mxu0 0
    %951 = vmatprep.subr.bf16.mxu0 0
    %952 = vmatpush1.bf16.msra.mxu0 0
    %953 = vmatprep.subr.bf16.mxu0 0
    %954 = vmatpush1.bf16.msra.mxu0 0
    %955 = vmatprep.subr.bf16.mxu0 0
    %956 = vmatpush1.bf16.msra.mxu0 0
    %957 = vmatprep.subr.bf16.mxu0 0
    %958 = vmatpush1.bf16.msra.mxu0 0
    %959 = vmatprep.subr.bf16.mxu0 0
    %960 = vmatpush1.bf16.msra.mxu0 0
    %961 = vmatprep.subr.bf16.mxu0 0
    %962 = vmatpush1.bf16.msra.mxu0 0
    %963 = vmatprep.subr.bf16.mxu0 0
    %964 = vmatpush1.bf16.msra.mxu0 0
    %965 = vmatprep.mubr.bf16.mxu0 0
    %966 = vmatmul.mubr.bf16.gmra.mrb[0].mxu0 %v699
    %v967 = vpop.f32.mrb[0].mxu0
    %v968 = vadd.f32 %v430, %v967
    %v969 = vpop.f32.mrb[0].mxu0
    %v970 = vadd.f32 %v434, %v969
    %v971 = vpop.f32.mrb[0].mxu0
    %v972 = vpop.f32.mrb[0].mxu0
    %973 = vdwg.mxu0
    %v974 = vld [vmem:[#allocation2 + $0x20] sm:$0xff]
    %v975 = vld [vmem:[#allocation2 + $0x28] sm:$0xff]
    %v976 = vld [vmem:[#allocation2 + $0x30] sm:$0xff]
    %v977 = vld [vmem:[#allocation2 + $0x38] sm:$0xff]
    %v978 = vld [vmem:[#allocation3] sm:$0xff]
    %v979 = vld [vmem:[#allocation3 + $0x8] sm:$0xff]
    %v980 = vld [vmem:[#allocation3 + $0x10] sm:$0xff]
    %v981 = vld [vmem:[#allocation3 + $0x18] sm:$0xff]
    %v982 = vld [vmem:[#allocation3 + $0x20] sm:$0xff]
    %v983 = vld [vmem:[#allocation3 + $0x28] sm:$0xff]
    %v984 = vld [vmem:[#allocation3 + $0x30] sm:$0xff]
    %v985 = vld [vmem:[#allocation3 + $0x38] sm:$0xff]
    %v986 = vld [vmem:[#allocation3 + $0x40] sm:$0xff]
    %v987 = vld [vmem:[#allocation3 + $0x48] sm:$0xff]
    %v988 = vld [vmem:[#allocation3 + $0x50] sm:$0xff]
    %v989 = vld [vmem:[#allocation3 + $0x58] sm:$0xff]
    %v990 = vld [vmem:[#allocation3 + $0x60] sm:$0xff]
    %v991 = vld [vmem:[#allocation3 + $0x68] sm:$0xff]
    %v992 = vld [vmem:[#allocation3 + $0x70] sm:$0xff]
    %v993 = vld [vmem:[#allocation3 + $0x78] sm:$0xff]
    %v994 = vld [vmem:[#allocation3 + $0x80] sm:$0xff]
    %v995 = vld [vmem:[#allocation3 + $0x88] sm:$0xff]
    %v996 = vld [vmem:[#allocation3 + $0x90] sm:$0xff]
    %v997 = vld [vmem:[#allocation3 + $0x98] sm:$0xff]
    %v998 = vld [vmem:[#allocation3 + $0xa0] sm:$0xff]
    %v999 = vld [vmem:[#allocation3 + $0xa8] sm:$0xff]
    %v1000 = vld [vmem:[#allocation3 + $0xb0] sm:$0xff]
    %v1001 = vld [vmem:[#allocation3 + $0xb8] sm:$0xff]
    %v1002 = vld [vmem:[#allocation3 + $0xc0] sm:$0xff]
    %v1003 = vld [vmem:[#allocation3 + $0xc8] sm:$0xff]
    %v1004 = vld [vmem:[#allocation3 + $0xd0] sm:$0xff]
    %v1005 = vld [vmem:[#allocation3 + $0xd8] sm:$0xff]
    %v1006 = vld [vmem:[#allocation3 + $0xe0] sm:$0xff]
    %v1007 = vld [vmem:[#allocation3 + $0xe8] sm:$0xff]
    %v1008 = vld [vmem:[#allocation3 + $0xf0] sm:$0xff]
    %v1009 = vld [vmem:[#allocation3 + $0xf8] sm:$0xff]
    %v1042 = vunpack.c.l.b16 %v978
    %v1043 = vunpack.c.h.b16 %v978
    %v1044 = vunpack.c.l.b16 %v979
    %v1045 = vunpack.c.h.b16 %v979
    %v1046 = vunpack.c.l.b16 %v980
    %v1047 = vunpack.c.h.b16 %v980
    %v1048 = vunpack.c.l.b16 %v981
    %v1049 = vunpack.c.h.b16 %v981
    %v1050 = vunpack.c.l.b16 %v982
    %v1051 = vunpack.c.h.b16 %v982
    %v1052 = vunpack.c.l.b16 %v983
    %v1053 = vunpack.c.h.b16 %v983
    %v1054 = vunpack.c.l.b16 %v984
    %v1055 = vunpack.c.h.b16 %v984
    %v1056 = vunpack.c.l.b16 %v985
    %v1057 = vunpack.c.h.b16 %v985
    %v1058 = vunpack.c.l.b16 %v986
    %v1059 = vunpack.c.h.b16 %v986
    %v1060 = vunpack.c.l.b16 %v987
    %v1061 = vunpack.c.h.b16 %v987
    %v1062 = vunpack.c.l.b16 %v988
    %v1063 = vunpack.c.h.b16 %v988
    %v1064 = vunpack.c.l.b16 %v989
    %v1065 = vunpack.c.h.b16 %v989
    %v1066 = vunpack.c.l.b16 %v990
    %v1067 = vunpack.c.h.b16 %v990
    %v1068 = vunpack.c.l.b16 %v991
    %v1069 = vunpack.c.h.b16 %v991
    %v1070 = vunpack.c.l.b16 %v992
    %v1071 = vunpack.c.h.b16 %v992
    %v1072 = vunpack.c.l.b16 %v993
    %v1073 = vunpack.c.h.b16 %v993
    %v1074 = vunpack.c.l.b16 %v994
    %v1075 = vunpack.c.h.b16 %v994
    %v1076 = vunpack.c.l.b16 %v995
    %v1077 = vunpack.c.h.b16 %v995
    %v1078 = vunpack.c.l.b16 %v996
    %v1079 = vunpack.c.h.b16 %v996
    %v1080 = vunpack.c.l.b16 %v997
    %v1081 = vunpack.c.h.b16 %v997
    %v1082 = vunpack.c.l.b16 %v998
    %v1083 = vunpack.c.h.b16 %v998
    %v1084 = vunpack.c.l.b16 %v999
    %v1085 = vunpack.c.h.b16 %v999
    %v1086 = vunpack.c.l.b16 %v1000
    %v1087 = vunpack.c.h.b16 %v1000
    %v1088 = vunpack.c.l.b16 %v1001
    %v1089 = vunpack.c.h.b16 %v1001
    %v1090 = vunpack.c.l.b16 %v1002
    %v1091 = vunpack.c.h.b16 %v1002
    %v1092 = vunpack.c.l.b16 %v1003
    %v1093 = vunpack.c.h.b16 %v1003
    %v1094 = vunpack.c.l.b16 %v1004
    %v1095 = vunpack.c.h.b16 %v1004
    %v1096 = vunpack.c.l.b16 %v1005
    %v1097 = vunpack.c.h.b16 %v1005
    %v1098 = vunpack.c.l.b16 %v1006
    %v1099 = vunpack.c.h.b16 %v1006
    %v1100 = vunpack.c.l.b16 %v1007
    %v1101 = vunpack.c.h.b16 %v1007
    %v1102 = vunpack.c.l.b16 %v1008
    %v1103 = vunpack.c.h.b16 %v1008
    %v1104 = vunpack.c.l.b16 %v1009
    %v1105 = vunpack.c.h.b16 %v1009
    %v1106 = vpack.c.b16 %v1046, %v1042
    %v1107 = vpack.c.b16 %v1047, %v1043
    %v1108 = vpack.c.b16 %v1048, %v1044
    %v1109 = vpack.c.b16 %v1049, %v1045
    %v1110 = vpack.c.b16 %v1054, %v1050
    %v1111 = vpack.c.b16 %v1055, %v1051
    %v1112 = vpack.c.b16 %v1056, %v1052
    %v1113 = vpack.c.b16 %v1057, %v1053
    %v1114 = vpack.c.b16 %v1062, %v1058
    %v1115 = vpack.c.b16 %v1063, %v1059
    %v1116 = vpack.c.b16 %v1064, %v1060
    %v1117 = vpack.c.b16 %v1065, %v1061
    %v1118 = vpack.c.b16 %v1070, %v1066
    %v1119 = vpack.c.b16 %v1071, %v1067
    %v1120 = vpack.c.b16 %v1072, %v1068
    %v1121 = vpack.c.b16 %v1073, %v1069
    %v1122 = vpack.c.b16 %v1078, %v1074
    %v1123 = vpack.c.b16 %v1079, %v1075
    %v1124 = vpack.c.b16 %v1080, %v1076
    %v1125 = vpack.c.b16 %v1081, %v1077
    %v1126 = vpack.c.b16 %v1086, %v1082
    %v1127 = vpack.c.b16 %v1087, %v1083
    %v1128 = vpack.c.b16 %v1088, %v1084
    %v1129 = vpack.c.b16 %v1089, %v1085
    %v1130 = vpack.c.b16 %v1094, %v1090
    %v1131 = vpack.c.b16 %v1095, %v1091
    %v1132 = vpack.c.b16 %v1096, %v1092
    %v1133 = vpack.c.b16 %v1097, %v1093
    %v1134 = vpack.c.b16 %v1102, %v1098
    %v1135 = vpack.c.b16 %v1103, %v1099
    %v1136 = vpack.c.b16 %v1104, %v1100
    %v1137 = vpack.c.b16 %v1105, %v1101
    %1170 = vmatprep.subr.bf16.mxu0 %v1107
    %1171 = vmatpush1.bf16.msra.mxu0 %v1106
    %1172 = vmatprep.subr.bf16.mxu0 %v1111
    %1173 = vmatpush1.bf16.msra.mxu0 %v1110
    %1174 = vmatprep.subr.bf16.mxu0 %v1115
    %1175 = vmatpush1.bf16.msra.mxu0 %v1114
    %1176 = vmatprep.subr.bf16.mxu0 %v1119
    %1177 = vmatpush1.bf16.msra.mxu0 %v1118
    %1178 = vmatprep.subr.bf16.mxu0 %v1123
    %1179 = vmatpush1.bf16.msra.mxu0 %v1122
    %1180 = vmatprep.subr.bf16.mxu0 %v1127
    %1181 = vmatpush1.bf16.msra.mxu0 %v1126
    %1182 = vmatprep.subr.bf16.mxu0 %v1131
    %1183 = vmatpush1.bf16.msra.mxu0 %v1130
    %1184 = vmatprep.subr.bf16.mxu0 %v1135
    %1185 = vmatpush1.bf16.msra.mxu0 %v1134
    %1186 = vmatprep.subr.bf16.mxu0 0
    %1187 = vmatpush1.bf16.msra.mxu0 0
    %1188 = vmatprep.subr.bf16.mxu0 0
    %1189 = vmatpush1.bf16.msra.mxu0 0
    %1190 = vmatprep.subr.bf16.mxu0 0
    %1191 = vmatpush1.bf16.msra.mxu0 0
    %1192 = vmatprep.subr.bf16.mxu0 0
    %1193 = vmatpush1.bf16.msra.mxu0 0
    %1194 = vmatprep.subr.bf16.mxu0 0
    %1195 = vmatpush1.bf16.msra.mxu0 0
    %1196 = vmatprep.subr.bf16.mxu0 0
    %1197 = vmatpush1.bf16.msra.mxu0 0
    %1198 = vmatprep.subr.bf16.mxu0 0
    %1199 = vmatpush1.bf16.msra.mxu0 0
    %1200 = vmatprep.subr.bf16.mxu0 0
    %1201 = vmatpush1.bf16.msra.mxu0 0
    %1202 = vmatprep.mubr.bf16.mxu0 0
    %1203 = vmatmul.mubr.bf16.gmra.mrb[0].mxu0 %v385
    %v1204 = vpop.f32.mrb[0].mxu0
    %v1205 = vadd.f32 %v974, %v1204
    %v1206 = vpop.f32.mrb[0].mxu0
    %v1207 = vadd.f32 %v975, %v1206
    %v1208 = vpop.f32.mrb[0].mxu0
    %v1209 = vpop.f32.mrb[0].mxu0
    %1210 = vdwg.mxu0
    %1211 = vmatprep.subr.bf16.mxu0 %v1109
    %1212 = vmatpush1.bf16.msra.mxu0 %v1108
    %1213 = vmatprep.subr.bf16.mxu0 %v1113
    %1214 = vmatpush1.bf16.msra.mxu0 %v1112
    %1215 = vmatprep.subr.bf16.mxu0 %v1117
    %1216 = vmatpush1.bf16.msra.mxu0 %v1116
    %1217 = vmatprep.subr.bf16.mxu0 %v1121
    %1218 = vmatpush1.bf16.msra.mxu0 %v1120
    %1219 = vmatprep.subr.bf16.mxu0 %v1125
    %1220 = vmatpush1.bf16.msra.mxu0 %v1124
    %1221 = vmatprep.subr.bf16.mxu0 %v1129
    %1222 = vmatpush1.bf16.msra.mxu0 %v1128
    %1223 = vmatprep.subr.bf16.mxu0 %v1133
    %1224 = vmatpush1.bf16.msra.mxu0 %v1132
    %1225 = vmatprep.subr.bf16.mxu0 %v1137
    %1226 = vmatpush1.bf16.msra.mxu0 %v1136
    %1227 = vmatprep.subr.bf16.mxu0 0
    %1228 = vmatpush1.bf16.msra.mxu0 0
    %1229 = vmatprep.subr.bf16.mxu0 0
    %1230 = vmatpush1.bf16.msra.mxu0 0
    %1231 = vmatprep.subr.bf16.mxu0 0
    %1232 = vmatpush1.bf16.msra.mxu0 0
    %1233 = vmatprep.subr.bf16.mxu0 0
    %1234 = vmatpush1.bf16.msra.mxu0 0
    %1235 = vmatprep.subr.bf16.mxu0 0
    %1236 = vmatpush1.bf16.msra.mxu0 0
    %1237 = vmatprep.subr.bf16.mxu0 0
    %1238 = vmatpush1.bf16.msra.mxu0 0
    %1239 = vmatprep.subr.bf16.mxu0 0
    %1240 = vmatpush1.bf16.msra.mxu0 0
    %1241 = vmatprep.subr.bf16.mxu0 0
    %1242 = vmatpush1.bf16.msra.mxu0 0
    %1243 = vmatprep.mubr.bf16.mxu0 0
    %1244 = vmatmul.mubr.bf16.gmra.mrb[0].mxu0 %v385
    %v1245 = vpop.f32.mrb[0].mxu0
    %v1246 = vadd.f32 %v976, %v1245
    %v1247 = vpop.f32.mrb[0].mxu0
    %v1248 = vadd.f32 %v977, %v1247
    %v1249 = vpop.f32.mrb[0].mxu0
    %v1250 = vpop.f32.mrb[0].mxu0
    %1251 = vdwg.mxu0
    %v1252 = vmul.f32 %v1205, 0.5
    %v1253 = vtanh.pop %v1252
    %v1254 = vmul.f32 %v1253, 0.5
    %v1255 = vadd.f32 %v1254, 0.5
    %v1256 = vmul.f32 %v1207, 0.5
    %v1257 = vtanh.pop %v1256
    %v1258 = vmul.f32 %v1257, 0.5
    %v1259 = vadd.f32 %v1258, 0.5
    %v1260 = vtanh.pop %v1246
    %v1261 = vmul.f32 %v1248, 0.5
    %v1262 = vtanh.pop %v1261
    %v1263 = vmul.f32 %v1262, 0.5
    %v1264 = vadd.f32 %v1263, 0.5
    %v1265 = vmul.f32 %v1259, %v382
    %v1266 = vmul.f32 %v1255, %v1260
    %v1267 = vadd.f32 %v1265, %v1266
    %v1268 = vtanh.pop %v1267
    %v1269 = vmul.f32 %v1264, %v1268
    %v1270 = vpack.c.bf16 %v1269, %v1269
    %1271 = vmatprep.subr.bf16.mxu0 %v536
    %1272 = vmatpush1.bf16.msra.mxu0 %v535
    %1273 = vmatprep.subr.bf16.mxu0 %v540
    %1274 = vmatpush1.bf16.msra.mxu0 %v539
    %1275 = vmatprep.subr.bf16.mxu0 %v544
    %1276 = vmatpush1.bf16.msra.mxu0 %v543
    %1277 = vmatprep.subr.bf16.mxu0 %v548
    %1278 = vmatpush1.bf16.msra.mxu0 %v547
    %1279 = vmatprep.subr.bf16.mxu0 %v552
    %1280 = vmatpush1.bf16.msra.mxu0 %v551
    %1281 = vmatprep.subr.bf16.mxu0 %v556
    %1282 = vmatpush1.bf16.msra.mxu0 %v555
    %1283 = vmatprep.subr.bf16.mxu0 %v560
    %1284 = vmatpush1.bf16.msra.mxu0 %v559
    %1285 = vmatprep.subr.bf16.mxu0 %v564
    %1286 = vmatpush1.bf16.msra.mxu0 %v563
    %1287 = vmatprep.subr.bf16.mxu0 0
    %1288 = vmatpush1.bf16.msra.mxu0 0
    %1289 = vmatprep.subr.bf16.mxu0 0
    %1290 = vmatpush1.bf16.msra.mxu0 0
    %1291 = vmatprep.subr.bf16.mxu0 0
    %1292 = vmatpush1.bf16.msra.mxu0 0
    %1293 = vmatprep.subr.bf16.mxu0 0
    %1294 = vmatpush1.bf16.msra.mxu0 0
    %1295 = vmatprep.subr.bf16.mxu0 0
    %1296 = vmatpush1.bf16.msra.mxu0 0
    %1297 = vmatprep.subr.bf16.mxu0 0
    %1298 = vmatpush1.bf16.msra.mxu0 0
    %1299 = vmatprep.subr.bf16.mxu0 0
    %1300 = vmatpush1.bf16.msra.mxu0 0
    %1301 = vmatprep.subr.bf16.mxu0 0
    %1302 = vmatpush1.bf16.msra.mxu0 0
    %1303 = vmatprep.mubr.bf16.mxu0 0
    %1304 = vmatmul.mubr.bf16.gmra.mrb[0].mxu0 %v1270
    %v1305 = vpop.f32.mrb[0].mxu0
    %v1306 = vadd.f32 %v927, %v1305
    %v1307 = vpop.f32.mrb[0].mxu0
    %v1308 = vadd.f32 %v929, %v1307
    %v1309 = vpop.f32.mrb[0].mxu0
    %v1310 = vpop.f32.mrb[0].mxu0
    %1311 = vdwg.mxu0
    %1312 = vmatprep.subr.bf16.mxu0 %v538
    %1313 = vmatpush1.bf16.msra.mxu0 %v537
    %1314 = vmatprep.subr.bf16.mxu0 %v542
    %1315 = vmatpush1.bf16.msra.mxu0 %v541
    %1316 = vmatprep.subr.bf16.mxu0 %v546
    %1317 = vmatpush1.bf16.msra.mxu0 %v545
    %1318 = vmatprep.subr.bf16.mxu0 %v550
    %1319 = vmatpush1.bf16.msra.mxu0 %v549
    %1320 = vmatprep.subr.bf16.mxu0 %v554
    %1321 = vmatpush1.bf16.msra.mxu0 %v553
    %1322 = vmatprep.subr.bf16.mxu0 %v558
    %1323 = vmatpush1.bf16.msra.mxu0 %v557
    %1324 = vmatprep.subr.bf16.mxu0 %v562
    %1325 = vmatpush1.bf16.msra.mxu0 %v561
    %1326 = vmatprep.subr.bf16.mxu0 %v566
    %1327 = vmatpush1.bf16.msra.mxu0 %v565
    %1328 = vmatprep.subr.bf16.mxu0 0
    %1329 = vmatpush1.bf16.msra.mxu0 0
    %1330 = vmatprep.subr.bf16.mxu0 0
    %1331 = vmatpush1.bf16.msra.mxu0 0
    %1332 = vmatprep.subr.bf16.mxu0 0
    %1333 = vmatpush1.bf16.msra.mxu0 0
    %1334 = vmatprep.subr.bf16.mxu0 0
    %1335 = vmatpush1.bf16.msra.mxu0 0
    %1336 = vmatprep.subr.bf16.mxu0 0
    %1337 = vmatpush1.bf16.msra.mxu0 0
    %1338 = vmatprep.subr.bf16.mxu0 0
    %1339 = vmatpush1.bf16.msra.mxu0 0
    %1340 = vmatprep.subr.bf16.mxu0 0
    %1341 = vmatpush1.bf16.msra.mxu0 0
    %1342 = vmatprep.subr.bf16.mxu0 0
    %1343 = vmatpush1.bf16.msra.mxu0 0
    %1344 = vmatprep.mubr.bf16.mxu0 0
    %1345 = vmatmul.mubr.bf16.gmra.mrb[0].mxu0 %v1270
    %v1346 = vpop.f32.mrb[0].mxu0
    %v1347 = vadd.f32 %v968, %v1346
    %v1348 = vpop.f32.mrb[0].mxu0
    %v1349 = vadd.f32 %v970, %v1348
    %v1350 = vpop.f32.mrb[0].mxu0
    %v1351 = vpop.f32.mrb[0].mxu0
    %1352 = vdwg.mxu0
    %v1353 = vmul.f32 %v1306, 0.5
    %v1354 = vtanh.pop %v1353
    %v1355 = vmul.f32 %v1354, 0.5
    %v1356 = vadd.f32 %v1355, 0.5
    %v1357 = vmul.f32 %v1308, 0.5
    %v1358 = vtanh.pop %v1357
    %v1359 = vmul.f32 %v1358, 0.5
    %v1360 = vadd.f32 %v1359, 0.5
    %v1361 = vtanh.pop %v1347
    %v1362 = vmul.f32 %v1349, 0.5
    %v1363 = vtanh.pop %v1362
    %v1364 = vmul.f32 %v1363, 0.5
    %v1365 = vadd.f32 %v1364, 0.5
    %v1366 = vmul.f32 %v1360, %v696
    %v1367 = vmul.f32 %v1356, %v1361
    %v1368 = vadd.f32 %v1366, %v1367
    %v1369 = vtanh.pop %v1368
    %v1370 = vmul.f32 %v1365, %v1369
    %v1371 = vpack.c.bf16 %v1370, %v1370
    %1372 = vmatprep.subr.bf16.mxu0 %v829
    %1373 = vmatpush1.bf16.msra.mxu0 %v828
    %1374 = vmatprep.subr.bf16.mxu0 %v833
    %1375 = vmatpush1.bf16.msra.mxu0 %v832
    %1376 = vmatprep.subr.bf16.mxu0 %v837
    %1377 = vmatpush1.bf16.msra.mxu0 %v836
    %1378 = vmatprep.subr.bf16.mxu0 %v841
    %1379 = vmatpush1.bf16.msra.mxu0 %v840
    %1380 = vmatprep.subr.bf16.mxu0 %v845
    %1381 = vmatpush1.bf16.msra.mxu0 %v844
    %1382 = vmatprep.subr.bf16.mxu0 %v849
    %1383 = vmatpush1.bf16.msra.mxu0 %v848
    %1384 = vmatprep.subr.bf16.mxu0 %v853
    %1385 = vmatpush1.bf16.msra.mxu0 %v852
    %1386 = vmatprep.subr.bf16.mxu0 %v857
    %1387 = vmatpush1.bf16.msra.mxu0 %v856
    %1388 = vmatprep.subr.bf16.mxu0 0
    %1389 = vmatpush1.bf16.msra.mxu0 0
    %1390 = vmatprep.subr.bf16.mxu0 0
    %1391 = vmatpush1.bf16.msra.mxu0 0
    %1392 = vmatprep.subr.bf16.mxu0 0
    %1393 = vmatpush1.bf16.msra.mxu0 0
    %1394 = vmatprep.subr.bf16.mxu0 0
    %1395 = vmatpush1.bf16.msra.mxu0 0
    %1396 = vmatprep.subr.bf16.mxu0 0
    %1397 = vmatpush1.bf16.msra.mxu0 0
    %1398 = vmatprep.subr.bf16.mxu0 0
    %1399 = vmatpush1.bf16.msra.mxu0 0
    %1400 = vmatprep.subr.bf16.mxu0 0
    %1401 = vmatpush1.bf16.msra.mxu0 0
    %1402 = vmatprep.subr.bf16.mxu0 0
    %1403 = vmatpush1.bf16.msra.mxu0 0
    %1404 = vmatprep.mubr.bf16.mxu0 0
    %1405 = vmatmul.mubr.bf16.gmra.mrb[0].mxu0 %v1371
    %v1406 = vpop.f32.mrb[0].mxu0
    %v1407 = vadd.f32 %v422, %v1406
    %v1408 = vpop.f32.mrb[0].mxu0
    %v1409 = vadd.f32 %v426, %v1408
    %v1410 = vpop.f32.mrb[0].mxu0
    %v1411 = vpop.f32.mrb[0].mxu0
    %1412 = vdwg.mxu0
    %1413 = vmatprep.subr.bf16.mxu0 %v831
    %1414 = vmatpush1.bf16.msra.mxu0 %v830
    %1415 = vmatprep.subr.bf16.mxu0 %v835
    %1416 = vmatpush1.bf16.msra.mxu0 %v834
    %1417 = vmatprep.subr.bf16.mxu0 %v839
    %1418 = vmatpush1.bf16.msra.mxu0 %v838
    %1419 = vmatprep.subr.bf16.mxu0 %v843
    %1420 = vmatpush1.bf16.msra.mxu0 %v842
    %1421 = vmatprep.subr.bf16.mxu0 %v847
    %1422 = vmatpush1.bf16.msra.mxu0 %v846
    %1423 = vmatprep.subr.bf16.mxu0 %v851
    %1424 = vmatpush1.bf16.msra.mxu0 %v850
    %1425 = vmatprep.subr.bf16.mxu0 %v855
    %1426 = vmatpush1.bf16.msra.mxu0 %v854
    %1427 = vmatprep.subr.bf16.mxu0 %v859
    %1428 = vmatpush1.bf16.msra.mxu0 %v858
    %1429 = vmatprep.subr.bf16.mxu0 0
    %1430 = vmatpush1.bf16.msra.mxu0 0
    %1431 = vmatprep.subr.bf16.mxu0 0
    %1432 = vmatpush1.bf16.msra.mxu0 0
    %1433 = vmatprep.subr.bf16.mxu0 0
    %1434 = vmatpush1.bf16.msra.mxu0 0
    %1435 = vmatprep.subr.bf16.mxu0 0
    %1436 = vmatpush1.bf16.msra.mxu0 0
    %1437 = vmatprep.subr.bf16.mxu0 0
    %1438 = vmatpush1.bf16.msra.mxu0 0
    %1439 = vmatprep.subr.bf16.mxu0 0
    %1440 = vmatpush1.bf16.msra.mxu0 0
    %1441 = vmatprep.subr.bf16.mxu0 0
    %1442 = vmatpush1.bf16.msra.mxu0 0
    %1443 = vmatprep.subr.bf16.mxu0 0
    %1444 = vmatpush1.bf16.msra.mxu0 0
    %1445 = vmatprep.mubr.bf16.mxu0 0
    %1446 = vmatmul.mubr.bf16.gmra.mrb[0].mxu0 %v1371
    %v1447 = vpop.f32.mrb[0].mxu0
    %v1448 = vadd.f32 %v430, %v1447
    %v1449 = vpop.f32.mrb[0].mxu0
    %v1450 = vadd.f32 %v434, %v1449
    %v1451 = vpop.f32.mrb[0].mxu0
    %v1452 = vpop.f32.mrb[0].mxu0
    %1453 = vdwg.mxu0
    %v1454 = vld [vmem:[#allocation2 + $0x40] sm:$0xff]
    %v1455 = vld [vmem:[#allocation2 + $0x48] sm:$0xff]
    %v1456 = vld [vmem:[#allocation2 + $0x50] sm:$0xff]
    %v1457 = vld [vmem:[#allocation2 + $0x58] sm:$0xff]
    %1458 = vmatprep.subr.bf16.mxu0 %v1107
    %1459 = vmatpush1.bf16.msra.mxu0 %v1106
    %1460 = vmatprep.subr.bf16.mxu0 %v1111
    %1461 = vmatpush1.bf16.msra.mxu0 %v1110
    %1462 = vmatprep.subr.bf16.mxu0 %v1115
    %1463 = vmatpush1.bf16.msra.mxu0 %v1114
    %1464 = vmatprep.subr.bf16.mxu0 %v1119
    %1465 = vmatpush1.bf16.msra.mxu0 %v1118
    %1466 = vmatprep.subr.bf16.mxu0 %v1123
    %1467 = vmatpush1.bf16.msra.mxu0 %v1122
    %1468 = vmatprep.subr.bf16.mxu0 %v1127
    %1469 = vmatpush1.bf16.msra.mxu0 %v1126
    %1470 = vmatprep.subr.bf16.mxu0 %v1131
    %1471 = vmatpush1.bf16.msra.mxu0 %v1130
    %1472 = vmatprep.subr.bf16.mxu0 %v1135
    %1473 = vmatpush1.bf16.msra.mxu0 %v1134
    %1474 = vmatprep.subr.bf16.mxu0 0
    %1475 = vmatpush1.bf16.msra.mxu0 0
    %1476 = vmatprep.subr.bf16.mxu0 0
    %1477 = vmatpush1.bf16.msra.mxu0 0
    %1478 = vmatprep.subr.bf16.mxu0 0
    %1479 = vmatpush1.bf16.msra.mxu0 0
    %1480 = vmatprep.subr.bf16.mxu0 0
    %1481 = vmatpush1.bf16.msra.mxu0 0
    %1482 = vmatprep.subr.bf16.mxu0 0
    %1483 = vmatpush1.bf16.msra.mxu0 0
    %1484 = vmatprep.subr.bf16.mxu0 0
    %1485 = vmatpush1.bf16.msra.mxu0 0
    %1486 = vmatprep.subr.bf16.mxu0 0
    %1487 = vmatpush1.bf16.msra.mxu0 0
    %1488 = vmatprep.subr.bf16.mxu0 0
    %1489 = vmatpush1.bf16.msra.mxu0 0
    %1490 = vmatprep.mubr.bf16.mxu0 0
    %1491 = vmatmul.mubr.bf16.gmra.mrb[0].mxu0 %v1270
    %v1492 = vpop.f32.mrb[0].mxu0
    %v1493 = vadd.f32 %v1454, %v1492
    %v1494 = vpop.f32.mrb[0].mxu0
    %v1495 = vadd.f32 %v1455, %v1494
    %v1496 = vpop.f32.mrb[0].mxu0
    %v1497 = vpop.f32.mrb[0].mxu0
    %1498 = vdwg.mxu0
    %1499 = vmatprep.subr.bf16.mxu0 %v1109
    %1500 = vmatpush1.bf16.msra.mxu0 %v1108
    %1501 = vmatprep.subr.bf16.mxu0 %v1113
    %1502 = vmatpush1.bf16.msra.mxu0 %v1112
    %1503 = vmatprep.subr.bf16.mxu0 %v1117
    %1504 = vmatpush1.bf16.msra.mxu0 %v1116
    %1505 = vmatprep.subr.bf16.mxu0 %v1121
    %1506 = vmatpush1.bf16.msra.mxu0 %v1120
    %1507 = vmatprep.subr.bf16.mxu0 %v1125
    %1508 = vmatpush1.bf16.msra.mxu0 %v1124
    %1509 = vmatprep.subr.bf16.mxu0 %v1129
    %1510 = vmatpush1.bf16.msra.mxu0 %v1128
    %1511 = vmatprep.subr.bf16.mxu0 %v1133
    %1512 = vmatpush1.bf16.msra.mxu0 %v1132
    %1513 = vmatprep.subr.bf16.mxu0 %v1137
    %1514 = vmatpush1.bf16.msra.mxu0 %v1136
    %1515 = vmatprep.subr.bf16.mxu0 0
    %1516 = vmatpush1.bf16.msra.mxu0 0
    %1517 = vmatprep.subr.bf16.mxu0 0
    %1518 = vmatpush1.bf16.msra.mxu0 0
    %1519 = vmatprep.subr.bf16.mxu0 0
    %1520 = vmatpush1.bf16.msra.mxu0 0
    %1521 = vmatprep.subr.bf16.mxu0 0
    %1522 = vmatpush1.bf16.msra.mxu0 0
    %1523 = vmatprep.subr.bf16.mxu0 0
    %1524 = vmatpush1.bf16.msra.mxu0 0
    %1525 = vmatprep.subr.bf16.mxu0 0
    %1526 = vmatpush1.bf16.msra.mxu0 0
    %1527 = vmatprep.subr.bf16.mxu0 0
    %1528 = vmatpush1.bf16.msra.mxu0 0
    %1529 = vmatprep.subr.bf16.mxu0 0
    %1530 = vmatpush1.bf16.msra.mxu0 0
    %1531 = vmatprep.mubr.bf16.mxu0 0
    %1532 = vmatmul.mubr.bf16.gmra.mrb[0].mxu0 %v1270
    %v1533 = vpop.f32.mrb[0].mxu0
    %v1534 = vadd.f32 %v1456, %v1533
    %v1535 = vpop.f32.mrb[0].mxu0
    %v1536 = vadd.f32 %v1457, %v1535
    %v1537 = vpop.f32.mrb[0].mxu0
    %v1538 = vpop.f32.mrb[0].mxu0
    %1539 = vdwg.mxu0
    %v1540 = vmul.f32 %v1493, 0.5
    %v1541 = vtanh.pop %v1540
    %v1542 = vmul.f32 %v1541, 0.5
    %v1543 = vadd.f32 %v1542, 0.5
    %v1544 = vmul.f32 %v1495, 0.5
    %v1545 = vtanh.pop %v1544
    %v1546 = vmul.f32 %v1545, 0.5
    %v1547 = vadd.f32 %v1546, 0.5
    %v1548 = vtanh.pop %v1534
    %v1549 = vmul.f32 %v1536, 0.5
    %v1550 = vtanh.pop %v1549
    %v1551 = vmul.f32 %v1550, 0.5
    %v1552 = vadd.f32 %v1551, 0.5
    %v1553 = vmul.f32 %v1547, %v1267
    %v1554 = vmul.f32 %v1543, %v1548
    %v1555 = vadd.f32 %v1553, %v1554
    %v1556 = vtanh.pop %v1555
    %v1557 = vmul.f32 %v1552, %v1556
    %v1558 = vpack.c.bf16 %v1557, %v1557
    %1559 = vmatprep.subr.bf16.mxu0 %v536
    %1560 = vmatpush1.bf16.msra.mxu0 %v535
    %1561 = vmatprep.subr.bf16.mxu0 %v540
    %1562 = vmatpush1.bf16.msra.mxu0 %v539
    %1563 = vmatprep.subr.bf16.mxu0 %v544
    %1564 = vmatpush1.bf16.msra.mxu0 %v543
    %1565 = vmatprep.subr.bf16.mxu0 %v548
    %1566 = vmatpush1.bf16.msra.mxu0 %v547
    %1567 = vmatprep.subr.bf16.mxu0 %v552
    %1568 = vmatpush1.bf16.msra.mxu0 %v551
    %1569 = vmatprep.subr.bf16.mxu0 %v556
    %1570 = vmatpush1.bf16.msra.mxu0 %v555
    %1571 = vmatprep.subr.bf16.mxu0 %v560
    %1572 = vmatpush1.bf16.msra.mxu0 %v559
    %1573 = vmatprep.subr.bf16.mxu0 %v564
    %1574 = vmatpush1.bf16.msra.mxu0 %v563
    %1575 = vmatprep.subr.bf16.mxu0 0
    %1576 = vmatpush1.bf16.msra.mxu0 0
    %1577 = vmatprep.subr.bf16.mxu0 0
    %1578 = vmatpush1.bf16.msra.mxu0 0
    %1579 = vmatprep.subr.bf16.mxu0 0
    %1580 = vmatpush1.bf16.msra.mxu0 0
    %1581 = vmatprep.subr.bf16.mxu0 0
    %1582 = vmatpush1.bf16.msra.mxu0 0
    %1583 = vmatprep.subr.bf16.mxu0 0
    %1584 = vmatpush1.bf16.msra.mxu0 0
    %1585 = vmatprep.subr.bf16.mxu0 0
    %1586 = vmatpush1.bf16.msra.mxu0 0
    %1587 = vmatprep.subr.bf16.mxu0 0
    %1588 = vmatpush1.bf16.msra.mxu0 0
    %1589 = vmatprep.subr.bf16.mxu0 0
    %1590 = vmatpush1.bf16.msra.mxu0 0
    %1591 = vmatprep.mubr.bf16.mxu0 0
    %1592 = vmatmul.mubr.bf16.gmra.mrb[0].mxu0 %v1558
    %v1593 = vpop.f32.mrb[0].mxu0
    %v1594 = vadd.f32 %v1407, %v1593
    %v1595 = vpop.f32.mrb[0].mxu0
    %v1596 = vadd.f32 %v1409, %v1595
    %v1597 = vpop.f32.mrb[0].mxu0
    %v1598 = vpop.f32.mrb[0].mxu0
    %1599 = vdwg.mxu0
    %1600 = vmatprep.subr.bf16.mxu0 %v538
    %1601 = vmatpush1.bf16.msra.mxu0 %v537
    %1602 = vmatprep.subr.bf16.mxu0 %v542
    %1603 = vmatpush1.bf16.msra.mxu0 %v541
    %1604 = vmatprep.subr.bf16.mxu0 %v546
    %1605 = vmatpush1.bf16.msra.mxu0 %v545
    %1606 = vmatprep.subr.bf16.mxu0 %v550
    %1607 = vmatpush1.bf16.msra.mxu0 %v549
    %1608 = vmatprep.subr.bf16.mxu0 %v554
    %1609 = vmatpush1.bf16.msra.mxu0 %v553
    %1610 = vmatprep.subr.bf16.mxu0 %v558
    %1611 = vmatpush1.bf16.msra.mxu0 %v557
    %1612 = vmatprep.subr.bf16.mxu0 %v562
    %1613 = vmatpush1.bf16.msra.mxu0 %v561
    %1614 = vmatprep.subr.bf16.mxu0 %v566
    %1615 = vmatpush1.bf16.msra.mxu0 %v565
    %1616 = vmatprep.subr.bf16.mxu0 0
    %1617 = vmatpush1.bf16.msra.mxu0 0
    %1618 = vmatprep.subr.bf16.mxu0 0
    %1619 = vmatpush1.bf16.msra.mxu0 0
    %1620 = vmatprep.subr.bf16.mxu0 0
    %1621 = vmatpush1.bf16.msra.mxu0 0
    %1622 = vmatprep.subr.bf16.mxu0 0
    %1623 = vmatpush1.bf16.msra.mxu0 0
    %1624 = vmatprep.subr.bf16.mxu0 0
    %1625 = vmatpush1.bf16.msra.mxu0 0
    %1626 = vmatprep.subr.bf16.mxu0 0
    %1627 = vmatpush1.bf16.msra.mxu0 0
    %1628 = vmatprep.subr.bf16.mxu0 0
    %1629 = vmatpush1.bf16.msra.mxu0 0
    %1630 = vmatprep.subr.bf16.mxu0 0
    %1631 = vmatpush1.bf16.msra.mxu0 0
    %1632 = vmatprep.mubr.bf16.mxu0 0
    %1633 = vmatmul.mubr.bf16.gmra.mrb[0].mxu0 %v1558
    %v1634 = vpop.f32.mrb[0].mxu0
    %v1635 = vadd.f32 %v1448, %v1634
    %v1636 = vpop.f32.mrb[0].mxu0
    %v1637 = vadd.f32 %v1450, %v1636
    %v1638 = vpop.f32.mrb[0].mxu0
    %v1639 = vpop.f32.mrb[0].mxu0
    %1640 = vdwg.mxu0
    %v1641 = vmul.f32 %v1594, 0.5
    %v1642 = vtanh.pop %v1641
    %v1643 = vmul.f32 %v1642, 0.5
    %v1644 = vadd.f32 %v1643, 0.5
    %v1645 = vmul.f32 %v1596, 0.5
    %v1646 = vtanh.pop %v1645
    %v1647 = vmul.f32 %v1646, 0.5
    %v1648 = vadd.f32 %v1647, 0.5
    %v1649 = vtanh.pop %v1635
    %v1650 = vmul.f32 %v1637, 0.5
    %v1651 = vtanh.pop %v1650
    %v1652 = vmul.f32 %v1651, 0.5
    %v1653 = vadd.f32 %v1652, 0.5
    %v1654 = vmul.f32 %v1648, %v1368
    %v1655 = vmul.f32 %v1644, %v1649
    %v1656 = vadd.f32 %v1654, %v1655
    %v1657 = vtanh.pop %v1656
    %v1658 = vmul.f32 %v1653, %v1657
    %v1659 = vpack.c.bf16 %v1658, %v1658
    %1660 = vmatprep.subr.bf16.mxu0 %v829
    %1661 = vmatpush1.bf16.msra.mxu0 %v828
    %1662 = vmatprep.subr.bf16.mxu0 %v833
    %1663 = vmatpush1.bf16.msra.mxu0 %v832
    %1664 = vmatprep.subr.bf16.mxu0 %v837
    %1665 = vmatpush1.bf16.msra.mxu0 %v836
    %1666 = vmatprep.subr.bf16.mxu0 %v841
    %1667 = vmatpush1.bf16.msra.mxu0 %v840
    %1668 = vmatprep.subr.bf16.mxu0 %v845
    %1669 = vmatpush1.bf16.msra.mxu0 %v844
    %1670 = vmatprep.subr.bf16.mxu0 %v849
    %1671 = vmatpush1.bf16.msra.mxu0 %v848
    %1672 = vmatprep.subr.bf16.mxu0 %v853
    %1673 = vmatpush1.bf16.msra.mxu0 %v852
    %1674 = vmatprep.subr.bf16.mxu0 %v857
    %1675 = vmatpush1.bf16.msra.mxu0 %v856
    %1676 = vmatprep.subr.bf16.mxu0 0
    %1677 = vmatpush1.bf16.msra.mxu0 0
    %1678 = vmatprep.subr.bf16.mxu0 0
    %1679 = vmatpush1.bf16.msra.mxu0 0
    %1680 = vmatprep.subr.bf16.mxu0 0
    %1681 = vmatpush1.bf16.msra.mxu0 0
    %1682 = vmatprep.subr.bf16.mxu0 0
    %1683 = vmatpush1.bf16.msra.mxu0 0
    %1684 = vmatprep.subr.bf16.mxu0 0
    %1685 = vmatpush1.bf16.msra.mxu0 0
    %1686 = vmatprep.subr.bf16.mxu0 0
    %1687 = vmatpush1.bf16.msra.mxu0 0
    %1688 = vmatprep.subr.bf16.mxu0 0
    %1689 = vmatpush1.bf16.msra.mxu0 0
    %1690 = vmatprep.subr.bf16.mxu0 0
    %1691 = vmatpush1.bf16.msra.mxu0 0
    %1692 = vmatprep.mubr.bf16.mxu0 0
    %1693 = vmatmul.mubr.bf16.gmra.mrb[0].mxu0 %v1659
    %v1694 = vpop.f32.mrb[0].mxu0
    %v1695 = vadd.f32 %v422, %v1694
    %v1696 = vpop.f32.mrb[0].mxu0
    %v1697 = vadd.f32 %v426, %v1696
    %v1698 = vpop.f32.mrb[0].mxu0
    %v1699 = vpop.f32.mrb[0].mxu0
    %1700 = vdwg.mxu0
    %1701 = vmatprep.subr.bf16.mxu0 %v831
    %1702 = vmatpush1.bf16.msra.mxu0 %v830
    %1703 = vmatprep.subr.bf16.mxu0 %v835
    %1704 = vmatpush1.bf16.msra.mxu0 %v834
    %1705 = vmatprep.subr.bf16.mxu0 %v839
    %1706 = vmatpush1.bf16.msra.mxu0 %v838
    %1707 = vmatprep.subr.bf16.mxu0 %v843
    %1708 = vmatpush1.bf16.msra.mxu0 %v842
    %1709 = vmatprep.subr.bf16.mxu0 %v847
    %1710 = vmatpush1.bf16.msra.mxu0 %v846
    %1711 = vmatprep.subr.bf16.mxu0 %v851
    %1712 = vmatpush1.bf16.msra.mxu0 %v850
    %1713 = vmatprep.subr.bf16.mxu0 %v855
    %1714 = vmatpush1.bf16.msra.mxu0 %v854
    %1715 = vmatprep.subr.bf16.mxu0 %v859
    %1716 = vmatpush1.bf16.msra.mxu0 %v858
    %1717 = vmatprep.subr.bf16.mxu0 0
    %1718 = vmatpush1.bf16.msra.mxu0 0
    %1719 = vmatprep.subr.bf16.mxu0 0
    %1720 = vmatpush1.bf16.msra.mxu0 0
    %1721 = vmatprep.subr.bf16.mxu0 0
    %1722 = vmatpush1.bf16.msra.mxu0 0
    %1723 = vmatprep.subr.bf16.mxu0 0
    %1724 = vmatpush1.bf16.msra.mxu0 0
    %1725 = vmatprep.subr.bf16.mxu0 0
    %1726 = vmatpush1.bf16.msra.mxu0 0
    %1727 = vmatprep.subr.bf16.mxu0 0
    %1728 = vmatpush1.bf16.msra.mxu0 0
    %1729 = vmatprep.subr.bf16.mxu0 0
    %1730 = vmatpush1.bf16.msra.mxu0 0
    %1731 = vmatprep.subr.bf16.mxu0 0
    %1732 = vmatpush1.bf16.msra.mxu0 0
    %1733 = vmatprep.mubr.bf16.mxu0 0
    %1734 = vmatmul.mubr.bf16.gmra.mrb[0].mxu0 %v1659
    %v1735 = vpop.f32.mrb[0].mxu0
    %v1736 = vadd.f32 %v430, %v1735
    %v1737 = vpop.f32.mrb[0].mxu0
    %v1738 = vadd.f32 %v434, %v1737
    %v1739 = vpop.f32.mrb[0].mxu0
    %v1740 = vpop.f32.mrb[0].mxu0
    %1741 = vdwg.mxu0
    %v1742 = vld [vmem:[#allocation2 + $0x60] sm:$0xff]
    %v1743 = vld [vmem:[#allocation2 + $0x68] sm:$0xff]
    %v1744 = vld [vmem:[#allocation2 + $0x70] sm:$0xff]
    %v1745 = vld [vmem:[#allocation2 + $0x78] sm:$0xff]
    %1746 = vmatprep.subr.bf16.mxu0 %v1107
    %1747 = vmatpush1.bf16.msra.mxu0 %v1106
    %1748 = vmatprep.subr.bf16.mxu0 %v1111
    %1749 = vmatpush1.bf16.msra.mxu0 %v1110
    %1750 = vmatprep.subr.bf16.mxu0 %v1115
    %1751 = vmatpush1.bf16.msra.mxu0 %v1114
    %1752 = vmatprep.subr.bf16.mxu0 %v1119
    %1753 = vmatpush1.bf16.msra.mxu0 %v1118
    %1754 = vmatprep.subr.bf16.mxu0 %v1123
    %1755 = vmatpush1.bf16.msra.mxu0 %v1122
    %1756 = vmatprep.subr.bf16.mxu0 %v1127
    %1757 = vmatpush1.bf16.msra.mxu0 %v1126
    %1758 = vmatprep.subr.bf16.mxu0 %v1131
    %1759 = vmatpush1.bf16.msra.mxu0 %v1130
    %1760 = vmatprep.subr.bf16.mxu0 %v1135
    %1761 = vmatpush1.bf16.msra.mxu0 %v1134
    %1762 = vmatprep.subr.bf16.mxu0 0
    %1763 = vmatpush1.bf16.msra.mxu0 0
    %1764 = vmatprep.subr.bf16.mxu0 0
    %1765 = vmatpush1.bf16.msra.mxu0 0
    %1766 = vmatprep.subr.bf16.mxu0 0
    %1767 = vmatpush1.bf16.msra.mxu0 0
    %1768 = vmatprep.subr.bf16.mxu0 0
    %1769 = vmatpush1.bf16.msra.mxu0 0
    %1770 = vmatprep.subr.bf16.mxu0 0
    %1771 = vmatpush1.bf16.msra.mxu0 0
    %1772 = vmatprep.subr.bf16.mxu0 0
    %1773 = vmatpush1.bf16.msra.mxu0 0
    %1774 = vmatprep.subr.bf16.mxu0 0
    %1775 = vmatpush1.bf16.msra.mxu0 0
    %1776 = vmatprep.subr.bf16.mxu0 0
    %1777 = vmatpush1.bf16.msra.mxu0 0
    %1778 = vmatprep.mubr.bf16.mxu0 0
    %1779 = vmatmul.mubr.bf16.gmra.mrb[0].mxu0 %v1558
    %v1780 = vpop.f32.mrb[0].mxu0
    %v1781 = vadd.f32 %v1742, %v1780
    %v1782 = vpop.f32.mrb[0].mxu0
    %v1783 = vadd.f32 %v1743, %v1782
    %v1784 = vpop.f32.mrb[0].mxu0
    %v1785 = vpop.f32.mrb[0].mxu0
    %1786 = vdwg.mxu0
    %1787 = vmatprep.subr.bf16.mxu0 %v1109
    %1788 = vmatpush1.bf16.msra.mxu0 %v1108
    %1789 = vmatprep.subr.bf16.mxu0 %v1113
    %1790 = vmatpush1.bf16.msra.mxu0 %v1112
    %1791 = vmatprep.subr.bf16.mxu0 %v1117
    %1792 = vmatpush1.bf16.msra.mxu0 %v1116
    %1793 = vmatprep.subr.bf16.mxu0 %v1121
    %1794 = vmatpush1.bf16.msra.mxu0 %v1120
    %1795 = vmatprep.subr.bf16.mxu0 %v1125
    %1796 = vmatpush1.bf16.msra.mxu0 %v1124
    %1797 = vmatprep.subr.bf16.mxu0 %v1129
    %1798 = vmatpush1.bf16.msra.mxu0 %v1128
    %1799 = vmatprep.subr.bf16.mxu0 %v1133
    %1800 = vmatpush1.bf16.msra.mxu0 %v1132
    %1801 = vmatprep.subr.bf16.mxu0 %v1137
    %1802 = vmatpush1.bf16.msra.mxu0 %v1136
    %1803 = vmatprep.subr.bf16.mxu0 0
    %1804 = vmatpush1.bf16.msra.mxu0 0
    %1805 = vmatprep.subr.bf16.mxu0 0
    %1806 = vmatpush1.bf16.msra.mxu0 0
    %1807 = vmatprep.subr.bf16.mxu0 0
    %1808 = vmatpush1.bf16.msra.mxu0 0
    %1809 = vmatprep.subr.bf16.mxu0 0
    %1810 = vmatpush1.bf16.msra.mxu0 0
    %1811 = vmatprep.subr.bf16.mxu0 0
    %1812 = vmatpush1.bf16.msra.mxu0 0
    %1813 = vmatprep.subr.bf16.mxu0 0
    %1814 = vmatpush1.bf16.msra.mxu0 0
    %1815 = vmatprep.subr.bf16.mxu0 0
    %1816 = vmatpush1.bf16.msra.mxu0 0
    %1817 = vmatprep.subr.bf16.mxu0 0
    %1818 = vmatpush1.bf16.msra.mxu0 0
    %1819 = vmatprep.mubr.bf16.mxu0 0
    %1820 = vmatmul.mubr.bf16.gmra.mrb[0].mxu0 %v1558
    %v1821 = vpop.f32.mrb[0].mxu0
    %v1822 = vadd.f32 %v1744, %v1821
    %v1823 = vpop.f32.mrb[0].mxu0
    %v1824 = vadd.f32 %v1745, %v1823
    %v1825 = vpop.f32.mrb[0].mxu0
    %v1826 = vpop.f32.mrb[0].mxu0
    %1827 = vdwg.mxu0
    %v1828 = vmul.f32 %v1781, 0.5
    %v1829 = vtanh.pop %v1828
    %v1830 = vmul.f32 %v1829, 0.5
    %v1831 = vadd.f32 %v1830, 0.5
    %v1832 = vmul.f32 %v1783, 0.5
    %v1833 = vtanh.pop %v1832
    %v1834 = vmul.f32 %v1833, 0.5
    %v1835 = vadd.f32 %v1834, 0.5
    %v1836 = vtanh.pop %v1822
    %v1837 = vmul.f32 %v1824, 0.5
    %v1838 = vtanh.pop %v1837
    %v1839 = vmul.f32 %v1838, 0.5
    %v1840 = vadd.f32 %v1839, 0.5
    %v1841 = vmul.f32 %v1835, %v1555
    %v1842 = vmul.f32 %v1831, %v1836
    %v1843 = vadd.f32 %v1841, %v1842
    %v1844 = vtanh.pop %v1843
    %v1845 = vmul.f32 %v1840, %v1844
    %v1846 = vpack.c.bf16 %v1845, %v1845
    %1847 = vmatprep.subr.bf16.mxu0 %v536
    %1848 = vmatpush1.bf16.msra.mxu0 %v535
    %1849 = vmatprep.subr.bf16.mxu0 %v540
    %1850 = vmatpush1.bf16.msra.mxu0 %v539
    %1851 = vmatprep.subr.bf16.mxu0 %v544
    %1852 = vmatpush1.bf16.msra.mxu0 %v543
    %1853 = vmatprep.subr.bf16.mxu0 %v548
    %1854 = vmatpush1.bf16.msra.mxu0 %v547
    %1855 = vmatprep.subr.bf16.mxu0 %v552
    %1856 = vmatpush1.bf16.msra.mxu0 %v551
    %1857 = vmatprep.subr.bf16.mxu0 %v556
    %1858 = vmatpush1.bf16.msra.mxu0 %v555
    %1859 = vmatprep.subr.bf16.mxu0 %v560
    %1860 = vmatpush1.bf16.msra.mxu0 %v559
    %1861 = vmatprep.subr.bf16.mxu0 %v564
    %1862 = vmatpush1.bf16.msra.mxu0 %v563
    %1863 = vmatprep.subr.bf16.mxu0 0
    %1864 = vmatpush1.bf16.msra.mxu0 0
    %1865 = vmatprep.subr.bf16.mxu0 0
    %1866 = vmatpush1.bf16.msra.mxu0 0
    %1867 = vmatprep.subr.bf16.mxu0 0
    %1868 = vmatpush1.bf16.msra.mxu0 0
    %1869 = vmatprep.subr.bf16.mxu0 0
    %1870 = vmatpush1.bf16.msra.mxu0 0
    %1871 = vmatprep.subr.bf16.mxu0 0
    %1872 = vmatpush1.bf16.msra.mxu0 0
    %1873 = vmatprep.subr.bf16.mxu0 0
    %1874 = vmatpush1.bf16.msra.mxu0 0
    %1875 = vmatprep.subr.bf16.mxu0 0
    %1876 = vmatpush1.bf16.msra.mxu0 0
    %1877 = vmatprep.subr.bf16.mxu0 0
    %1878 = vmatpush1.bf16.msra.mxu0 0
    %1879 = vmatprep.mubr.bf16.mxu0 0
    %1880 = vmatmul.mubr.bf16.gmra.mrb[0].mxu0 %v1846
    %v1881 = vpop.f32.mrb[0].mxu0
    %v1882 = vadd.f32 %v1695, %v1881
    %v1883 = vpop.f32.mrb[0].mxu0
    %v1884 = vadd.f32 %v1697, %v1883
    %v1885 = vpop.f32.mrb[0].mxu0
    %v1886 = vpop.f32.mrb[0].mxu0
    %1887 = vdwg.mxu0
    %1888 = vmatprep.subr.bf16.mxu0 %v538
    %1889 = vmatpush1.bf16.msra.mxu0 %v537
    %1890 = vmatprep.subr.bf16.mxu0 %v542
    %1891 = vmatpush1.bf16.msra.mxu0 %v541
    %1892 = vmatprep.subr.bf16.mxu0 %v546
    %1893 = vmatpush1.bf16.msra.mxu0 %v545
    %1894 = vmatprep.subr.bf16.mxu0 %v550
    %1895 = vmatpush1.bf16.msra.mxu0 %v549
    %1896 = vmatprep.subr.bf16.mxu0 %v554
    %1897 = vmatpush1.bf16.msra.mxu0 %v553
    %1898 = vmatprep.subr.bf16.mxu0 %v558
    %1899 = vmatpush1.bf16.msra.mxu0 %v557
    %1900 = vmatprep.subr.bf16.mxu0 %v562
    %1901 = vmatpush1.bf16.msra.mxu0 %v561
    %1902 = vmatprep.subr.bf16.mxu0 %v566
    %1903 = vmatpush1.bf16.msra.mxu0 %v565
    %1904 = vmatprep.subr.bf16.mxu0 0
    %1905 = vmatpush1.bf16.msra.mxu0 0
    %1906 = vmatprep.subr.bf16.mxu0 0
    %1907 = vmatpush1.bf16.msra.mxu0 0
    %1908 = vmatprep.subr.bf16.mxu0 0
    %1909 = vmatpush1.bf16.msra.mxu0 0
    %1910 = vmatprep.subr.bf16.mxu0 0
    %1911 = vmatpush1.bf16.msra.mxu0 0
    %1912 = vmatprep.subr.bf16.mxu0 0
    %1913 = vmatpush1.bf16.msra.mxu0 0
    %1914 = vmatprep.subr.bf16.mxu0 0
    %1915 = vmatpush1.bf16.msra.mxu0 0
    %1916 = vmatprep.subr.bf16.mxu0 0
    %1917 = vmatpush1.bf16.msra.mxu0 0
    %1918 = vmatprep.subr.bf16.mxu0 0
    %1919 = vmatpush1.bf16.msra.mxu0 0
    %1920 = vmatprep.mubr.bf16.mxu0 0
    %1921 = vmatmul.mubr.bf16.gmra.mrb[0].mxu0 %v1846
    %v1922 = vpop.f32.mrb[0].mxu0
    %v1923 = vadd.f32 %v1736, %v1922
    %v1924 = vpop.f32.mrb[0].mxu0
    %v1925 = vadd.f32 %v1738, %v1924
    %v1926 = vpop.f32.mrb[0].mxu0
    %v1927 = vpop.f32.mrb[0].mxu0
    %1928 = vdwg.mxu0
    %v1929 = vmul.f32 %v1882, 0.5
    %v1930 = vtanh.pop %v1929
    %v1931 = vmul.f32 %v1930, 0.5
    %v1932 = vadd.f32 %v1931, 0.5
    %v1933 = vmul.f32 %v1884, 0.5
    %v1934 = vtanh.pop %v1933
    %v1935 = vmul.f32 %v1934, 0.5
    %v1936 = vadd.f32 %v1935, 0.5
    %v1937 = vtanh.pop %v1923
    %v1938 = vmul.f32 %v1925, 0.5
    %v1939 = vtanh.pop %v1938
    %v1940 = vmul.f32 %v1939, 0.5
    %v1941 = vadd.f32 %v1940, 0.5
    %v1942 = vmul.f32 %v1936, %v1656
    %v1943 = vmul.f32 %v1932, %v1937
    %v1944 = vadd.f32 %v1942, %v1943
    %v1945 = vtanh.pop %v1944
    %v1946 = vmul.f32 %v1941, %v1945
    %v1947 = vpack.c.bf16 %v1946, %v1946
    %1948 = vmatprep.subr.bf16.mxu0 %v829
    %1949 = vmatpush1.bf16.msra.mxu0 %v828
    %1950 = vmatprep.subr.bf16.mxu0 %v833
    %1951 = vmatpush1.bf16.msra.mxu0 %v832
    %1952 = vmatprep.subr.bf16.mxu0 %v837
    %1953 = vmatpush1.bf16.msra.mxu0 %v836
    %1954 = vmatprep.subr.bf16.mxu0 %v841
    %1955 = vmatpush1.bf16.msra.mxu0 %v840
    %1956 = vmatprep.subr.bf16.mxu0 %v845
    %1957 = vmatpush1.bf16.msra.mxu0 %v844
    %1958 = vmatprep.subr.bf16.mxu0 %v849
    %1959 = vmatpush1.bf16.msra.mxu0 %v848
    %1960 = vmatprep.subr.bf16.mxu0 %v853
    %1961 = vmatpush1.bf16.msra.mxu0 %v852
    %1962 = vmatprep.subr.bf16.mxu0 %v857
    %1963 = vmatpush1.bf16.msra.mxu0 %v856
    %1964 = vmatprep.subr.bf16.mxu0 0
    %1965 = vmatpush1.bf16.msra.mxu0 0
    %1966 = vmatprep.subr.bf16.mxu0 0
    %1967 = vmatpush1.bf16.msra.mxu0 0
    %1968 = vmatprep.subr.bf16.mxu0 0
    %1969 = vmatpush1.bf16.msra.mxu0 0
    %1970 = vmatprep.subr.bf16.mxu0 0
    %1971 = vmatpush1.bf16.msra.mxu0 0
    %1972 = vmatprep.subr.bf16.mxu0 0
    %1973 = vmatpush1.bf16.msra.mxu0 0
    %1974 = vmatprep.subr.bf16.mxu0 0
    %1975 = vmatpush1.bf16.msra.mxu0 0
    %1976 = vmatprep.subr.bf16.mxu0 0
    %1977 = vmatpush1.bf16.msra.mxu0 0
    %1978 = vmatprep.subr.bf16.mxu0 0
    %1979 = vmatpush1.bf16.msra.mxu0 0
    %1980 = vmatprep.mubr.bf16.mxu0 0
    %1981 = vmatmul.mubr.bf16.gmra.mrb[0].mxu0 %v1947
    %v1982 = vpop.f32.mrb[0].mxu0
    %v1983 = vadd.f32 %v422, %v1982
    %v1984 = vpop.f32.mrb[0].mxu0
    %v1985 = vadd.f32 %v426, %v1984
    %v1986 = vpop.f32.mrb[0].mxu0
    %v1987 = vpop.f32.mrb[0].mxu0
    %1988 = vdwg.mxu0
    %1989 = vmatprep.subr.bf16.mxu0 %v831
    %1990 = vmatpush1.bf16.msra.mxu0 %v830
    %1991 = vmatprep.subr.bf16.mxu0 %v835
    %1992 = vmatpush1.bf16.msra.mxu0 %v834
    %1993 = vmatprep.subr.bf16.mxu0 %v839
    %1994 = vmatpush1.bf16.msra.mxu0 %v838
    %1995 = vmatprep.subr.bf16.mxu0 %v843
    %1996 = vmatpush1.bf16.msra.mxu0 %v842
    %1997 = vmatprep.subr.bf16.mxu0 %v847
    %1998 = vmatpush1.bf16.msra.mxu0 %v846
    %1999 = vmatprep.subr.bf16.mxu0 %v851
    %2000 = vmatpush1.bf16.msra.mxu0 %v850
    %2001 = vmatprep.subr.bf16.mxu0 %v855
    %2002 = vmatpush1.bf16.msra.mxu0 %v854
    %2003 = vmatprep.subr.bf16.mxu0 %v859
    %2004 = vmatpush1.bf16.msra.mxu0 %v858
    %2005 = vmatprep.subr.bf16.mxu0 0
    %2006 = vmatpush1.bf16.msra.mxu0 0
    %2007 = vmatprep.subr.bf16.mxu0 0
    %2008 = vmatpush1.bf16.msra.mxu0 0
    %2009 = vmatprep.subr.bf16.mxu0 0
    %2010 = vmatpush1.bf16.msra.mxu0 0
    %2011 = vmatprep.subr.bf16.mxu0 0
    %2012 = vmatpush1.bf16.msra.mxu0 0
    %2013 = vmatprep.subr.bf16.mxu0 0
    %2014 = vmatpush1.bf16.msra.mxu0 0
    %2015 = vmatprep.subr.bf16.mxu0 0
    %2016 = vmatpush1.bf16.msra.mxu0 0
    %2017 = vmatprep.subr.bf16.mxu0 0
    %2018 = vmatpush1.bf16.msra.mxu0 0
    %2019 = vmatprep.subr.bf16.mxu0 0
    %2020 = vmatpush1.bf16.msra.mxu0 0
    %2021 = vmatprep.mubr.bf16.mxu0 0
    %2022 = vmatmul.mubr.bf16.gmra.mrb[0].mxu0 %v1947
    %v2023 = vpop.f32.mrb[0].mxu0
    %v2024 = vadd.f32 %v430, %v2023
    %v2025 = vpop.f32.mrb[0].mxu0
    %v2026 = vadd.f32 %v434, %v2025
    %v2027 = vpop.f32.mrb[0].mxu0
    %v2028 = vpop.f32.mrb[0].mxu0
    %2029 = vdwg.mxu0
    %v2030 = vld [vmem:[#allocation2 + $0x80] sm:$0xff]
    %v2031 = vld [vmem:[#allocation2 + $0x88] sm:$0xff]
    %v2032 = vld [vmem:[#allocation2 + $0x90] sm:$0xff]
    %v2033 = vld [vmem:[#allocation2 + $0x98] sm:$0xff]
    %2034 = vmatprep.subr.bf16.mxu0 %v1107
    %2035 = vmatpush1.bf16.msra.mxu0 %v1106
    %2036 = vmatprep.subr.bf16.mxu0 %v1111
    %2037 = vmatpush1.bf16.msra.mxu0 %v1110
    %2038 = vmatprep.subr.bf16.mxu0 %v1115
    %2039 = vmatpush1.bf16.msra.mxu0 %v1114
    %2040 = vmatprep.subr.bf16.mxu0 %v1119
    %2041 = vmatpush1.bf16.msra.mxu0 %v1118
    %2042 = vmatprep.subr.bf16.mxu0 %v1123
    %2043 = vmatpush1.bf16.msra.mxu0 %v1122
    %2044 = vmatprep.subr.bf16.mxu0 %v1127
    %2045 = vmatpush1.bf16.msra.mxu0 %v1126
    %2046 = vmatprep.subr.bf16.mxu0 %v1131
    %2047 = vmatpush1.bf16.msra.mxu0 %v1130
    %2048 = vmatprep.subr.bf16.mxu0 %v1135
    %2049 = vmatpush1.bf16.msra.mxu0 %v1134
    %2050 = vmatprep.subr.bf16.mxu0 0
    %2051 = vmatpush1.bf16.msra.mxu0 0
    %2052 = vmatprep.subr.bf16.mxu0 0
    %2053 = vmatpush1.bf16.msra.mxu0 0
    %2054 = vmatprep.subr.bf16.mxu0 0
    %2055 = vmatpush1.bf16.msra.mxu0 0
    %2056 = vmatprep.subr.bf16.mxu0 0
    %2057 = vmatpush1.bf16.msra.mxu0 0
    %2058 = vmatprep.subr.bf16.mxu0 0
    %2059 = vmatpush1.bf16.msra.mxu0 0
    %2060 = vmatprep.subr.bf16.mxu0 0
    %2061 = vmatpush1.bf16.msra.mxu0 0
    %2062 = vmatprep.subr.bf16.mxu0 0
    %2063 = vmatpush1.bf16.msra.mxu0 0
    %2064 = vmatprep.subr.bf16.mxu0 0
    %2065 = vmatpush1.bf16.msra.mxu0 0
    %2066 = vmatprep.mubr.bf16.mxu0 0
    %2067 = vmatmul.mubr.bf16.gmra.mrb[0].mxu0 %v1846
    %v2068 = vpop.f32.mrb[0].mxu0
    %v2069 = vadd.f32 %v2030, %v2068
    %v2070 = vpop.f32.mrb[0].mxu0
    %v2071 = vadd.f32 %v2031, %v2070
    %v2072 = vpop.f32.mrb[0].mxu0
    %v2073 = vpop.f32.mrb[0].mxu0
    %2074 = vdwg.mxu0
    %2075 = vmatprep.subr.bf16.mxu0 %v1109
    %2076 = vmatpush1.bf16.msra.mxu0 %v1108
    %2077 = vmatprep.subr.bf16.mxu0 %v1113
    %2078 = vmatpush1.bf16.msra.mxu0 %v1112
    %2079 = vmatprep.subr.bf16.mxu0 %v1117
    %2080 = vmatpush1.bf16.msra.mxu0 %v1116
    %2081 = vmatprep.subr.bf16.mxu0 %v1121
    %2082 = vmatpush1.bf16.msra.mxu0 %v1120
    %2083 = vmatprep.subr.bf16.mxu0 %v1125
    %2084 = vmatpush1.bf16.msra.mxu0 %v1124
    %2085 = vmatprep.subr.bf16.mxu0 %v1129
    %2086 = vmatpush1.bf16.msra.mxu0 %v1128
    %2087 = vmatprep.subr.bf16.mxu0 %v1133
    %2088 = vmatpush1.bf16.msra.mxu0 %v1132
    %2089 = vmatprep.subr.bf16.mxu0 %v1137
    %2090 = vmatpush1.bf16.msra.mxu0 %v1136
    %2091 = vmatprep.subr.bf16.mxu0 0
    %2092 = vmatpush1.bf16.msra.mxu0 0
    %2093 = vmatprep.subr.bf16.mxu0 0
    %2094 = vmatpush1.bf16.msra.mxu0 0
    %2095 = vmatprep.subr.bf16.mxu0 0
    %2096 = vmatpush1.bf16.msra.mxu0 0
    %2097 = vmatprep.subr.bf16.mxu0 0
    %2098 = vmatpush1.bf16.msra.mxu0 0
    %2099 = vmatprep.subr.bf16.mxu0 0
    %2100 = vmatpush1.bf16.msra.mxu0 0
    %2101 = vmatprep.subr.bf16.mxu0 0
    %2102 = vmatpush1.bf16.msra.mxu0 0
    %2103 = vmatprep.subr.bf16.mxu0 0
    %2104 = vmatpush1.bf16.msra.mxu0 0
    %2105 = vmatprep.subr.bf16.mxu0 0
    %2106 = vmatpush1.bf16.msra.mxu0 0
    %2107 = vmatprep.mubr.bf16.mxu0 0
    %2108 = vmatmul.mubr.bf16.gmra.mrb[0].mxu0 %v1846
    %v2109 = vpop.f32.mrb[0].mxu0
    %v2110 = vadd.f32 %v2032, %v2109
    %v2111 = vpop.f32.mrb[0].mxu0
    %v2112 = vadd.f32 %v2033, %v2111
    %v2113 = vpop.f32.mrb[0].mxu0
    %v2114 = vpop.f32.mrb[0].mxu0
    %2115 = vdwg.mxu0
    %v2116 = vmul.f32 %v2069, 0.5
    %v2117 = vtanh.pop %v2116
    %v2118 = vmul.f32 %v2117, 0.5
    %v2119 = vadd.f32 %v2118, 0.5
    %v2120 = vmul.f32 %v2071, 0.5
    %v2121 = vtanh.pop %v2120
    %v2122 = vmul.f32 %v2121, 0.5
    %v2123 = vadd.f32 %v2122, 0.5
    %v2124 = vtanh.pop %v2110
    %v2125 = vmul.f32 %v2112, 0.5
    %v2126 = vtanh.pop %v2125
    %v2127 = vmul.f32 %v2126, 0.5
    %v2128 = vadd.f32 %v2127, 0.5
    %v2129 = vmul.f32 %v2123, %v1843
    %v2130 = vmul.f32 %v2119, %v2124
    %v2131 = vadd.f32 %v2129, %v2130
    %v2132 = vtanh.pop %v2131
    %v2133 = vmul.f32 %v2128, %v2132
    %v2134 = vpack.c.bf16 %v2133, %v2133
    %2135 = vmatprep.subr.bf16.mxu0 %v536
    %2136 = vmatpush1.bf16.msra.mxu0 %v535
    %2137 = vmatprep.subr.bf16.mxu0 %v540
    %2138 = vmatpush1.bf16.msra.mxu0 %v539
    %2139 = vmatprep.subr.bf16.mxu0 %v544
    %2140 = vmatpush1.bf16.msra.mxu0 %v543
    %2141 = vmatprep.subr.bf16.mxu0 %v548
    %2142 = vmatpush1.bf16.msra.mxu0 %v547
    %2143 = vmatprep.subr.bf16.mxu0 %v552
    %2144 = vmatpush1.bf16.msra.mxu0 %v551
    %2145 = vmatprep.subr.bf16.mxu0 %v556
    %2146 = vmatpush1.bf16.msra.mxu0 %v555
    %2147 = vmatprep.subr.bf16.mxu0 %v560
    %2148 = vmatpush1.bf16.msra.mxu0 %v559
    %2149 = vmatprep.subr.bf16.mxu0 %v564
    %2150 = vmatpush1.bf16.msra.mxu0 %v563
    %2151 = vmatprep.subr.bf16.mxu0 0
    %2152 = vmatpush1.bf16.msra.mxu0 0
    %2153 = vmatprep.subr.bf16.mxu0 0
    %2154 = vmatpush1.bf16.msra.mxu0 0
    %2155 = vmatprep.subr.bf16.mxu0 0
    %2156 = vmatpush1.bf16.msra.mxu0 0
    %2157 = vmatprep.subr.bf16.mxu0 0
    %2158 = vmatpush1.bf16.msra.mxu0 0
    %2159 = vmatprep.subr.bf16.mxu0 0
    %2160 = vmatpush1.bf16.msra.mxu0 0
    %2161 = vmatprep.subr.bf16.mxu0 0
    %2162 = vmatpush1.bf16.msra.mxu0 0
    %2163 = vmatprep.subr.bf16.mxu0 0
    %2164 = vmatpush1.bf16.msra.mxu0 0
    %2165 = vmatprep.subr.bf16.mxu0 0
    %2166 = vmatpush1.bf16.msra.mxu0 0
    %2167 = vmatprep.mubr.bf16.mxu0 0
    %2168 = vmatmul.mubr.bf16.gmra.mrb[0].mxu0 %v2134
    %v2169 = vpop.f32.mrb[0].mxu0
    %v2170 = vadd.f32 %v1983, %v2169
    %v2171 = vpop.f32.mrb[0].mxu0
    %v2172 = vadd.f32 %v1985, %v2171
    %v2173 = vpop.f32.mrb[0].mxu0
    %v2174 = vpop.f32.mrb[0].mxu0
    %2175 = vdwg.mxu0
    %2176 = vmatprep.subr.bf16.mxu0 %v538
    %2177 = vmatpush1.bf16.msra.mxu0 %v537
    %2178 = vmatprep.subr.bf16.mxu0 %v542
    %2179 = vmatpush1.bf16.msra.mxu0 %v541
    %2180 = vmatprep.subr.bf16.mxu0 %v546
    %2181 = vmatpush1.bf16.msra.mxu0 %v545
    %2182 = vmatprep.subr.bf16.mxu0 %v550
    %2183 = vmatpush1.bf16.msra.mxu0 %v549
    %2184 = vmatprep.subr.bf16.mxu0 %v554
    %2185 = vmatpush1.bf16.msra.mxu0 %v553
    %2186 = vmatprep.subr.bf16.mxu0 %v558
    %2187 = vmatpush1.bf16.msra.mxu0 %v557
    %2188 = vmatprep.subr.bf16.mxu0 %v562
    %2189 = vmatpush1.bf16.msra.mxu0 %v561
    %2190 = vmatprep.subr.bf16.mxu0 %v566
    %2191 = vmatpush1.bf16.msra.mxu0 %v565
    %2192 = vmatprep.subr.bf16.mxu0 0
    %2193 = vmatpush1.bf16.msra.mxu0 0
    %2194 = vmatprep.subr.bf16.mxu0 0
    %2195 = vmatpush1.bf16.msra.mxu0 0
    %2196 = vmatprep.subr.bf16.mxu0 0
    %2197 = vmatpush1.bf16.msra.mxu0 0
    %2198 = vmatprep.subr.bf16.mxu0 0
    %2199 = vmatpush1.bf16.msra.mxu0 0
    %2200 = vmatprep.subr.bf16.mxu0 0
    %2201 = vmatpush1.bf16.msra.mxu0 0
    %2202 = vmatprep.subr.bf16.mxu0 0
    %2203 = vmatpush1.bf16.msra.mxu0 0
    %2204 = vmatprep.subr.bf16.mxu0 0
    %2205 = vmatpush1.bf16.msra.mxu0 0
    %2206 = vmatprep.subr.bf16.mxu0 0
    %2207 = vmatpush1.bf16.msra.mxu0 0
    %2208 = vmatprep.mubr.bf16.mxu0 0
    %2209 = vmatmul.mubr.bf16.gmra.mrb[0].mxu0 %v2134
    %v2210 = vpop.f32.mrb[0].mxu0
    %v2211 = vadd.f32 %v2024, %v2210
    %v2212 = vpop.f32.mrb[0].mxu0
    %v2213 = vadd.f32 %v2026, %v2212
    %v2214 = vpop.f32.mrb[0].mxu0
    %v2215 = vpop.f32.mrb[0].mxu0
    %2216 = vdwg.mxu0
    %v2217 = vmul.f32 %v2170, 0.5
    %v2218 = vtanh.pop %v2217
    %v2219 = vmul.f32 %v2218, 0.5
    %v2220 = vadd.f32 %v2219, 0.5
    %v2221 = vmul.f32 %v2172, 0.5
    %v2222 = vtanh.pop %v2221
    %v2223 = vmul.f32 %v2222, 0.5
    %v2224 = vadd.f32 %v2223, 0.5
    %v2225 = vtanh.pop %v2211
    %v2226 = vmul.f32 %v2213, 0.5
    %v2227 = vtanh.pop %v2226
    %v2228 = vmul.f32 %v2227, 0.5
    %v2229 = vadd.f32 %v2228, 0.5
    %v2230 = vmul.f32 %v2224, %v1944
    %v2231 = vmul.f32 %v2220, %v2225
    %v2232 = vadd.f32 %v2230, %v2231
    %v2233 = vtanh.pop %v2232
    %v2234 = vmul.f32 %v2229, %v2233
    %v2235 = vpack.c.bf16 %v2234, %v2234
    %2236 = vmatprep.subr.bf16.mxu0 %v829
    %2237 = vmatpush1.bf16.msra.mxu0 %v828
    %2238 = vmatprep.subr.bf16.mxu0 %v833
    %2239 = vmatpush1.bf16.msra.mxu0 %v832
    %2240 = vmatprep.subr.bf16.mxu0 %v837
    %2241 = vmatpush1.bf16.msra.mxu0 %v836
    %2242 = vmatprep.subr.bf16.mxu0 %v841
    %2243 = vmatpush1.bf16.msra.mxu0 %v840
    %2244 = vmatprep.subr.bf16.mxu0 %v845
    %2245 = vmatpush1.bf16.msra.mxu0 %v844
    %2246 = vmatprep.subr.bf16.mxu0 %v849
    %2247 = vmatpush1.bf16.msra.mxu0 %v848
    %2248 = vmatprep.subr.bf16.mxu0 %v853
    %2249 = vmatpush1.bf16.msra.mxu0 %v852
    %2250 = vmatprep.subr.bf16.mxu0 %v857
    %2251 = vmatpush1.bf16.msra.mxu0 %v856
    %2252 = vmatprep.subr.bf16.mxu0 0
    %2253 = vmatpush1.bf16.msra.mxu0 0
    %2254 = vmatprep.subr.bf16.mxu0 0
    %2255 = vmatpush1.bf16.msra.mxu0 0
    %2256 = vmatprep.subr.bf16.mxu0 0
    %2257 = vmatpush1.bf16.msra.mxu0 0
    %2258 = vmatprep.subr.bf16.mxu0 0
    %2259 = vmatpush1.bf16.msra.mxu0 0
    %2260 = vmatprep.subr.bf16.mxu0 0
    %2261 = vmatpush1.bf16.msra.mxu0 0
    %2262 = vmatprep.subr.bf16.mxu0 0
    %2263 = vmatpush1.bf16.msra.mxu0 0
    %2264 = vmatprep.subr.bf16.mxu0 0
    %2265 = vmatpush1.bf16.msra.mxu0 0
    %2266 = vmatprep.subr.bf16.mxu0 0
    %2267 = vmatpush1.bf16.msra.mxu0 0
    %2268 = vmatprep.mubr.bf16.mxu0 0
    %2269 = vmatmul.mubr.bf16.gmra.mrb[0].mxu0 %v2235
    %v2270 = vpop.f32.mrb[0].mxu0
    %v2271 = vadd.f32 %v422, %v2270
    %v2272 = vpop.f32.mrb[0].mxu0
    %v2273 = vadd.f32 %v426, %v2272
    %v2274 = vpop.f32.mrb[0].mxu0
    %v2275 = vpop.f32.mrb[0].mxu0
    %2276 = vdwg.mxu0
    %2277 = vmatprep.subr.bf16.mxu0 %v831
    %2278 = vmatpush1.bf16.msra.mxu0 %v830
    %2279 = vmatprep.subr.bf16.mxu0 %v835
    %2280 = vmatpush1.bf16.msra.mxu0 %v834
    %2281 = vmatprep.subr.bf16.mxu0 %v839
    %2282 = vmatpush1.bf16.msra.mxu0 %v838
    %2283 = vmatprep.subr.bf16.mxu0 %v843
    %2284 = vmatpush1.bf16.msra.mxu0 %v842
    %2285 = vmatprep.subr.bf16.mxu0 %v847
    %2286 = vmatpush1.bf16.msra.mxu0 %v846
    %2287 = vmatprep.subr.bf16.mxu0 %v851
    %2288 = vmatpush1.bf16.msra.mxu0 %v850
    %2289 = vmatprep.subr.bf16.mxu0 %v855
    %2290 = vmatpush1.bf16.msra.mxu0 %v854
    %2291 = vmatprep.subr.bf16.mxu0 %v859
    %2292 = vmatpush1.bf16.msra.mxu0 %v858
    %2293 = vmatprep.subr.bf16.mxu0 0
    %2294 = vmatpush1.bf16.msra.mxu0 0
    %2295 = vmatprep.subr.bf16.mxu0 0
    %2296 = vmatpush1.bf16.msra.mxu0 0
    %2297 = vmatprep.subr.bf16.mxu0 0
    %2298 = vmatpush1.bf16.msra.mxu0 0
    %2299 = vmatprep.subr.bf16.mxu0 0
    %2300 = vmatpush1.bf16.msra.mxu0 0
    %2301 = vmatprep.subr.bf16.mxu0 0
    %2302 = vmatpush1.bf16.msra.mxu0 0
    %2303 = vmatprep.subr.bf16.mxu0 0
    %2304 = vmatpush1.bf16.msra.mxu0 0
    %2305 = vmatprep.subr.bf16.mxu0 0
    %2306 = vmatpush1.bf16.msra.mxu0 0
    %2307 = vmatprep.subr.bf16.mxu0 0
    %2308 = vmatpush1.bf16.msra.mxu0 0
    %2309 = vmatprep.mubr.bf16.mxu0 0
    %2310 = vmatmul.mubr.bf16.gmra.mrb[0].mxu0 %v2235
    %v2311 = vpop.f32.mrb[0].mxu0
    %v2312 = vadd.f32 %v430, %v2311
    %v2313 = vpop.f32.mrb[0].mxu0
    %v2314 = vadd.f32 %v434, %v2313
    %v2315 = vpop.f32.mrb[0].mxu0
    %v2316 = vpop.f32.mrb[0].mxu0
    %2317 = vdwg.mxu0
    %v2318 = vld [vmem:[#allocation2 + $0xa0] sm:$0xff]
    %v2319 = vld [vmem:[#allocation2 + $0xa8] sm:$0xff]
    %v2320 = vld [vmem:[#allocation2 + $0xb0] sm:$0xff]
    %v2321 = vld [vmem:[#allocation2 + $0xb8] sm:$0xff]
    %2322 = vmatprep.subr.bf16.mxu0 %v1107
    %2323 = vmatpush1.bf16.msra.mxu0 %v1106
    %2324 = vmatprep.subr.bf16.mxu0 %v1111
    %2325 = vmatpush1.bf16.msra.mxu0 %v1110
    %2326 = vmatprep.subr.bf16.mxu0 %v1115
    %2327 = vmatpush1.bf16.msra.mxu0 %v1114
    %2328 = vmatprep.subr.bf16.mxu0 %v1119
    %2329 = vmatpush1.bf16.msra.mxu0 %v1118
    %2330 = vmatprep.subr.bf16.mxu0 %v1123
    %2331 = vmatpush1.bf16.msra.mxu0 %v1122
    %2332 = vmatprep.subr.bf16.mxu0 %v1127
    %2333 = vmatpush1.bf16.msra.mxu0 %v1126
    %2334 = vmatprep.subr.bf16.mxu0 %v1131
    %2335 = vmatpush1.bf16.msra.mxu0 %v1130
    %2336 = vmatprep.subr.bf16.mxu0 %v1135
    %2337 = vmatpush1.bf16.msra.mxu0 %v1134
    %2338 = vmatprep.subr.bf16.mxu0 0
    %2339 = vmatpush1.bf16.msra.mxu0 0
    %2340 = vmatprep.subr.bf16.mxu0 0
    %2341 = vmatpush1.bf16.msra.mxu0 0
    %2342 = vmatprep.subr.bf16.mxu0 0
    %2343 = vmatpush1.bf16.msra.mxu0 0
    %2344 = vmatprep.subr.bf16.mxu0 0
    %2345 = vmatpush1.bf16.msra.mxu0 0
    %2346 = vmatprep.subr.bf16.mxu0 0
    %2347 = vmatpush1.bf16.msra.mxu0 0
    %2348 = vmatprep.subr.bf16.mxu0 0
    %2349 = vmatpush1.bf16.msra.mxu0 0
    %2350 = vmatprep.subr.bf16.mxu0 0
    %2351 = vmatpush1.bf16.msra.mxu0 0
    %2352 = vmatprep.subr.bf16.mxu0 0
    %2353 = vmatpush1.bf16.msra.mxu0 0
    %2354 = vmatprep.mubr.bf16.mxu0 0
    %2355 = vmatmul.mubr.bf16.gmra.mrb[0].mxu0 %v2134
    %v2356 = vpop.f32.mrb[0].mxu0
    %v2357 = vadd.f32 %v2318, %v2356
    %v2358 = vpop.f32.mrb[0].mxu0
    %v2359 = vadd.f32 %v2319, %v2358
    %v2360 = vpop.f32.mrb[0].mxu0
    %v2361 = vpop.f32.mrb[0].mxu0
    %2362 = vdwg.mxu0
    %2363 = vmatprep.subr.bf16.mxu0 %v1109
    %2364 = vmatpush1.bf16.msra.mxu0 %v1108
    %2365 = vmatprep.subr.bf16.mxu0 %v1113
    %2366 = vmatpush1.bf16.msra.mxu0 %v1112
    %2367 = vmatprep.subr.bf16.mxu0 %v1117
    %2368 = vmatpush1.bf16.msra.mxu0 %v1116
    %2369 = vmatprep.subr.bf16.mxu0 %v1121
    %2370 = vmatpush1.bf16.msra.mxu0 %v1120
    %2371 = vmatprep.subr.bf16.mxu0 %v1125
    %2372 = vmatpush1.bf16.msra.mxu0 %v1124
    %2373 = vmatprep.subr.bf16.mxu0 %v1129
    %2374 = vmatpush1.bf16.msra.mxu0 %v1128
    %2375 = vmatprep.subr.bf16.mxu0 %v1133
    %2376 = vmatpush1.bf16.msra.mxu0 %v1132
    %2377 = vmatprep.subr.bf16.mxu0 %v1137
    %2378 = vmatpush1.bf16.msra.mxu0 %v1136
    %2379 = vmatprep.subr.bf16.mxu0 0
    %2380 = vmatpush1.bf16.msra.mxu0 0
    %2381 = vmatprep.subr.bf16.mxu0 0
    %2382 = vmatpush1.bf16.msra.mxu0 0
    %2383 = vmatprep.subr.bf16.mxu0 0
    %2384 = vmatpush1.bf16.msra.mxu0 0
    %2385 = vmatprep.subr.bf16.mxu0 0
    %2386 = vmatpush1.bf16.msra.mxu0 0
    %2387 = vmatprep.subr.bf16.mxu0 0
    %2388 = vmatpush1.bf16.msra.mxu0 0
    %2389 = vmatprep.subr.bf16.mxu0 0
    %2390 = vmatpush1.bf16.msra.mxu0 0
    %2391 = vmatprep.subr.bf16.mxu0 0
    %2392 = vmatpush1.bf16.msra.mxu0 0
    %2393 = vmatprep.subr.bf16.mxu0 0
    %2394 = vmatpush1.bf16.msra.mxu0 0
    %2395 = vmatprep.mubr.bf16.mxu0 0
    %2396 = vmatmul.mubr.bf16.gmra.mrb[0].mxu0 %v2134
    %v2397 = vpop.f32.mrb[0].mxu0
    %v2398 = vadd.f32 %v2320, %v2397
    %v2399 = vpop.f32.mrb[0].mxu0
    %v2400 = vadd.f32 %v2321, %v2399
    %v2401 = vpop.f32.mrb[0].mxu0
    %v2402 = vpop.f32.mrb[0].mxu0
    %2403 = vdwg.mxu0
    %v2404 = vmul.f32 %v2357, 0.5
    %v2405 = vtanh.pop %v2404
    %v2406 = vmul.f32 %v2405, 0.5
    %v2407 = vadd.f32 %v2406, 0.5
    %v2408 = vmul.f32 %v2359, 0.5
    %v2409 = vtanh.pop %v2408
    %v2410 = vmul.f32 %v2409, 0.5
    %v2411 = vadd.f32 %v2410, 0.5
    %v2412 = vtanh.pop %v2398
    %v2413 = vmul.f32 %v2400, 0.5
    %v2414 = vtanh.pop %v2413
    %v2415 = vmul.f32 %v2414, 0.5
    %v2416 = vadd.f32 %v2415, 0.5
    %v2417 = vmul.f32 %v2411, %v2131
    %v2418 = vmul.f32 %v2407, %v2412
    %v2419 = vadd.f32 %v2417, %v2418
    %v2420 = vtanh.pop %v2419
    %v2421 = vmul.f32 %v2416, %v2420
    %v2422 = vpack.c.bf16 %v2421, %v2421
    %2423 = vmatprep.subr.bf16.mxu0 %v536
    %2424 = vmatpush1.bf16.msra.mxu0 %v535
    %2425 = vmatprep.subr.bf16.mxu0 %v540
    %2426 = vmatpush1.bf16.msra.mxu0 %v539
    %2427 = vmatprep.subr.bf16.mxu0 %v544
    %2428 = vmatpush1.bf16.msra.mxu0 %v543
    %2429 = vmatprep.subr.bf16.mxu0 %v548
    %2430 = vmatpush1.bf16.msra.mxu0 %v547
    %2431 = vmatprep.subr.bf16.mxu0 %v552
    %2432 = vmatpush1.bf16.msra.mxu0 %v551
    %2433 = vmatprep.subr.bf16.mxu0 %v556
    %2434 = vmatpush1.bf16.msra.mxu0 %v555
    %2435 = vmatprep.subr.bf16.mxu0 %v560
    %2436 = vmatpush1.bf16.msra.mxu0 %v559
    %2437 = vmatprep.subr.bf16.mxu0 %v564
    %2438 = vmatpush1.bf16.msra.mxu0 %v563
    %2439 = vmatprep.subr.bf16.mxu0 0
    %2440 = vmatpush1.bf16.msra.mxu0 0
    %2441 = vmatprep.subr.bf16.mxu0 0
    %2442 = vmatpush1.bf16.msra.mxu0 0
    %2443 = vmatprep.subr.bf16.mxu0 0
    %2444 = vmatpush1.bf16.msra.mxu0 0
    %2445 = vmatprep.subr.bf16.mxu0 0
    %2446 = vmatpush1.bf16.msra.mxu0 0
    %2447 = vmatprep.subr.bf16.mxu0 0
    %2448 = vmatpush1.bf16.msra.mxu0 0
    %2449 = vmatprep.subr.bf16.mxu0 0
    %2450 = vmatpush1.bf16.msra.mxu0 0
    %2451 = vmatprep.subr.bf16.mxu0 0
    %2452 = vmatpush1.bf16.msra.mxu0 0
    %2453 = vmatprep.subr.bf16.mxu0 0
    %2454 = vmatpush1.bf16.msra.mxu0 0
    %2455 = vmatprep.mubr.bf16.mxu0 0
    %2456 = vmatmul.mubr.bf16.gmra.mrb[0].mxu0 %v2422
    %v2457 = vpop.f32.mrb[0].mxu0
    %v2458 = vadd.f32 %v2271, %v2457
    %v2459 = vpop.f32.mrb[0].mxu0
    %v2460 = vadd.f32 %v2273, %v2459
    %v2461 = vpop.f32.mrb[0].mxu0
    %v2462 = vpop.f32.mrb[0].mxu0
    %2463 = vdwg.mxu0
    %2464 = vmatprep.subr.bf16.mxu0 %v538
    %2465 = vmatpush1.bf16.msra.mxu0 %v537
    %2466 = vmatprep.subr.bf16.mxu0 %v542
    %2467 = vmatpush1.bf16.msra.mxu0 %v541
    %2468 = vmatprep.subr.bf16.mxu0 %v546
    %2469 = vmatpush1.bf16.msra.mxu0 %v545
    %2470 = vmatprep.subr.bf16.mxu0 %v550
    %2471 = vmatpush1.bf16.msra.mxu0 %v549
    %2472 = vmatprep.subr.bf16.mxu0 %v554
    %2473 = vmatpush1.bf16.msra.mxu0 %v553
    %2474 = vmatprep.subr.bf16.mxu0 %v558
    %2475 = vmatpush1.bf16.msra.mxu0 %v557
    %2476 = vmatprep.subr.bf16.mxu0 %v562
    %2477 = vmatpush1.bf16.msra.mxu0 %v561
    %2478 = vmatprep.subr.bf16.mxu0 %v566
    %2479 = vmatpush1.bf16.msra.mxu0 %v565
    %2480 = vmatprep.subr.bf16.mxu0 0
    %2481 = vmatpush1.bf16.msra.mxu0 0
    %2482 = vmatprep.subr.bf16.mxu0 0
    %2483 = vmatpush1.bf16.msra.mxu0 0
    %2484 = vmatprep.subr.bf16.mxu0 0
    %2485 = vmatpush1.bf16.msra.mxu0 0
    %2486 = vmatprep.subr.bf16.mxu0 0
    %2487 = vmatpush1.bf16.msra.mxu0 0
    %2488 = vmatprep.subr.bf16.mxu0 0
    %2489 = vmatpush1.bf16.msra.mxu0 0
    %2490 = vmatprep.subr.bf16.mxu0 0
    %2491 = vmatpush1.bf16.msra.mxu0 0
    %2492 = vmatprep.subr.bf16.mxu0 0
    %2493 = vmatpush1.bf16.msra.mxu0 0
    %2494 = vmatprep.subr.bf16.mxu0 0
    %2495 = vmatpush1.bf16.msra.mxu0 0
    %2496 = vmatprep.mubr.bf16.mxu0 0
    %2497 = vmatmul.mubr.bf16.gmra.mrb[0].mxu0 %v2422
    %v2498 = vpop.f32.mrb[0].mxu0
    %v2499 = vadd.f32 %v2312, %v2498
    %v2500 = vpop.f32.mrb[0].mxu0
    %v2501 = vadd.f32 %v2314, %v2500
    %v2502 = vpop.f32.mrb[0].mxu0
    %v2503 = vpop.f32.mrb[0].mxu0
    %2504 = vdwg.mxu0
    %v2505 = vmul.f32 %v2458, 0.5
    %v2506 = vtanh.pop %v2505
    %v2507 = vmul.f32 %v2506, 0.5
    %v2508 = vadd.f32 %v2507, 0.5
    %v2509 = vmul.f32 %v2460, 0.5
    %v2510 = vtanh.pop %v2509
    %v2511 = vmul.f32 %v2510, 0.5
    %v2512 = vadd.f32 %v2511, 0.5
    %v2513 = vtanh.pop %v2499
    %v2514 = vmul.f32 %v2501, 0.5
    %v2515 = vtanh.pop %v2514
    %v2516 = vmul.f32 %v2515, 0.5
    %v2517 = vadd.f32 %v2516, 0.5
    %v2518 = vmul.f32 %v2512, %v2232
    %v2519 = vmul.f32 %v2508, %v2513
    %v2520 = vadd.f32 %v2518, %v2519
    %v2521 = vtanh.pop %v2520
    %v2522 = vmul.f32 %v2517, %v2521
    %v2523 = vpack.c.bf16 %v2522, %v2522
    %2524 = vmatprep.subr.bf16.mxu0 %v829
    %2525 = vmatpush1.bf16.msra.mxu0 %v828
    %2526 = vmatprep.subr.bf16.mxu0 %v833
    %2527 = vmatpush1.bf16.msra.mxu0 %v832
    %2528 = vmatprep.subr.bf16.mxu0 %v837
    %2529 = vmatpush1.bf16.msra.mxu0 %v836
    %2530 = vmatprep.subr.bf16.mxu0 %v841
    %2531 = vmatpush1.bf16.msra.mxu0 %v840
    %2532 = vmatprep.subr.bf16.mxu0 %v845
    %2533 = vmatpush1.bf16.msra.mxu0 %v844
    %2534 = vmatprep.subr.bf16.mxu0 %v849
    %2535 = vmatpush1.bf16.msra.mxu0 %v848
    %2536 = vmatprep.subr.bf16.mxu0 %v853
    %2537 = vmatpush1.bf16.msra.mxu0 %v852
    %2538 = vmatprep.subr.bf16.mxu0 %v857
    %2539 = vmatpush1.bf16.msra.mxu0 %v856
    %2540 = vmatprep.subr.bf16.mxu0 0
    %2541 = vmatpush1.bf16.msra.mxu0 0
    %2542 = vmatprep.subr.bf16.mxu0 0
    %2543 = vmatpush1.bf16.msra.mxu0 0
    %2544 = vmatprep.subr.bf16.mxu0 0
    %2545 = vmatpush1.bf16.msra.mxu0 0
    %2546 = vmatprep.subr.bf16.mxu0 0
    %2547 = vmatpush1.bf16.msra.mxu0 0
    %2548 = vmatprep.subr.bf16.mxu0 0
    %2549 = vmatpush1.bf16.msra.mxu0 0
    %2550 = vmatprep.subr.bf16.mxu0 0
    %2551 = vmatpush1.bf16.msra.mxu0 0
    %2552 = vmatprep.subr.bf16.mxu0 0
    %2553 = vmatpush1.bf16.msra.mxu0 0
    %2554 = vmatprep.subr.bf16.mxu0 0
    %2555 = vmatpush1.bf16.msra.mxu0 0
    %2556 = vmatprep.mubr.bf16.mxu0 0
    %2557 = vmatmul.mubr.bf16.gmra.mrb[0].mxu0 %v2523
    %v2558 = vpop.f32.mrb[0].mxu0
    %v2559 = vadd.f32 %v422, %v2558
    %v2560 = vpop.f32.mrb[0].mxu0
    %v2561 = vadd.f32 %v426, %v2560
    %v2562 = vpop.f32.mrb[0].mxu0
    %v2563 = vpop.f32.mrb[0].mxu0
    %2564 = vdwg.mxu0
    %2565 = vmatprep.subr.bf16.mxu0 %v831
    %2566 = vmatpush1.bf16.msra.mxu0 %v830
    %2567 = vmatprep.subr.bf16.mxu0 %v835
    %2568 = vmatpush1.bf16.msra.mxu0 %v834
    %2569 = vmatprep.subr.bf16.mxu0 %v839
    %2570 = vmatpush1.bf16.msra.mxu0 %v838
    %2571 = vmatprep.subr.bf16.mxu0 %v843
    %2572 = vmatpush1.bf16.msra.mxu0 %v842
    %2573 = vmatprep.subr.bf16.mxu0 %v847
    %2574 = vmatpush1.bf16.msra.mxu0 %v846
    %2575 = vmatprep.subr.bf16.mxu0 %v851
    %2576 = vmatpush1.bf16.msra.mxu0 %v850
    %2577 = vmatprep.subr.bf16.mxu0 %v855
    %2578 = vmatpush1.bf16.msra.mxu0 %v854
    %2579 = vmatprep.subr.bf16.mxu0 %v859
    %2580 = vmatpush1.bf16.msra.mxu0 %v858
    %2581 = vmatprep.subr.bf16.mxu0 0
    %2582 = vmatpush1.bf16.msra.mxu0 0
    %2583 = vmatprep.subr.bf16.mxu0 0
    %2584 = vmatpush1.bf16.msra.mxu0 0
    %2585 = vmatprep.subr.bf16.mxu0 0
    %2586 = vmatpush1.bf16.msra.mxu0 0
    %2587 = vmatprep.subr.bf16.mxu0 0
    %2588 = vmatpush1.bf16.msra.mxu0 0
    %2589 = vmatprep.subr.bf16.mxu0 0
    %2590 = vmatpush1.bf16.msra.mxu0 0
    %2591 = vmatprep.subr.bf16.mxu0 0
    %2592 = vmatpush1.bf16.msra.mxu0 0
    %2593 = vmatprep.subr.bf16.mxu0 0
    %2594 = vmatpush1.bf16.msra.mxu0 0
    %2595 = vmatprep.subr.bf16.mxu0 0
    %2596 = vmatpush1.bf16.msra.mxu0 0
    %2597 = vmatprep.mubr.bf16.mxu0 0
    %2598 = vmatmul.mubr.bf16.gmra.mrb[0].mxu0 %v2523
    %v2599 = vpop.f32.mrb[0].mxu0
    %v2600 = vadd.f32 %v430, %v2599
    %v2601 = vpop.f32.mrb[0].mxu0
    %v2602 = vadd.f32 %v434, %v2601
    %v2603 = vpop.f32.mrb[0].mxu0
    %v2604 = vpop.f32.mrb[0].mxu0
    %2605 = vdwg.mxu0
    %v2606 = vld [vmem:[#allocation2 + $0xc0] sm:$0xff]
    %v2607 = vld [vmem:[#allocation2 + $0xc8] sm:$0xff]
    %v2608 = vld [vmem:[#allocation2 + $0xd0] sm:$0xff]
    %v2609 = vld [vmem:[#allocation2 + $0xd8] sm:$0xff]
    %2610 = vmatprep.subr.bf16.mxu0 %v1107
    %2611 = vmatpush1.bf16.msra.mxu0 %v1106
    %2612 = vmatprep.subr.bf16.mxu0 %v1111
    %2613 = vmatpush1.bf16.msra.mxu0 %v1110
    %2614 = vmatprep.subr.bf16.mxu0 %v1115
    %2615 = vmatpush1.bf16.msra.mxu0 %v1114
    %2616 = vmatprep.subr.bf16.mxu0 %v1119
    %2617 = vmatpush1.bf16.msra.mxu0 %v1118
    %2618 = vmatprep.subr.bf16.mxu0 %v1123
    %2619 = vmatpush1.bf16.msra.mxu0 %v1122
    %2620 = vmatprep.subr.bf16.mxu0 %v1127
    %2621 = vmatpush1.bf16.msra.mxu0 %v1126
    %2622 = vmatprep.subr.bf16.mxu0 %v1131
    %2623 = vmatpush1.bf16.msra.mxu0 %v1130
    %2624 = vmatprep.subr.bf16.mxu0 %v1135
    %2625 = vmatpush1.bf16.msra.mxu0 %v1134
    %2626 = vmatprep.subr.bf16.mxu0 0
    %2627 = vmatpush1.bf16.msra.mxu0 0
    %2628 = vmatprep.subr.bf16.mxu0 0
    %2629 = vmatpush1.bf16.msra.mxu0 0
    %2630 = vmatprep.subr.bf16.mxu0 0
    %2631 = vmatpush1.bf16.msra.mxu0 0
    %2632 = vmatprep.subr.bf16.mxu0 0
    %2633 = vmatpush1.bf16.msra.mxu0 0
    %2634 = vmatprep.subr.bf16.mxu0 0
    %2635 = vmatpush1.bf16.msra.mxu0 0
    %2636 = vmatprep.subr.bf16.mxu0 0
    %2637 = vmatpush1.bf16.msra.mxu0 0
    %2638 = vmatprep.subr.bf16.mxu0 0
    %2639 = vmatpush1.bf16.msra.mxu0 0
    %2640 = vmatprep.subr.bf16.mxu0 0
    %2641 = vmatpush1.bf16.msra.mxu0 0
    %2642 = vmatprep.mubr.bf16.mxu0 0
    %2643 = vmatmul.mubr.bf16.gmra.mrb[0].mxu0 %v2422
    %v2644 = vpop.f32.mrb[0].mxu0
    %v2645 = vadd.f32 %v2606, %v2644
    %v2646 = vpop.f32.mrb[0].mxu0
    %v2647 = vadd.f32 %v2607, %v2646
    %v2648 = vpop.f32.mrb[0].mxu0
    %v2649 = vpop.f32.mrb[0].mxu0
    %2650 = vdwg.mxu0
    %2651 = vmatprep.subr.bf16.mxu0 %v1109
    %2652 = vmatpush1.bf16.msra.mxu0 %v1108
    %2653 = vmatprep.subr.bf16.mxu0 %v1113
    %2654 = vmatpush1.bf16.msra.mxu0 %v1112
    %2655 = vmatprep.subr.bf16.mxu0 %v1117
    %2656 = vmatpush1.bf16.msra.mxu0 %v1116
    %2657 = vmatprep.subr.bf16.mxu0 %v1121
    %2658 = vmatpush1.bf16.msra.mxu0 %v1120
    %2659 = vmatprep.subr.bf16.mxu0 %v1125
    %2660 = vmatpush1.bf16.msra.mxu0 %v1124
    %2661 = vmatprep.subr.bf16.mxu0 %v1129
    %2662 = vmatpush1.bf16.msra.mxu0 %v1128
    %2663 = vmatprep.subr.bf16.mxu0 %v1133
    %2664 = vmatpush1.bf16.msra.mxu0 %v1132
    %2665 = vmatprep.subr.bf16.mxu0 %v1137
    %2666 = vmatpush1.bf16.msra.mxu0 %v1136
    %2667 = vmatprep.subr.bf16.mxu0 0
    %2668 = vmatpush1.bf16.msra.mxu0 0
    %2669 = vmatprep.subr.bf16.mxu0 0
    %2670 = vmatpush1.bf16.msra.mxu0 0
    %2671 = vmatprep.subr.bf16.mxu0 0
    %2672 = vmatpush1.bf16.msra.mxu0 0
    %2673 = vmatprep.subr.bf16.mxu0 0
    %2674 = vmatpush1.bf16.msra.mxu0 0
    %2675 = vmatprep.subr.bf16.mxu0 0
    %2676 = vmatpush1.bf16.msra.mxu0 0
    %2677 = vmatprep.subr.bf16.mxu0 0
    %2678 = vmatpush1.bf16.msra.mxu0 0
    %2679 = vmatprep.subr.bf16.mxu0 0
    %2680 = vmatpush1.bf16.msra.mxu0 0
    %2681 = vmatprep.subr.bf16.mxu0 0
    %2682 = vmatpush1.bf16.msra.mxu0 0
    %2683 = vmatprep.mubr.bf16.mxu0 0
    %2684 = vmatmul.mubr.bf16.gmra.mrb[0].mxu0 %v2422
    %v2685 = vpop.f32.mrb[0].mxu0
    %v2686 = vadd.f32 %v2608, %v2685
    %v2687 = vpop.f32.mrb[0].mxu0
    %v2688 = vadd.f32 %v2609, %v2687
    %v2689 = vpop.f32.mrb[0].mxu0
    %v2690 = vpop.f32.mrb[0].mxu0
    %2691 = vdwg.mxu0
    %v2692 = vmul.f32 %v2645, 0.5
    %v2693 = vtanh.pop %v2692
    %v2694 = vmul.f32 %v2693, 0.5
    %v2695 = vadd.f32 %v2694, 0.5
    %v2696 = vmul.f32 %v2647, 0.5
    %v2697 = vtanh.pop %v2696
    %v2698 = vmul.f32 %v2697, 0.5
    %v2699 = vadd.f32 %v2698, 0.5
    %v2700 = vtanh.pop %v2686
    %v2701 = vmul.f32 %v2688, 0.5
    %v2702 = vtanh.pop %v2701
    %v2703 = vmul.f32 %v2702, 0.5
    %v2704 = vadd.f32 %v2703, 0.5
    %v2705 = vmul.f32 %v2699, %v2419
    %v2706 = vmul.f32 %v2695, %v2700
    %v2707 = vadd.f32 %v2705, %v2706
    %v2708 = vtanh.pop %v2707
    %v2709 = vmul.f32 %v2704, %v2708
    %v2710 = vpack.c.bf16 %v2709, %v2709
    %2711 = vmatprep.subr.bf16.mxu0 %v536
    %2712 = vmatpush1.bf16.msra.mxu0 %v535
    %2713 = vmatprep.subr.bf16.mxu0 %v540
    %2714 = vmatpush1.bf16.msra.mxu0 %v539
    %2715 = vmatprep.subr.bf16.mxu0 %v544
    %2716 = vmatpush1.bf16.msra.mxu0 %v543
    %2717 = vmatprep.subr.bf16.mxu0 %v548
    %2718 = vmatpush1.bf16.msra.mxu0 %v547
    %2719 = vmatprep.subr.bf16.mxu0 %v552
    %2720 = vmatpush1.bf16.msra.mxu0 %v551
    %2721 = vmatprep.subr.bf16.mxu0 %v556
    %2722 = vmatpush1.bf16.msra.mxu0 %v555
    %2723 = vmatprep.subr.bf16.mxu0 %v560
    %2724 = vmatpush1.bf16.msra.mxu0 %v559
    %2725 = vmatprep.subr.bf16.mxu0 %v564
    %2726 = vmatpush1.bf16.msra.mxu0 %v563
    %2727 = vmatprep.subr.bf16.mxu0 0
    %2728 = vmatpush1.bf16.msra.mxu0 0
    %2729 = vmatprep.subr.bf16.mxu0 0
    %2730 = vmatpush1.bf16.msra.mxu0 0
    %2731 = vmatprep.subr.bf16.mxu0 0
    %2732 = vmatpush1.bf16.msra.mxu0 0
    %2733 = vmatprep.subr.bf16.mxu0 0
    %2734 = vmatpush1.bf16.msra.mxu0 0
    %2735 = vmatprep.subr.bf16.mxu0 0
    %2736 = vmatpush1.bf16.msra.mxu0 0
    %2737 = vmatprep.subr.bf16.mxu0 0
    %2738 = vmatpush1.bf16.msra.mxu0 0
    %2739 = vmatprep.subr.bf16.mxu0 0
    %2740 = vmatpush1.bf16.msra.mxu0 0
    %2741 = vmatprep.subr.bf16.mxu0 0
    %2742 = vmatpush1.bf16.msra.mxu0 0
    %2743 = vmatprep.mubr.bf16.mxu0 0
    %2744 = vmatmul.mubr.bf16.gmra.mrb[0].mxu0 %v2710
    %v2745 = vpop.f32.mrb[0].mxu0
    %v2746 = vadd.f32 %v2559, %v2745
    %v2747 = vpop.f32.mrb[0].mxu0
    %v2748 = vadd.f32 %v2561, %v2747
    %v2749 = vpop.f32.mrb[0].mxu0
    %v2750 = vpop.f32.mrb[0].mxu0
    %2751 = vdwg.mxu0
    %2752 = vmatprep.subr.bf16.mxu0 %v538
    %2753 = vmatpush1.bf16.msra.mxu0 %v537
    %2754 = vmatprep.subr.bf16.mxu0 %v542
    %2755 = vmatpush1.bf16.msra.mxu0 %v541
    %2756 = vmatprep.subr.bf16.mxu0 %v546
    %2757 = vmatpush1.bf16.msra.mxu0 %v545
    %2758 = vmatprep.subr.bf16.mxu0 %v550
    %2759 = vmatpush1.bf16.msra.mxu0 %v549
    %2760 = vmatprep.subr.bf16.mxu0 %v554
    %2761 = vmatpush1.bf16.msra.mxu0 %v553
    %2762 = vmatprep.subr.bf16.mxu0 %v558
    %2763 = vmatpush1.bf16.msra.mxu0 %v557
    %2764 = vmatprep.subr.bf16.mxu0 %v562
    %2765 = vmatpush1.bf16.msra.mxu0 %v561
    %2766 = vmatprep.subr.bf16.mxu0 %v566
    %2767 = vmatpush1.bf16.msra.mxu0 %v565
    %2768 = vmatprep.subr.bf16.mxu0 0
    %2769 = vmatpush1.bf16.msra.mxu0 0
    %2770 = vmatprep.subr.bf16.mxu0 0
    %2771 = vmatpush1.bf16.msra.mxu0 0
    %2772 = vmatprep.subr.bf16.mxu0 0
    %2773 = vmatpush1.bf16.msra.mxu0 0
    %2774 = vmatprep.subr.bf16.mxu0 0
    %2775 = vmatpush1.bf16.msra.mxu0 0
    %2776 = vmatprep.subr.bf16.mxu0 0
    %2777 = vmatpush1.bf16.msra.mxu0 0
    %2778 = vmatprep.subr.bf16.mxu0 0
    %2779 = vmatpush1.bf16.msra.mxu0 0
    %2780 = vmatprep.subr.bf16.mxu0 0
    %2781 = vmatpush1.bf16.msra.mxu0 0
    %2782 = vmatprep.subr.bf16.mxu0 0
    %2783 = vmatpush1.bf16.msra.mxu0 0
    %2784 = vmatprep.mubr.bf16.mxu0 0
    %2785 = vmatmul.mubr.bf16.gmra.mrb[0].mxu0 %v2710
    %v2786 = vpop.f32.mrb[0].mxu0
    %v2787 = vadd.f32 %v2600, %v2786
    %v2788 = vpop.f32.mrb[0].mxu0
    %v2789 = vadd.f32 %v2602, %v2788
    %v2790 = vpop.f32.mrb[0].mxu0
    %v2791 = vpop.f32.mrb[0].mxu0
    %2792 = vdwg.mxu0
    %v2793 = vmul.f32 %v2746, 0.5
    %v2794 = vtanh.pop %v2793
    %v2795 = vmul.f32 %v2794, 0.5
    %v2796 = vadd.f32 %v2795, 0.5
    %v2797 = vmul.f32 %v2748, 0.5
    %v2798 = vtanh.pop %v2797
    %v2799 = vmul.f32 %v2798, 0.5
    %v2800 = vadd.f32 %v2799, 0.5
    %v2801 = vtanh.pop %v2787
    %v2802 = vmul.f32 %v2789, 0.5
    %v2803 = vtanh.pop %v2802
    %v2804 = vmul.f32 %v2803, 0.5
    %v2805 = vadd.f32 %v2804, 0.5
    %v2806 = vmul.f32 %v2800, %v2520
    %v2807 = vmul.f32 %v2796, %v2801
    %v2808 = vadd.f32 %v2806, %v2807
    %v2809 = vtanh.pop %v2808
    %v2810 = vmul.f32 %v2805, %v2809
    %v2811 = vpack.c.bf16 %v2810, %v2810
    %2812 = vmatprep.subr.bf16.mxu0 %v829
    %2813 = vmatpush1.bf16.msra.mxu0 %v828
    %2814 = vmatprep.subr.bf16.mxu0 %v833
    %2815 = vmatpush1.bf16.msra.mxu0 %v832
    %2816 = vmatprep.subr.bf16.mxu0 %v837
    %2817 = vmatpush1.bf16.msra.mxu0 %v836
    %2818 = vmatprep.subr.bf16.mxu0 %v841
    %2819 = vmatpush1.bf16.msra.mxu0 %v840
    %2820 = vmatprep.subr.bf16.mxu0 %v845
    %2821 = vmatpush1.bf16.msra.mxu0 %v844
    %2822 = vmatprep.subr.bf16.mxu0 %v849
    %2823 = vmatpush1.bf16.msra.mxu0 %v848
    %2824 = vmatprep.subr.bf16.mxu0 %v853
    %2825 = vmatpush1.bf16.msra.mxu0 %v852
    %2826 = vmatprep.subr.bf16.mxu0 %v857
    %2827 = vmatpush1.bf16.msra.mxu0 %v856
    %2828 = vmatprep.subr.bf16.mxu0 0
    %2829 = vmatpush1.bf16.msra.mxu0 0
    %2830 = vmatprep.subr.bf16.mxu0 0
    %2831 = vmatpush1.bf16.msra.mxu0 0
    %2832 = vmatprep.subr.bf16.mxu0 0
    %2833 = vmatpush1.bf16.msra.mxu0 0
    %2834 = vmatprep.subr.bf16.mxu0 0
    %2835 = vmatpush1.bf16.msra.mxu0 0
    %2836 = vmatprep.subr.bf16.mxu0 0
    %2837 = vmatpush1.bf16.msra.mxu0 0
    %2838 = vmatprep.subr.bf16.mxu0 0
    %2839 = vmatpush1.bf16.msra.mxu0 0
    %2840 = vmatprep.subr.bf16.mxu0 0
    %2841 = vmatpush1.bf16.msra.mxu0 0
    %2842 = vmatprep.subr.bf16.mxu0 0
    %2843 = vmatpush1.bf16.msra.mxu0 0
    %2844 = vmatprep.mubr.bf16.mxu0 0
    %2845 = vmatmul.mubr.bf16.gmra.mrb[0].mxu0 %v2811
    %v2846 = vpop.f32.mrb[0].mxu0
    %v2847 = vadd.f32 %v422, %v2846
    %v2848 = vpop.f32.mrb[0].mxu0
    %v2849 = vadd.f32 %v426, %v2848
    %v2850 = vpop.f32.mrb[0].mxu0
    %v2851 = vpop.f32.mrb[0].mxu0
    %2852 = vdwg.mxu0
    %2853 = vmatprep.subr.bf16.mxu0 %v831
    %2854 = vmatpush1.bf16.msra.mxu0 %v830
    %2855 = vmatprep.subr.bf16.mxu0 %v835
    %2856 = vmatpush1.bf16.msra.mxu0 %v834
    %2857 = vmatprep.subr.bf16.mxu0 %v839
    %2858 = vmatpush1.bf16.msra.mxu0 %v838
    %2859 = vmatprep.subr.bf16.mxu0 %v843
    %2860 = vmatpush1.bf16.msra.mxu0 %v842
    %2861 = vmatprep.subr.bf16.mxu0 %v847
    %2862 = vmatpush1.bf16.msra.mxu0 %v846
    %2863 = vmatprep.subr.bf16.mxu0 %v851
    %2864 = vmatpush1.bf16.msra.mxu0 %v850
    %2865 = vmatprep.subr.bf16.mxu0 %v855
    %2866 = vmatpush1.bf16.msra.mxu0 %v854
    %2867 = vmatprep.subr.bf16.mxu0 %v859
    %2868 = vmatpush1.bf16.msra.mxu0 %v858
    %2869 = vmatprep.subr.bf16.mxu0 0
    %2870 = vmatpush1.bf16.msra.mxu0 0
    %2871 = vmatprep.subr.bf16.mxu0 0
    %2872 = vmatpush1.bf16.msra.mxu0 0
    %2873 = vmatprep.subr.bf16.mxu0 0
    %2874 = vmatpush1.bf16.msra.mxu0 0
    %2875 = vmatprep.subr.bf16.mxu0 0
    %2876 = vmatpush1.bf16.msra.mxu0 0
    %2877 = vmatprep.subr.bf16.mxu0 0
    %2878 = vmatpush1.bf16.msra.mxu0 0
    %2879 = vmatprep.subr.bf16.mxu0 0
    %2880 = vmatpush1.bf16.msra.mxu0 0
    %2881 = vmatprep.subr.bf16.mxu0 0
    %2882 = vmatpush1.bf16.msra.mxu0 0
    %2883 = vmatprep.subr.bf16.mxu0 0
    %2884 = vmatpush1.bf16.msra.mxu0 0
    %2885 = vmatprep.mubr.bf16.mxu0 0
    %2886 = vmatmul.mubr.bf16.gmra.mrb[0].mxu0 %v2811
    %v2887 = vpop.f32.mrb[0].mxu0
    %v2888 = vadd.f32 %v430, %v2887
    %v2889 = vpop.f32.mrb[0].mxu0
    %v2890 = vadd.f32 %v434, %v2889
    %v2891 = vpop.f32.mrb[0].mxu0
    %v2892 = vpop.f32.mrb[0].mxu0
    %2893 = vdwg.mxu0
    %v2894 = vld [vmem:[#allocation2 + $0xe0] sm:$0xff]
    %v2895 = vld [vmem:[#allocation2 + $0xe8] sm:$0xff]
    %v2896 = vld [vmem:[#allocation2 + $0xf0] sm:$0xff]
    %v2897 = vld [vmem:[#allocation2 + $0xf8] sm:$0xff]
    %2898 = vmatprep.subr.bf16.mxu0 %v1107
    %2899 = vmatpush1.bf16.msra.mxu0 %v1106
    %2900 = vmatprep.subr.bf16.mxu0 %v1111
    %2901 = vmatpush1.bf16.msra.mxu0 %v1110
    %2902 = vmatprep.subr.bf16.mxu0 %v1115
    %2903 = vmatpush1.bf16.msra.mxu0 %v1114
    %2904 = vmatprep.subr.bf16.mxu0 %v1119
    %2905 = vmatpush1.bf16.msra.mxu0 %v1118
    %2906 = vmatprep.subr.bf16.mxu0 %v1123
    %2907 = vmatpush1.bf16.msra.mxu0 %v1122
    %2908 = vmatprep.subr.bf16.mxu0 %v1127
    %2909 = vmatpush1.bf16.msra.mxu0 %v1126
    %2910 = vmatprep.subr.bf16.mxu0 %v1131
    %2911 = vmatpush1.bf16.msra.mxu0 %v1130
    %2912 = vmatprep.subr.bf16.mxu0 %v1135
    %2913 = vmatpush1.bf16.msra.mxu0 %v1134
    %2914 = vmatprep.subr.bf16.mxu0 0
    %2915 = vmatpush1.bf16.msra.mxu0 0
    %2916 = vmatprep.subr.bf16.mxu0 0
    %2917 = vmatpush1.bf16.msra.mxu0 0
    %2918 = vmatprep.subr.bf16.mxu0 0
    %2919 = vmatpush1.bf16.msra.mxu0 0
    %2920 = vmatprep.subr.bf16.mxu0 0
    %2921 = vmatpush1.bf16.msra.mxu0 0
    %2922 = vmatprep.subr.bf16.mxu0 0
    %2923 = vmatpush1.bf16.msra.mxu0 0
    %2924 = vmatprep.subr.bf16.mxu0 0
    %2925 = vmatpush1.bf16.msra.mxu0 0
    %2926 = vmatprep.subr.bf16.mxu0 0
    %2927 = vmatpush1.bf16.msra.mxu0 0
    %2928 = vmatprep.subr.bf16.mxu0 0
    %2929 = vmatpush1.bf16.msra.mxu0 0
    %2930 = vmatprep.mubr.bf16.mxu0 0
    %2931 = vmatmul.mubr.bf16.gmra.mrb[0].mxu0 %v2710
    %v2932 = vpop.f32.mrb[0].mxu0
    %v2933 = vadd.f32 %v2894, %v2932
    %v2934 = vpop.f32.mrb[0].mxu0
    %v2935 = vadd.f32 %v2895, %v2934
    %v2936 = vpop.f32.mrb[0].mxu0
    %v2937 = vpop.f32.mrb[0].mxu0
    %2938 = vdwg.mxu0
    %2939 = vmatprep.subr.bf16.mxu0 %v1109
    %2940 = vmatpush1.bf16.msra.mxu0 %v1108
    %2941 = vmatprep.subr.bf16.mxu0 %v1113
    %2942 = vmatpush1.bf16.msra.mxu0 %v1112
    %2943 = vmatprep.subr.bf16.mxu0 %v1117
    %2944 = vmatpush1.bf16.msra.mxu0 %v1116
    %2945 = vmatprep.subr.bf16.mxu0 %v1121
    %2946 = vmatpush1.bf16.msra.mxu0 %v1120
    %2947 = vmatprep.subr.bf16.mxu0 %v1125
    %2948 = vmatpush1.bf16.msra.mxu0 %v1124
    %2949 = vmatprep.subr.bf16.mxu0 %v1129
    %2950 = vmatpush1.bf16.msra.mxu0 %v1128
    %2951 = vmatprep.subr.bf16.mxu0 %v1133
    %2952 = vmatpush1.bf16.msra.mxu0 %v1132
    %2953 = vmatprep.subr.bf16.mxu0 %v1137
    %2954 = vmatpush1.bf16.msra.mxu0 %v1136
    %2955 = vmatprep.subr.bf16.mxu0 0
    %2956 = vmatpush1.bf16.msra.mxu0 0
    %2957 = vmatprep.subr.bf16.mxu0 0
    %2958 = vmatpush1.bf16.msra.mxu0 0
    %2959 = vmatprep.subr.bf16.mxu0 0
    %2960 = vmatpush1.bf16.msra.mxu0 0
    %2961 = vmatprep.subr.bf16.mxu0 0
    %2962 = vmatpush1.bf16.msra.mxu0 0
    %2963 = vmatprep.subr.bf16.mxu0 0
    %2964 = vmatpush1.bf16.msra.mxu0 0
    %2965 = vmatprep.subr.bf16.mxu0 0
    %2966 = vmatpush1.bf16.msra.mxu0 0
    %2967 = vmatprep.subr.bf16.mxu0 0
    %2968 = vmatpush1.bf16.msra.mxu0 0
    %2969 = vmatprep.subr.bf16.mxu0 0
    %2970 = vmatpush1.bf16.msra.mxu0 0
    %2971 = vmatprep.mubr.bf16.mxu0 0
    %2972 = vmatmul.mubr.bf16.gmra.mrb[0].mxu0 %v2710
    %v2973 = vpop.f32.mrb[0].mxu0
    %v2974 = vadd.f32 %v2896, %v2973
    %v2975 = vpop.f32.mrb[0].mxu0
    %v2976 = vadd.f32 %v2897, %v2975
    %v2977 = vpop.f32.mrb[0].mxu0
    %v2978 = vpop.f32.mrb[0].mxu0
    %2979 = vdwg.mxu0
    %v2980 = vmul.f32 %v2933, 0.5
    %v2981 = vtanh.pop %v2980
    %v2982 = vmul.f32 %v2981, 0.5
    %v2983 = vadd.f32 %v2982, 0.5
    %v2984 = vmul.f32 %v2935, 0.5
    %v2985 = vtanh.pop %v2984
    %v2986 = vmul.f32 %v2985, 0.5
    %v2987 = vadd.f32 %v2986, 0.5
    %v2988 = vtanh.pop %v2974
    %v2989 = vmul.f32 %v2976, 0.5
    %v2990 = vtanh.pop %v2989
    %v2991 = vmul.f32 %v2990, 0.5
    %v2992 = vadd.f32 %v2991, 0.5
    %v2993 = vmul.f32 %v2987, %v2707
    %v2994 = vmul.f32 %v2983, %v2988
    %v2995 = vadd.f32 %v2993, %v2994
    %v2996 = vtanh.pop %v2995
    %v2997 = vmul.f32 %v2992, %v2996
    %v2998 = vpack.c.bf16 %v2997, %v2997
    %2999 = vmatprep.subr.bf16.mxu0 %v536
    %3000 = vmatpush1.bf16.msra.mxu0 %v535
    %3001 = vmatprep.subr.bf16.mxu0 %v540
    %3002 = vmatpush1.bf16.msra.mxu0 %v539
    %3003 = vmatprep.subr.bf16.mxu0 %v544
    %3004 = vmatpush1.bf16.msra.mxu0 %v543
    %3005 = vmatprep.subr.bf16.mxu0 %v548
    %3006 = vmatpush1.bf16.msra.mxu0 %v547
    %3007 = vmatprep.subr.bf16.mxu0 %v552
    %3008 = vmatpush1.bf16.msra.mxu0 %v551
    %3009 = vmatprep.subr.bf16.mxu0 %v556
    %3010 = vmatpush1.bf16.msra.mxu0 %v555
    %3011 = vmatprep.subr.bf16.mxu0 %v560
    %3012 = vmatpush1.bf16.msra.mxu0 %v559
    %3013 = vmatprep.subr.bf16.mxu0 %v564
    %3014 = vmatpush1.bf16.msra.mxu0 %v563
    %3015 = vmatprep.subr.bf16.mxu0 0
    %3016 = vmatpush1.bf16.msra.mxu0 0
    %3017 = vmatprep.subr.bf16.mxu0 0
    %3018 = vmatpush1.bf16.msra.mxu0 0
    %3019 = vmatprep.subr.bf16.mxu0 0
    %3020 = vmatpush1.bf16.msra.mxu0 0
    %3021 = vmatprep.subr.bf16.mxu0 0
    %3022 = vmatpush1.bf16.msra.mxu0 0
    %3023 = vmatprep.subr.bf16.mxu0 0
    %3024 = vmatpush1.bf16.msra.mxu0 0
    %3025 = vmatprep.subr.bf16.mxu0 0
    %3026 = vmatpush1.bf16.msra.mxu0 0
    %3027 = vmatprep.subr.bf16.mxu0 0
    %3028 = vmatpush1.bf16.msra.mxu0 0
    %3029 = vmatprep.subr.bf16.mxu0 0
    %3030 = vmatpush1.bf16.msra.mxu0 0
    %3031 = vmatprep.mubr.bf16.mxu0 0
    %3032 = vmatmul.mubr.bf16.gmra.mrb[0].mxu0 %v2998
    %v3033 = vpop.f32.mrb[0].mxu0
    %v3034 = vadd.f32 %v2847, %v3033
    %v3035 = vpop.f32.mrb[0].mxu0
    %v3036 = vadd.f32 %v2849, %v3035
    %v3037 = vpop.f32.mrb[0].mxu0
    %v3038 = vpop.f32.mrb[0].mxu0
    %3039 = vdwg.mxu0
    %3040 = vmatprep.subr.bf16.mxu0 %v538
    %3041 = vmatpush1.bf16.msra.mxu0 %v537
    %3042 = vmatprep.subr.bf16.mxu0 %v542
    %3043 = vmatpush1.bf16.msra.mxu0 %v541
    %3044 = vmatprep.subr.bf16.mxu0 %v546
    %3045 = vmatpush1.bf16.msra.mxu0 %v545
    %3046 = vmatprep.subr.bf16.mxu0 %v550
    %3047 = vmatpush1.bf16.msra.mxu0 %v549
    %3048 = vmatprep.subr.bf16.mxu0 %v554
    %3049 = vmatpush1.bf16.msra.mxu0 %v553
    %3050 = vmatprep.subr.bf16.mxu0 %v558
    %3051 = vmatpush1.bf16.msra.mxu0 %v557
    %3052 = vmatprep.subr.bf16.mxu0 %v562
    %3053 = vmatpush1.bf16.msra.mxu0 %v561
    %3054 = vmatprep.subr.bf16.mxu0 %v566
    %3055 = vmatpush1.bf16.msra.mxu0 %v565
    %3056 = vmatprep.subr.bf16.mxu0 0
    %3057 = vmatpush1.bf16.msra.mxu0 0
    %3058 = vmatprep.subr.bf16.mxu0 0
    %3059 = vmatpush1.bf16.msra.mxu0 0
    %3060 = vmatprep.subr.bf16.mxu0 0
    %3061 = vmatpush1.bf16.msra.mxu0 0
    %3062 = vmatprep.subr.bf16.mxu0 0
    %3063 = vmatpush1.bf16.msra.mxu0 0
    %3064 = vmatprep.subr.bf16.mxu0 0
    %3065 = vmatpush1.bf16.msra.mxu0 0
    %3066 = vmatprep.subr.bf16.mxu0 0
    %3067 = vmatpush1.bf16.msra.mxu0 0
    %3068 = vmatprep.subr.bf16.mxu0 0
    %3069 = vmatpush1.bf16.msra.mxu0 0
    %3070 = vmatprep.subr.bf16.mxu0 0
    %3071 = vmatpush1.bf16.msra.mxu0 0
    %3072 = vmatprep.mubr.bf16.mxu0 0
    %3073 = vmatmul.mubr.bf16.gmra.mrb[0].mxu0 %v2998
    %v3074 = vpop.f32.mrb[0].mxu0
    %v3075 = vadd.f32 %v2888, %v3074
    %v3076 = vpop.f32.mrb[0].mxu0
    %v3077 = vadd.f32 %v2890, %v3076
    %v3078 = vpop.f32.mrb[0].mxu0
    %v3079 = vpop.f32.mrb[0].mxu0
    %3080 = vdwg.mxu0
    %v3081 = vmul.f32 %v3034, 0.5
    %v3082 = vtanh.pop %v3081
    %v3083 = vmul.f32 %v3082, 0.5
    %v3084 = vadd.f32 %v3083, 0.5
    %v3085 = vmul.f32 %v3036, 0.5
    %v3086 = vtanh.pop %v3085
    %v3087 = vmul.f32 %v3086, 0.5
    %v3088 = vadd.f32 %v3087, 0.5
    %v3089 = vtanh.pop %v3075
    %v3090 = vmul.f32 %v3077, 0.5
    %v3091 = vtanh.pop %v3090
    %v3092 = vmul.f32 %v3091, 0.5
    %v3093 = vadd.f32 %v3092, 0.5
    %v3094 = vmul.f32 %v3088, %v2808
    %v3095 = vmul.f32 %v3084, %v3089
    %v3096 = vadd.f32 %v3094, %v3095
    %v3097 = vtanh.pop %v3096
    %v3098 = vmul.f32 %v3093, %v3097
    %v3099 = vld [vmem:[#allocation9] sm:$0xff]
    %v3100 = vld [vmem:[#allocation9 + $0x8] sm:$0xff]
    %v3101 = vld [vmem:[#allocation9 + $0x10] sm:$0xff]
    %v3102 = vld [vmem:[#allocation9 + $0x18] sm:$0xff]
    %v3103 = vld [vmem:[#allocation9 + $0x20] sm:$0xff]
    %v3104 = vld [vmem:[#allocation9 + $0x28] sm:$0xff]
    %v3105 = vld [vmem:[#allocation9 + $0x30] sm:$0xff]
    %v3106 = vld [vmem:[#allocation9 + $0x38] sm:$0xff]
    %v3107 = vld [vmem:[#allocation9 + $0x40] sm:$0xff]
    %v3108 = vld [vmem:[#allocation9 + $0x48] sm:$0xff]
    %v3109 = vld [vmem:[#allocation9 + $0x50] sm:$0xff]
    %v3110 = vld [vmem:[#allocation9 + $0x58] sm:$0xff]
    %v3111 = vld [vmem:[#allocation9 + $0x60] sm:$0xff]
    %v3112 = vld [vmem:[#allocation9 + $0x68] sm:$0xff]
    %v3113 = vld [vmem:[#allocation9 + $0x70] sm:$0xff]
    %v3114 = vld [vmem:[#allocation9 + $0x78] sm:$0xff]
    %v3115 = vld [vmem:[%s8] sm:$0x1]
    %v3117 = vlaneseq
    %v3118 = vshrl.u32 %v3117, 7
    %v3119 = vsub.s32 0, %v3118
    %v3120 = vrot.slane %v3115, %v3119
    %3122 = vmatprep.subr.mxu0 0.0
    %3123 = vmatpush1.msra.mxu0 %v3099
    %3124 = vmatprep.subr.mxu0 0.0
    %3125 = vmatpush1.msra.mxu0 %v3100
    %3126 = vmatprep.subr.mxu0 0.0
    %3127 = vmatpush1.msra.mxu0 %v3101
    %3128 = vmatprep.subr.mxu0 0.0
    %3129 = vmatpush1.msra.mxu0 %v3102
    %3130 = vmatprep.subr.mxu0 0.0
    %3131 = vmatpush1.msra.mxu0 %v3103
    %3132 = vmatprep.subr.mxu0 0.0
    %3133 = vmatpush1.msra.mxu0 %v3104
    %3134 = vmatprep.subr.mxu0 0.0
    %3135 = vmatpush1.msra.mxu0 %v3105
    %3136 = vmatprep.subr.mxu0 0.0
    %3137 = vmatpush1.msra.mxu0 %v3106
    %3138 = vmatprep.subr.mxu0 0.0
    %3139 = vmatpush1.msra.mxu0 %v3107
    %3140 = vmatprep.subr.mxu0 0.0
    %3141 = vmatpush1.msra.mxu0 %v3108
    %3142 = vmatprep.subr.mxu0 0.0
    %3143 = vmatpush1.msra.mxu0 %v3109
    %3144 = vmatprep.subr.mxu0 0.0
    %3145 = vmatpush1.msra.mxu0 %v3110
    %3146 = vmatprep.subr.mxu0 0.0
    %3147 = vmatpush1.msra.mxu0 %v3111
    %3148 = vmatprep.subr.mxu0 0.0
    %3149 = vmatpush1.msra.mxu0 %v3112
    %3150 = vmatprep.subr.mxu0 0.0
    %3151 = vmatpush1.msra.mxu0 %v3113
    %3152 = vmatprep.subr.mxu0 0.0
    %3153 = vmatpush1.msra.mxu0 %v3114
    %3154 = vmatprep.subr.mxu0 0.0
    %3155 = vmatpush1.msra.mxu0 0.0
    %3156 = vmatprep.subr.mxu0 0.0
    %3157 = vmatpush1.msra.mxu0 0.0
    %3158 = vmatprep.subr.mxu0 0.0
    %3159 = vmatpush1.msra.mxu0 0.0
    %3160 = vmatprep.subr.mxu0 0.0
    %3161 = vmatpush1.msra.mxu0 0.0
    %3162 = vmatprep.subr.mxu0 0.0
    %3163 = vmatpush1.msra.mxu0 0.0
    %3164 = vmatprep.subr.mxu0 0.0
    %3165 = vmatpush1.msra.mxu0 0.0
    %3166 = vmatprep.subr.mxu0 0.0
    %3167 = vmatpush1.msra.mxu0 0.0
    %3168 = vmatprep.subr.mxu0 0.0
    %3169 = vmatpush1.msra.mxu0 0.0
    %3170 = vmatprep.subr.mxu0 0.0
    %3171 = vmatpush1.msra.mxu0 0.0
    %3172 = vmatprep.subr.mxu0 0.0
    %3173 = vmatpush1.msra.mxu0 0.0
    %3174 = vmatprep.subr.mxu0 0.0
    %3175 = vmatpush1.msra.mxu0 0.0
    %3176 = vmatprep.subr.mxu0 0.0
    %3177 = vmatpush1.msra.mxu0 0.0
    %3178 = vmatprep.subr.mxu0 0.0
    %3179 = vmatpush1.msra.mxu0 0.0
    %3180 = vmatprep.subr.mxu0 0.0
    %3181 = vmatpush1.msra.mxu0 0.0
    %3182 = vmatprep.subr.mxu0 0.0
    %3183 = vmatpush1.msra.mxu0 0.0
    %3184 = vmatprep.subr.mxu0 0.0
    %3185 = vmatpush1.msra.mxu0 0.0
    %3186 = vmatprep.mubr.f32.mxu0 0.0
    %3187 = vmatmul.mubr.f32.gmra.mrb[0].mxu0 %v3098
    %v3188 = vpop.f32.mrb[0].mxu0
    %v3189 = vadd.f32 %v3120, %v3188
    %v3190 = vpop.f32.mrb[0].mxu0
    %3191 = vdwg.mxu0
    %3192 = vst [vmem:[#allocation11] sm:$0xff] %v3189
    // Predicated region
    $region54: #{tpu_custom_call.1} parent=1 // pred_check
      _
    $region55: #{tpu_custom_call.1} parent=1 // pred_check_branch
      %3194 = sbr.rel (0) target = $region57
    $region56: #{tpu_custom_call.1} parent=1 // pred_region
      %s3196 = ssub.s32 128, 128
      %3197 = vsyncadd [#allocation5], %s3196
      %s3199 = sshll.u32 [#allocation11], 4
      %s3200 = int_to_ptr.vmem [resolvable:$true] %s3199
      %3202 = dma.vmem_to_hbm [thread:$0]  %s3200, 128, %s9, [#allocation5]
    $region57: #{tpu_custom_call.1} parent=1 // pred_fallthru
      _
    // Predicated region
    $region58: #{tpu_custom_call.1} parent=1 // pred_check
      _
    $region59: #{tpu_custom_call.1} parent=1 // pred_check_branch
      %3204 = sbr.rel (0) target = $region61
    $region60: #{tpu_custom_call.1} parent=1 // pred_region
      %3205 = dma.done [#allocation5], 128
    $region61: #{tpu_custom_call.1} parent=1 // pred_fallthru
      _
    %3206 = vsyncpa [#allocation4], 1
    %3207 = vsyncpa [#allocation7], 1
    %3208 = vsyncpa [#allocation10], 1
    %3209 = vsyncpa [#allocation5], 1

</llo_original>
